<compile_context>
chip_gen: v6e
topology: v6e:2x2x1
jax: 0.10.0
libtpu: 0.0.40
codegen_flags: <defaults>
</compile_context>

<pallas_src>
import functools

import jax
import jax.numpy as jnp
from jax.experimental import pallas as pl
from jax.experimental.pallas import tpu as pltpu

COMPUTE_DTYPE = jnp.bfloat16   # MXU input dtype; accumulation is always f32
VMEM_LIMIT = 48 << 20          # fits v5e/v6e (128 MiB) and leaves headroom on v7x (64 MiB)
ROW_TILE = 256                 # M tile (multiple of 8)
LANE = 128


def _round_up(n, m):
    return ((n + m - 1) // m) * m


# ----------------------------------------------------------------------------
# Pallas kernel 1: fused  out = relu?(x @ w + b), tiled over rows of x.
# ----------------------------------------------------------------------------
def _matmul_bias_kernel(x_ref, w_ref, b_ref, o_ref, *, relu: bool):
    acc = jnp.dot(x_ref[...], w_ref[...], preferred_element_type=jnp.float32)
    acc = acc + b_ref[...]                    # (1, N) f32 broadcast over rows
    if relu:
        acc = jnp.maximum(acc, 0.0)
    o_ref[...] = acc.astype(o_ref.dtype)


def matmul_bias(x, w, b, *, relu: bool, out_dtype=jnp.float32, tm=ROW_TILE):
    """x: (M, K); w: (K, N) with N % 128 == 0; b: (N,) f32 -> (M, N)."""
    M, K = x.shape
    K2, N = w.shape
    assert K == K2 and N % LANE == 0
    if M <= tm:
        tm = M                                # single full-extent row block
    grid_m = pl.cdiv(M, tm)
    kernel = functools.partial(_matmul_bias_kernel, relu=relu)
    return pl.pallas_call(
        kernel,
        out_shape=jax.ShapeDtypeStruct((M, N), out_dtype),
        grid=(grid_m,),
        in_specs=[
            pl.BlockSpec((tm, K), lambda i: (i, 0)),
            pl.BlockSpec((K, N), lambda i: (0, 0)),   # weights stay resident
            pl.BlockSpec((1, N), lambda i: (0, 0)),
        ],
        out_specs=pl.BlockSpec((tm, N), lambda i: (i, 0)),
        compiler_params=pltpu.CompilerParams(
            dimension_semantics=("parallel",),
            vmem_limit_bytes=VMEM_LIMIT),
    )(x, w, b.reshape(1, N))


# ----------------------------------------------------------------------------
# Pallas kernel 2: fused MLP head  actions = relu(x @ w1 + b1) @ w2 + b2
# (fc and out layers in one launch; w2/b2 lane-padded to N=128)
# ----------------------------------------------------------------------------
def _mlp_head_kernel(x_ref, w1_ref, b1_ref, w2_ref, b2_ref, o_ref):
    h = jnp.dot(x_ref[...], w1_ref[...], preferred_element_type=jnp.float32)
    h = jnp.maximum(h + b1_ref[...], 0.0)
    o = jnp.dot(h.astype(w2_ref.dtype), w2_ref[...],
                preferred_element_type=jnp.float32)
    o_ref[...] = (o + b2_ref[...]).astype(o_ref.dtype)


def mlp_head(x, w1, b1, w2, b2, *, tm=ROW_TILE):
    M, K = x.shape
    K1, H = w1.shape
    H2, N = w2.shape
    assert K == K1 and H == H2 and N % LANE == 0
    if M <= tm:
        tm = M
    grid_m = pl.cdiv(M, tm)
    return pl.pallas_call(
        _mlp_head_kernel,
        out_shape=jax.ShapeDtypeStruct((M, N), jnp.float32),
        grid=(grid_m,),
        in_specs=[
            pl.BlockSpec((tm, K), lambda i: (i, 0)),
            pl.BlockSpec((K, H), lambda i: (0, 0)),
            pl.BlockSpec((1, H), lambda i: (0, 0)),
            pl.BlockSpec((H, N), lambda i: (0, 0)),
            pl.BlockSpec((1, N), lambda i: (0, 0)),
        ],
        out_specs=pl.BlockSpec((tm, N), lambda i: (i, 0)),
        compiler_params=pltpu.CompilerParams(
            dimension_semantics=("parallel",),
            vmem_limit_bytes=VMEM_LIMIT),
    )(x, w1, b1.reshape(1, H), w2, b2.reshape(1, N))


# ----------------------------------------------------------------------------
# NHWC im2col glue (plain JAX): (B,H,W,C) -> (B*Ho*Wo, k*k*C), cols = (kh,kw,c)
# TODO(synk): replace this XLA gather with an in-kernel shift-and-matmul conv
#             (loop over k*k offsets, accumulate dots against (Cin,Cout) slices)
#             so the input is read from HBM exactly once.
# ----------------------------------------------------------------------------
def im2col_nhwc(x, k, s):
    B, H, W, C = x.shape
    Ho = (H - k) // s + 1
    Wo = (W - k) // s + 1
    idx_h = (jnp.arange(Ho) * s)[:, None] + jnp.arange(k)[None, :]   # (Ho, k)
    idx_w = (jnp.arange(Wo) * s)[:, None] + jnp.arange(k)[None, :]   # (Wo, k)
    # advanced indexing -> (B, Ho, kh, Wo, kw, C)
    patches = x[:, idx_h[:, :, None, None], idx_w[None, None, :, :], :]
    patches = patches.transpose(0, 1, 3, 2, 4, 5)    # (B, Ho, Wo, kh, kw, C)
    return patches.reshape(B * Ho * Wo, k * k * C), Ho, Wo


def conv2d_relu_nhwc(x, w_mat, b, cout, k, s):
    """x: (B,H,W,Cin) NHWC; w_mat: (k*k*Cin, 128) lane-padded; b: (128,) f32."""
    B = x.shape[0]
    cols, Ho, Wo = im2col_nhwc(x, k, s)                      # (B*Ho*Wo, k*k*Cin)
    y = matmul_bias(cols, w_mat, b, relu=True, out_dtype=x.dtype)   # (M, 128)
    return y[:, :cout].reshape(B, Ho, Wo, cout)              # NHWC, no transpose


# ----------------------------------------------------------------------------
# Parameters: PyTorch-layout init, then one-time conversion to kernel layout.
# ----------------------------------------------------------------------------
def init_params(num_actions, key):
    """PyTorch-default-style uniform(-1/sqrt(fan_in)) init, PyTorch layouts."""
    ks = jax.random.split(key, 8)

    def u(k, shape, fan_in):
        bound = 1.0 / jnp.sqrt(fan_in)
        return jax.random.uniform(k, shape, jnp.float32, -bound, bound)

    p = {}
    p["conv1_w"] = u(ks[0], (16, 4, 8, 8), 4 * 8 * 8)
    p["conv1_b"] = u(ks[1], (16,), 4 * 8 * 8)
    p["conv2_w"] = u(ks[2], (32, 16, 4, 4), 16 * 4 * 4)
    p["conv2_b"] = u(ks[3], (32,), 16 * 4 * 4)
    p["fc_w"] = u(ks[4], (256, 32 * 9 * 9), 32 * 9 * 9)
    p["fc_b"] = u(ks[5], (256,), 32 * 9 * 9)
    p["out_w"] = u(ks[6], (num_actions, 256), 256)
    p["out_b"] = u(ks[7], (num_actions,), 256)
    return p


def prepare_params(p, compute_dtype=COMPUTE_DTYPE):
    """One-time conversion: NHWC conv weight matrices, fc_w permuted for the
    NHWC flatten, lane-padding of small output dims to 128, bf16 weights,
    f32 biases. Done once, outside the per-step forward."""
    def conv_wmat(w):  # (Cout, Cin, k, k) -> (k*k*Cin, Cout), rows = (kh,kw,c)
        Cout, Cin, k, _ = w.shape
        return w.transpose(2, 3, 1, 0).reshape(k * k * Cin, Cout)

    def pad_n(w, b):
        K, N = w.shape
        Np = _round_up(N, LANE)
        if Np != N:
            w = jnp.pad(w, ((0, 0), (0, Np - N)))
            b = jnp.pad(b, ((0, Np - N),))
        return w, b

    q = {}
    w, b = pad_n(conv_wmat(p["conv1_w"]), p["conv1_b"])
    q["conv1_w"], q["conv1_b"] = w.astype(compute_dtype), b.astype(jnp.float32)
    w, b = pad_n(conv_wmat(p["conv2_w"]), p["conv2_b"])
    q["conv2_w"], q["conv2_b"] = w.astype(compute_dtype), b.astype(jnp.float32)

    # PyTorch flatten order is (C,H,W); we keep NHWC so permute fc_w rows to
    # (H,W,C) and pre-transpose to (K, 256) once.
    fc_w = p["fc_w"].reshape(256, 32, 9, 9).transpose(2, 3, 1, 0)
    q["fc_w"] = fc_w.reshape(32 * 9 * 9, 256).astype(compute_dtype)
    q["fc_b"] = p["fc_b"].astype(jnp.float32)

    out_w, out_b = pad_n(p["out_w"].T, p["out_b"])           # (256, 128)
    q["out_w"] = out_w.astype(compute_dtype)
    q["out_b"] = out_b.astype(jnp.float32)
    return q


# ----------------------------------------------------------------------------
# Forward pass (mirrors DQN.forward)
# ----------------------------------------------------------------------------
def dqn_forward(params, state, *, num_actions):
    """state: (B, 4, 84, 84) float32 NCHW (PyTorch convention)."""
    compute_dtype = params["conv1_w"].dtype
    x = state.astype(compute_dtype).transpose(0, 2, 3, 1)    # NHWC once (B,84,84,4)
    B = x.shape[0]

    x = conv2d_relu_nhwc(x, params["conv1_w"], params["conv1_b"],
                         cout=16, k=8, s=4)                  # (B,20,20,16)
    x = conv2d_relu_nhwc(x, params["conv2_w"], params["conv2_b"],
                         cout=32, k=4, s=2)                  # (B, 9, 9,32)

    flat = x.reshape(B, 32 * 9 * 9)                          # NHWC flatten (fc_w pre-permuted)
    actions = mlp_head(flat, params["fc_w"], params["fc_b"],
                       params["out_w"], params["out_b"])     # (B, 128) f32, lane-dense
    return actions[:, :num_actions]                          # (B, num_actions)


if __name__ == "__main__":
    num_actions = 4   # Breakout action space
    batch = 2
    key = jax.random.PRNGKey(0)
    k_param, k_in = jax.random.split(key)

    torch_layout_params = init_params(num_actions, k_param)
    params = prepare_params(torch_layout_params)

    # Input spatial must be 84x84: the fc layer hardcodes 32*9*9 features.
    state = jax.random.uniform(k_in, (batch, 4, 84, 84), jnp.float32)

    fwd = jax.jit(functools.partial(dqn_forward, num_actions=num_actions))
    actions = jax.block_until_ready(fwd(params, state))

    assert actions.shape == (batch, num_actions), actions.shape
    assert actions.dtype == jnp.float32
    assert bool(jnp.all(jnp.isfinite(actions)))
    print("KERNEL_OK")
</pallas_src>

<mosaic_0001>
module attributes {stable_mosaic.version = 11 : i64} {
  func.func @_matmul_bias_kernel(%arg0: i32, %arg1: memref<256x256xbf16, #tpu.memory_space<vmem>>, %arg2: memref<256x128xbf16, #tpu.memory_space<vmem>>, %arg3: memref<1x128xf32, #tpu.memory_space<vmem>>, %arg4: memref<256x128xbf16, #tpu.memory_space<vmem>>) attributes {dimension_semantics = [#tpu.dimension_semantics<parallel>], iteration_bounds = array<i64: 4>, scalar_prefetch = 0 : i64, scratch_operands = 0 : i64, tpu.core_type = #tpu.core_type<tc>, window_params = [{transform_indices = @transform_0, window_bounds = array<i64: 256, 256>}, {pipeline_mode = #tpu.pipeline_mode<synchronous>, transform_indices = @transform_1, window_bounds = array<i64: 256, 128>}, {pipeline_mode = #tpu.pipeline_mode<synchronous>, transform_indices = @transform_2, window_bounds = array<i64: 1, 128>}, {transform_indices = @transform_3, window_bounds = array<i64: 256, 128>}]} {
    %c0 = arith.constant 0 : index
    %c0_0 = arith.constant 0 : index
    %0 = vector.load %arg1[%c0, %c0_0] : memref<256x256xbf16, #tpu.memory_space<vmem>>, vector<256x256xbf16>
    %c0_1 = arith.constant 0 : index
    %c0_2 = arith.constant 0 : index
    %1 = vector.load %arg2[%c0_1, %c0_2] : memref<256x128xbf16, #tpu.memory_space<vmem>>, vector<256x128xbf16>
    %cst = arith.constant dense<0.000000e+00> : vector<256x128xf32>
    %2 = tpu.matmul %0, %1, %cst {dimension_numbers = #tpu.dot_dimension_numbers<[1], [0], [0], [1], [0, 0, 1, 1], [], []>} : vector<256x256xbf16>, vector<256x128xbf16>, vector<256x128xf32> -> vector<256x128xf32>
    %c0_3 = arith.constant 0 : index
    %c0_4 = arith.constant 0 : index
    %3 = vector.load %arg3[%c0_3, %c0_4] : memref<1x128xf32, #tpu.memory_space<vmem>>, vector<1x128xf32>
    %4 = vector.broadcast %3 : vector<1x128xf32> to vector<256x128xf32>
    %5 = arith.addf %2, %4 : vector<256x128xf32>
    %cst_5 = arith.constant 0.000000e+00 : f32
    %6 = vector.broadcast %cst_5 : f32 to vector<256x128xf32>
    %7 = arith.maximumf %5, %6 : vector<256x128xf32>
    %8 = arith.truncf %7 : vector<256x128xf32> to vector<256x128xbf16>
    %c0_6 = arith.constant 0 : index
    %c0_7 = arith.constant 0 : index
    %9 = vector.load %arg4[%c0_6, %c0_7] : memref<256x128xbf16, #tpu.memory_space<vmem>>, vector<256x128xbf16>
    tpu.vector_store %arg4[%c0_6, %c0_7], %8 {strides = array<i32>} : memref<256x128xbf16, #tpu.memory_space<vmem>>, vector<256x128xbf16>,
    return
  }
  func.func @transform_0(%arg0: i32) -> (i32, i32) {
    %c0_i32 = arith.constant 0 : i32
    %c0_i32_0 = arith.constant 0 : i32
    return %arg0, %c0_i32 : i32, i32
  }
  func.func @transform_1(%arg0: i32) -> (i32, i32) {
    %c0_i32 = arith.constant 0 : i32
    %c0_i32_0 = arith.constant 0 : i32
    %c0_i32_1 = arith.constant 0 : i32
    return %c0_i32, %c0_i32_0 : i32, i32
  }
  func.func @transform_2(%arg0: i32) -> (i32, i32) {
    %c0_i32 = arith.constant 0 : i32
    %c0_i32_0 = arith.constant 0 : i32
    %c0_i32_1 = arith.constant 0 : i32
    return %c0_i32, %c0_i32_0 : i32, i32
  }
  func.func @transform_3(%arg0: i32) -> (i32, i32) {
    %c0_i32 = arith.constant 0 : i32
    %c0_i32_0 = arith.constant 0 : i32
    return %arg0, %c0_i32 : i32, i32
  }
}

module attributes {stable_mosaic.version = 11 : i64} {
  func.func @_matmul_bias_kernel(%arg0: i32, %arg1: memref<162x256xbf16, #tpu.memory_space<vmem>>, %arg2: memref<256x128xbf16, #tpu.memory_space<vmem>>, %arg3: memref<1x128xf32, #tpu.memory_space<vmem>>, %arg4: memref<162x128xbf16, #tpu.memory_space<vmem>>) attributes {dimension_semantics = [#tpu.dimension_semantics<parallel>], iteration_bounds = array<i64: 1>, scalar_prefetch = 0 : i64, scratch_operands = 0 : i64, tpu.core_type = #tpu.core_type<tc>, window_params = [{transform_indices = @transform_0, window_bounds = array<i64: 162, 256>}, {pipeline_mode = #tpu.pipeline_mode<synchronous>, transform_indices = @transform_1, window_bounds = array<i64: 256, 128>}, {pipeline_mode = #tpu.pipeline_mode<synchronous>, transform_indices = @transform_2, window_bounds = array<i64: 1, 128>}, {transform_indices = @transform_3, window_bounds = array<i64: 162, 128>}]} {
    %c0 = arith.constant 0 : index
    %c0_0 = arith.constant 0 : index
    %0 = vector.load %arg1[%c0, %c0_0] : memref<162x256xbf16, #tpu.memory_space<vmem>>, vector<162x256xbf16>
    %c0_1 = arith.constant 0 : index
    %c0_2 = arith.constant 0 : index
    %1 = vector.load %arg2[%c0_1, %c0_2] : memref<256x128xbf16, #tpu.memory_space<vmem>>, vector<256x128xbf16>
    %cst = arith.constant dense<0.000000e+00> : vector<162x128xf32>
    %2 = tpu.matmul %0, %1, %cst {dimension_numbers = #tpu.dot_dimension_numbers<[1], [0], [0], [1], [0, 0, 1, 1], [], []>} : vector<162x256xbf16>, vector<256x128xbf16>, vector<162x128xf32> -> vector<162x128xf32>
    %c0_3 = arith.constant 0 : index
    %c0_4 = arith.constant 0 : index
    %3 = vector.load %arg3[%c0_3, %c0_4] : memref<1x128xf32, #tpu.memory_space<vmem>>, vector<1x128xf32>
    %4 = vector.broadcast %3 : vector<1x128xf32> to vector<162x128xf32>
    %5 = arith.addf %2, %4 : vector<162x128xf32>
    %cst_5 = arith.constant 0.000000e+00 : f32
    %6 = vector.broadcast %cst_5 : f32 to vector<162x128xf32>
    %7 = arith.maximumf %5, %6 : vector<162x128xf32>
    %8 = arith.truncf %7 : vector<162x128xf32> to vector<162x128xbf16>
    %c0_6 = arith.constant 0 : index
    %c0_7 = arith.constant 0 : index
    %9 = vector.load %arg4[%c0_6, %c0_7] : memref<162x128xbf16, #tpu.memory_space<vmem>>, vector<162x128xbf16>
    tpu.vector_store %arg4[%c0_6, %c0_7], %8 {strides = array<i32>} : memref<162x128xbf16, #tpu.memory_space<vmem>>, vector<162x128xbf16>,
    return
  }
  func.func @transform_0(%arg0: i32) -> (i32, i32) {
    %c0_i32 = arith.constant 0 : i32
    %c0_i32_0 = arith.constant 0 : i32
    return %arg0, %c0_i32 : i32, i32
  }
  func.func @transform_1(%arg0: i32) -> (i32, i32) {
    %c0_i32 = arith.constant 0 : i32
    %c0_i32_0 = arith.constant 0 : i32
    %c0_i32_1 = arith.constant 0 : i32
    return %c0_i32, %c0_i32_0 : i32, i32
  }
  func.func @transform_2(%arg0: i32) -> (i32, i32) {
    %c0_i32 = arith.constant 0 : i32
    %c0_i32_0 = arith.constant 0 : i32
    %c0_i32_1 = arith.constant 0 : i32
    return %c0_i32, %c0_i32_0 : i32, i32
  }
  func.func @transform_3(%arg0: i32) -> (i32, i32) {
    %c0_i32 = arith.constant 0 : i32
    %c0_i32_0 = arith.constant 0 : i32
    return %arg0, %c0_i32 : i32, i32
  }
}

module attributes {stable_mosaic.version = 11 : i64} {
  func.func @_mlp_head_kernel(%arg0: i32, %arg1: memref<2x2592xbf16, #tpu.memory_space<vmem>>, %arg2: memref<2592x256xbf16, #tpu.memory_space<vmem>>, %arg3: memref<1x256xf32, #tpu.memory_space<vmem>>, %arg4: memref<256x128xbf16, #tpu.memory_space<vmem>>, %arg5: memref<1x128xf32, #tpu.memory_space<vmem>>, %arg6: memref<2x128xf32, #tpu.memory_space<vmem>>) attributes {dimension_semantics = [#tpu.dimension_semantics<parallel>], iteration_bounds = array<i64: 1>, scalar_prefetch = 0 : i64, scratch_operands = 0 : i64, tpu.core_type = #tpu.core_type<tc>, window_params = [{transform_indices = @transform_0, window_bounds = array<i64: 2, 2592>}, {pipeline_mode = #tpu.pipeline_mode<synchronous>, transform_indices = @transform_1, window_bounds = array<i64: 2592, 256>}, {pipeline_mode = #tpu.pipeline_mode<synchronous>, transform_indices = @transform_2, window_bounds = array<i64: 1, 256>}, {pipeline_mode = #tpu.pipeline_mode<synchronous>, transform_indices = @transform_3, window_bounds = array<i64: 256, 128>}, {pipeline_mode = #tpu.pipeline_mode<synchronous>, transform_indices = @transform_4, window_bounds = array<i64: 1, 128>}, {transform_indices = @transform_5, window_bounds = array<i64: 2, 128>}]} {
    %c0 = arith.constant 0 : index
    %c0_0 = arith.constant 0 : index
    %0 = vector.load %arg1[%c0, %c0_0] : memref<2x2592xbf16, #tpu.memory_space<vmem>>, vector<2x2592xbf16>
    %c0_1 = arith.constant 0 : index
    %c0_2 = arith.constant 0 : index
    %1 = vector.load %arg2[%c0_1, %c0_2] : memref<2592x256xbf16, #tpu.memory_space<vmem>>, vector<2592x256xbf16>
    %cst = arith.constant dense<0.000000e+00> : vector<2x256xf32>
    %2 = tpu.matmul %0, %1, %cst {dimension_numbers = #tpu.dot_dimension_numbers<[1], [0], [0], [1], [0, 0, 1, 1], [], []>} : vector<2x2592xbf16>, vector<2592x256xbf16>, vector<2x256xf32> -> vector<2x256xf32>
    %c0_3 = arith.constant 0 : index
    %c0_4 = arith.constant 0 : index
    %3 = vector.load %arg3[%c0_3, %c0_4] : memref<1x256xf32, #tpu.memory_space<vmem>>, vector<1x256xf32>
    %4 = vector.broadcast %3 : vector<1x256xf32> to vector<2x256xf32>
    %5 = arith.addf %2, %4 : vector<2x256xf32>
    %cst_5 = arith.constant 0.000000e+00 : f32
    %6 = vector.broadcast %cst_5 : f32 to vector<2x256xf32>
    %7 = arith.maximumf %5, %6 : vector<2x256xf32>
    %8 = arith.truncf %7 : vector<2x256xf32> to vector<2x256xbf16>
    %c0_6 = arith.constant 0 : index
    %c0_7 = arith.constant 0 : index
    %9 = vector.load %arg4[%c0_6, %c0_7] : memref<256x128xbf16, #tpu.memory_space<vmem>>, vector<256x128xbf16>
    %cst_8 = arith.constant dense<0.000000e+00> : vector<2x128xf32>
    %10 = tpu.matmul %8, %9, %cst_8 {dimension_numbers = #tpu.dot_dimension_numbers<[1], [0], [0], [1], [0, 0, 1, 1], [], []>} : vector<2x256xbf16>, vector<256x128xbf16>, vector<2x128xf32> -> vector<2x128xf32>
    %c0_9 = arith.constant 0 : index
    %c0_10 = arith.constant 0 : index
    %11 = vector.load %arg5[%c0_9, %c0_10] : memref<1x128xf32, #tpu.memory_space<vmem>>, vector<1x128xf32>
    %12 = vector.broadcast %11 : vector<1x128xf32> to vector<2x128xf32>
    %13 = arith.addf %10, %12 : vector<2x128xf32>
    %c0_11 = arith.constant 0 : index
    %c0_12 = arith.constant 0 : index
    %14 = vector.load %arg6[%c0_11, %c0_12] : memref<2x128xf32, #tpu.memory_space<vmem>>, vector<2x128xf32>
    tpu.vector_store %arg6[%c0_11, %c0_12], %13 {strides = array<i32>} : memref<2x128xf32, #tpu.memory_space<vmem>>, vector<2x128xf32>,
    return
  }
  func.func @transform_0(%arg0: i32) -> (i32, i32) {
    %c0_i32 = arith.constant 0 : i32
    %c0_i32_0 = arith.constant 0 : i32
    return %arg0, %c0_i32 : i32, i32
  }
  func.func @transform_1(%arg0: i32) -> (i32, i32) {
    %c0_i32 = arith.constant 0 : i32
    %c0_i32_0 = arith.constant 0 : i32
    %c0_i32_1 = arith.constant 0 : i32
    return %c0_i32, %c0_i32_0 : i32, i32
  }
  func.func @transform_2(%arg0: i32) -> (i32, i32) {
    %c0_i32 = arith.constant 0 : i32
    %c0_i32_0 = arith.constant 0 : i32
    %c0_i32_1 = arith.constant 0 : i32
    return %c0_i32, %c0_i32_0 : i32, i32
  }
  func.func @transform_3(%arg0: i32) -> (i32, i32) {
    %c0_i32 = arith.constant 0 : i32
    %c0_i32_0 = arith.constant 0 : i32
    %c0_i32_1 = arith.constant 0 : i32
    return %c0_i32, %c0_i32_0 : i32, i32
  }
  func.func @transform_4(%arg0: i32) -> (i32, i32) {
    %c0_i32 = arith.constant 0 : i32
    %c0_i32_0 = arith.constant 0 : i32
    %c0_i32_1 = arith.constant 0 : i32
    return %c0_i32, %c0_i32_0 : i32, i32
  }
  func.func @transform_5(%arg0: i32) -> (i32, i32) {
    %c0_i32 = arith.constant 0 : i32
    %c0_i32_0 = arith.constant 0 : i32
    return %arg0, %c0_i32 : i32, i32
  }
}

</mosaic_0001>

<llo_original>
// kernel: dqn_forward.3
$region0: #{dqn_forward.3}
  #allocation0 [shape = 'u32[]', space=smem, size = 0x4, offset = 0x4, fixed_abs, tag = 'smem constant byte address 0x4 - core index']
  #allocation1 [shape = 'u32[144,128]{1,0:T(1,128)}', space=vmem, size = 0x12000, scoped, tag = 'internal scratch']
  %s0 = inlined_call_operand.vmem [shape: bf16[800,256], index: 0, kind: input, shape index: {}]
  %s1 = inlined_call_operand.vmem [shape: bf16[256,128], index: 1, kind: input, shape index: {}]
  %s2 = inlined_call_operand.vmem [shape: f32[1,128], index: 2, kind: input, shape index: {}]
  %s3 = inlined_call_operand.vmem [shape: bf16[800,128], index: 3, kind: output, shape index: {}]
  %s4 = sld [smem:[#allocation0]]
  $region89: #{dqn_forward.3} parent=0
    _
  %s6 = ssub.s32 1, %s4
  %s7 = scalar_select 0, %s6, %s4
  $region1: #{dqn_forward.3} parent=0
    #allocation2 [shape = 'u8[131072]{0}', space=vmem, size = 0x20000, scoped, tag = 'output window, operand 0']
    loop: start=0, step=1, limit=6
    $region2: #{dqn_forward.3} parent=1 // loop_pre_header
      _
    $region3: #{dqn_forward.3} parent=1 // loop_header
      %s9 = sphi 0, %s13
      %p10 = scmp.ge.s32.totalorder %s9, 6
      %s19 = sphi 0, %s21
      %s22 = sphi 0, %s19
      %s23 = sphi 0, %s22
      %s39 = sphi 0, %s23
      %s43 = sphi 0, %s43
      %s45 = sphi 0, %s43
      %s46 = sphi 0, %s45
      %s60 = sphi 0, %s46
      %s64 = sphi 0, %s64
      %s66 = sphi 0, %s64
      %s67 = sphi 0, %s66
      %s81 = sphi 0, %s67
      %s87 = sphi 0, %s89
      %s90 = sphi 0, %s87
      %s91 = sphi 0, %s90
      %s107 = sphi 0, %s91
    $region4: #{dqn_forward.3} parent=1 // loop_header_branch
      %12 = sbr.rel (%p10) target = $region8
    $region5: #{dqn_forward.3} parent=1 // loop_body
      %s14 = ssub.s32 %s9, 1
      %s15 = ssub.s32 %s9, 2
      %s16 = sadd.s32 %s9, 1
      %s17 = ssub.s32 %s9, %s16
      %p18 = scmp.eq.s32.totalorder %s17, 0
      %s20 = sadd.s32 %s19, 1
      %s21 = scalar_select %p18, %s19, %s20
      %p24 = pneg %p18
      %p25 = scmp.eq.s32.totalorder %s9, 3
      %p26 = por %p24, %p25
      %p27 = scmp.ne.s32.totalorder %s19, %s22
      %p28 = scmp.eq.s32.totalorder %s9, 0
      %p29 = por %p27, %p28
      %p30 = scmp.ne.s32.totalorder %s19, %s22
      %p31 = scmp.eq.s32.totalorder %s14, 3
      %p32 = por %p30, %p31
      %p33 = scmp.ne.s32.totalorder %s22, %s23
      %p34 = scmp.eq.s32.totalorder %s14, 0
      %p35 = por %p33, %p34
      %p36 = scmp.ne.s32.totalorder %s22, %s23
      %p37 = scmp.eq.s32.totalorder %s15, 3
      %p38 = por %p36, %p37
      %p40 = scmp.ne.s32.totalorder %s23, %s39
      %p41 = scmp.eq.s32.totalorder %s15, 0
      %p42 = por %p40, %p41
      %s44 = sadd.s32 %s43, 1
      %p47 = scmp.eq.s32.totalorder %s9, 3
      %p48 = scmp.ne.s32.totalorder %s43, %s45
      %p49 = scmp.eq.s32.totalorder %s9, 0
      %p50 = por %p48, %p49
      %p51 = scmp.ne.s32.totalorder %s43, %s45
      %p52 = scmp.eq.s32.totalorder %s14, 3
      %p53 = por %p51, %p52
      %p54 = scmp.ne.s32.totalorder %s45, %s46
      %p55 = scmp.eq.s32.totalorder %s14, 0
      %p56 = por %p54, %p55
      %p57 = scmp.ne.s32.totalorder %s45, %s46
      %p58 = scmp.eq.s32.totalorder %s15, 3
      %p59 = por %p57, %p58
      %p61 = scmp.ne.s32.totalorder %s46, %s60
      %p62 = scmp.eq.s32.totalorder %s15, 0
      %p63 = por %p61, %p62
      %s65 = sadd.s32 %s64, 1
      %p68 = scmp.eq.s32.totalorder %s9, 3
      %p69 = scmp.ne.s32.totalorder %s64, %s66
      %p70 = scmp.eq.s32.totalorder %s9, 0
      %p71 = por %p69, %p70
      %p72 = scmp.ne.s32.totalorder %s64, %s66
      %p73 = scmp.eq.s32.totalorder %s14, 3
      %p74 = por %p72, %p73
      %p75 = scmp.ne.s32.totalorder %s66, %s67
      %p76 = scmp.eq.s32.totalorder %s14, 0
      %p77 = por %p75, %p76
      %p78 = scmp.ne.s32.totalorder %s66, %s67
      %p79 = scmp.eq.s32.totalorder %s15, 3
      %p80 = por %p78, %p79
      %p82 = scmp.ne.s32.totalorder %s67, %s81
      %p83 = scmp.eq.s32.totalorder %s15, 0
      %p84 = por %p82, %p83
      %s85 = ssub.s32 %s9, %s16
      %p86 = scmp.eq.s32.totalorder %s85, 0
      %s88 = sadd.s32 %s87, 1
      %s89 = scalar_select %p86, %s87, %s88
      %p92 = pneg %p86
      %p93 = scmp.eq.s32.totalorder %s9, 3
      %p94 = por %p92, %p93
      %p95 = scmp.ne.s32.totalorder %s87, %s90
      %p96 = scmp.eq.s32.totalorder %s9, 0
      %p97 = por %p95, %p96
      %p98 = scmp.ne.s32.totalorder %s87, %s90
      %p99 = scmp.eq.s32.totalorder %s14, 3
      %p100 = por %p98, %p99
      %p101 = scmp.ne.s32.totalorder %s90, %s91
      %p102 = scmp.eq.s32.totalorder %s14, 0
      %p103 = por %p101, %p102
      %p104 = scmp.ne.s32.totalorder %s90, %s91
      %p105 = scmp.eq.s32.totalorder %s15, 3
      %p106 = por %p104, %p105
      %p108 = scmp.ne.s32.totalorder %s91, %s107
      %p109 = scmp.eq.s32.totalorder %s15, 0
      %p110 = por %p108, %p109
      %p111 = scmp.le.s32.totalorder 1, %s9
      %p112 = scmp.lt.s32.totalorder %s9, 5
      %p113 = pnand %p111, %p112
      %p114 = pneg %p113
      // Predicated region
      $region9: #{dqn_forward.3} parent=5 // pred_check
        _
      $region10: #{dqn_forward.3} parent=5 // pred_check_branch
        %116 = sbr.rel (%p113) target = $region12
      $region11: #{dqn_forward.3} parent=5 // pred_region
        %s117 = ssub.s32 %s9, 1
        // Predicated region
        $region13: #{dqn_forward.3} parent=11 // pred_check
          %p118 = pneg %p56
        $region14: #{dqn_forward.3} parent=11 // pred_check_branch
          %120 = sbr.rel (%p118) target = $region16
        $region15: #{dqn_forward.3} parent=11 // pred_region
          _
        $region16: #{dqn_forward.3} parent=11 // pred_fallthru
          _
        // Predicated region
        $region17: #{dqn_forward.3} parent=11 // pred_check
          %p121 = pneg %p77
        $region18: #{dqn_forward.3} parent=11 // pred_check_branch
          %123 = sbr.rel (%p121) target = $region20
        $region19: #{dqn_forward.3} parent=11 // pred_region
          _
        $region20: #{dqn_forward.3} parent=11 // pred_fallthru
          _
      $region12: #{dqn_forward.3} parent=5 // pred_fallthru
        _
      %p124 = scmp.lt.s32.totalorder %s9, 4
      // Predicated region
      $region21: #{dqn_forward.3} parent=5 // pred_check
        %p125 = pneg %p124
      $region22: #{dqn_forward.3} parent=5 // pred_check_branch
        %127 = sbr.rel (%p125) target = $region24
      $region23: #{dqn_forward.3} parent=5 // pred_region
        // Predicated region
        $region25: #{dqn_forward.3} parent=23 // pred_check
          %p128 = pneg %p29
        $region26: #{dqn_forward.3} parent=23 // pred_check_branch
          %130 = sbr.rel (%p128) target = $region28
        $region27: #{dqn_forward.3} parent=23 // pred_region
          %s131 = smul.u32 32, %s9
          %s132 = ssub.s32 100, %s131
          %p133 = scmp.lt.s32.totalorder %s132, 32
          %s134 = scalar_select %p133, %s132, 32
          %s135 = smul.u32 64, %s134
          %s136 = smul.u32 %s135, 2
          %p137 = scmp.lt.s32.totalorder %s131, 99
          %s138 = scalar_select %p137, %s131, 99
          %s139 = smul.addr %s138, 2
          %s140 = smul.addr %s139, 4
          %s141 = scalar_lea.vmem %s0, %s140
          %s142 = smul.u32 32, %s9
          %s143 = ssub.s32 100, %s142
          %p144 = scmp.lt.s32.totalorder %s143, 32
          %s145 = scalar_select %p144, %s143, 32
          %s146 = smul.u32 64, %s145
          %s147 = smul.u32 %s146, 2
        $region28: #{dqn_forward.3} parent=23 // pred_fallthru
          _
      $region24: #{dqn_forward.3} parent=5 // pred_fallthru
        _
      %p148 = scmp.le.s32.totalorder 1, %s9
      %p149 = scmp.lt.s32.totalorder %s9, 5
      %p150 = pnand %p148, %p149
      %p151 = pneg %p150
      // Predicated region
      $region29: #{dqn_forward.3} parent=5 // pred_check
        _
      $region30: #{dqn_forward.3} parent=5 // pred_check_branch
        %153 = sbr.rel (%p150) target = $region32
      $region31: #{dqn_forward.3} parent=5 // pred_region
        %s154 = ssub.s32 %s9, 1
        %s155 = smul.u32 32, %s14
        %s156 = ssub.s32 100, %s155
        %p157 = scmp.lt.s32.totalorder %s156, 32
        %s158 = scalar_select %p157, %s156, 32
        %s159 = smul.u32 64, %s158
        %s160 = smul.u32 %s159, 2
        %p161 = scmp.lt.s32.totalorder %s155, 99
        %s162 = scalar_select %p161, %s155, 99
        %s163 = smul.addr %s162, 2
        %s164 = smul.addr %s163, 4
        %s165 = scalar_lea.vmem %s0, %s164
        %p166 = pneg %p35
        %p167 = pneg %p32
        %p168 = pneg %p56
        %p169 = pneg %p53
        %p170 = pneg %p77
        %p171 = pneg %p74
        %p172 = pneg %p103
        %p173 = pneg %p100
        %s174 = sand.u32 %s90, 1
        %s175 = sand.u32 %s90, 1
        %s176 = smul.addr %s175, 128
        %s177 = scalar_lea.vmem [#allocation2], %s176
        %s178 = smul.u32 32, %s14
        %s179 = ssub.s32 100, %s178
        %p180 = scmp.lt.s32.totalorder %s179, 32
        %s181 = scalar_select %p180, %s179, 32
        %s182 = smul.u32 64, %s181
        %s183 = smul.u32 %s182, 2
        %p184 = scmp.lt.s32.totalorder %s178, 99
        %s185 = scalar_select %p184, %s178, 99
        %s186 = smul.addr %s185, 2
        %s187 = smul.addr %s186, 4
        %s188 = scalar_lea.vmem %s0, %s187
        %s189 = smul.u32 32, %s14
        %s190 = ssub.s32 100, %s189
        %p191 = scmp.lt.s32.totalorder %s190, 32
        %s192 = scalar_select %p191, %s190, 32
        %s193 = smul.u32 64, %s192
        %s194 = smul.u32 %s193, 2
        %s195 = smul.u32 32, %s14
        %s196 = ssub.s32 100, %s195
        %p197 = scmp.lt.s32.totalorder %s196, 32
        %s198 = scalar_select %p197, %s196, 32
        %s199 = smul.u32 64, %s198
        %v201 = vld [vmem:[%s188] sm:$0xff]
        %v202 = vld [vmem:[%s188 + $0x8] sm:$0xff]
        %v203 = vld [vmem:[%s188 + $0x10] sm:$0xff]
        %v204 = vld [vmem:[%s188 + $0x18] sm:$0xff]
        %v205 = vld [vmem:[%s188 + $0x20] sm:$0xff]
        %v206 = vld [vmem:[%s188 + $0x28] sm:$0xff]
        %v207 = vld [vmem:[%s188 + $0x30] sm:$0xff]
        %v208 = vld [vmem:[%s188 + $0x38] sm:$0xff]
        %v209 = vld [vmem:[%s188 + $0x40] sm:$0xff]
        %v210 = vld [vmem:[%s188 + $0x48] sm:$0xff]
        %v211 = vld [vmem:[%s188 + $0x50] sm:$0xff]
        %v212 = vld [vmem:[%s188 + $0x58] sm:$0xff]
        %v213 = vld [vmem:[%s188 + $0x60] sm:$0xff]
        %v214 = vld [vmem:[%s188 + $0x68] sm:$0xff]
        %v215 = vld [vmem:[%s188 + $0x70] sm:$0xff]
        %v216 = vld [vmem:[%s188 + $0x78] sm:$0xff]
        %v217 = vld [vmem:[%s188 + $0x80] sm:$0xff]
        %v218 = vld [vmem:[%s188 + $0x88] sm:$0xff]
        %v219 = vld [vmem:[%s188 + $0x90] sm:$0xff]
        %v220 = vld [vmem:[%s188 + $0x98] sm:$0xff]
        %v221 = vld [vmem:[%s188 + $0xa0] sm:$0xff]
        %v222 = vld [vmem:[%s188 + $0xa8] sm:$0xff]
        %v223 = vld [vmem:[%s188 + $0xb0] sm:$0xff]
        %v224 = vld [vmem:[%s188 + $0xb8] sm:$0xff]
        %v225 = vld [vmem:[%s188 + $0xc0] sm:$0xff]
        %v226 = vld [vmem:[%s188 + $0xc8] sm:$0xff]
        %v227 = vld [vmem:[%s188 + $0xd0] sm:$0xff]
        %v228 = vld [vmem:[%s188 + $0xd8] sm:$0xff]
        %v229 = vld [vmem:[%s188 + $0xe0] sm:$0xff]
        %v230 = vld [vmem:[%s188 + $0xe8] sm:$0xff]
        %v231 = vld [vmem:[%s188 + $0xf0] sm:$0xff]
        %v232 = vld [vmem:[%s188 + $0xf8] sm:$0xff]
        %v233 = vld [vmem:[%s1] sm:$0xf]
        %v234 = vld [vmem:[%s1 + $0x4] sm:$0xf]
        %v235 = vld [vmem:[%s1 + $0x8] sm:$0xf]
        %v236 = vld [vmem:[%s1 + $0xc] sm:$0xf]
        %v237 = vld [vmem:[%s1 + $0x10] sm:$0xf]
        %v238 = vld [vmem:[%s1 + $0x14] sm:$0xf]
        %v239 = vld [vmem:[%s1 + $0x18] sm:$0xf]
        %v240 = vld [vmem:[%s1 + $0x1c] sm:$0xf]
        %v241 = vld [vmem:[%s1 + $0x20] sm:$0xf]
        %v242 = vld [vmem:[%s1 + $0x24] sm:$0xf]
        %v243 = vld [vmem:[%s1 + $0x28] sm:$0xf]
        %v244 = vld [vmem:[%s1 + $0x2c] sm:$0xf]
        %v245 = vld [vmem:[%s1 + $0x30] sm:$0xf]
        %v246 = vld [vmem:[%s1 + $0x34] sm:$0xf]
        %v247 = vld [vmem:[%s1 + $0x38] sm:$0xf]
        %v248 = vld [vmem:[%s1 + $0x3c] sm:$0xf]
        %v249 = vld [vmem:[%s1 + $0x40] sm:$0xf]
        %v250 = vld [vmem:[%s1 + $0x44] sm:$0xf]
        %v251 = vld [vmem:[%s1 + $0x48] sm:$0xf]
        %v252 = vld [vmem:[%s1 + $0x4c] sm:$0xf]
        %v253 = vld [vmem:[%s1 + $0x50] sm:$0xf]
        %v254 = vld [vmem:[%s1 + $0x54] sm:$0xf]
        %v255 = vld [vmem:[%s1 + $0x58] sm:$0xf]
        %v256 = vld [vmem:[%s1 + $0x5c] sm:$0xf]
        %v257 = vld [vmem:[%s1 + $0x60] sm:$0xf]
        %v258 = vld [vmem:[%s1 + $0x64] sm:$0xf]
        %v259 = vld [vmem:[%s1 + $0x68] sm:$0xf]
        %v260 = vld [vmem:[%s1 + $0x6c] sm:$0xf]
        %v261 = vld [vmem:[%s1 + $0x70] sm:$0xf]
        %v262 = vld [vmem:[%s1 + $0x74] sm:$0xf]
        %v263 = vld [vmem:[%s1 + $0x78] sm:$0xf]
        %v264 = vld [vmem:[%s1 + $0x7c] sm:$0xf]
        %v265 = vld [vmem:[%s2] sm:$0x1]
        %v267 = vlaneseq
        %v268 = vshrl.u32 %v267, 7
        %v269 = vsub.s32 0, %v268
        %v270 = vrot.slane %v265, %v269
        %v304 = vunpack.c.l.b16 %v201
        %v305 = vunpack.c.h.b16 %v201
        %v306 = vunpack.c.l.b16 %v202
        %v307 = vunpack.c.h.b16 %v202
        %v308 = vunpack.c.l.b16 %v203
        %v309 = vunpack.c.h.b16 %v203
        %v310 = vunpack.c.l.b16 %v204
        %v311 = vunpack.c.h.b16 %v204
        %v312 = vunpack.c.l.b16 %v205
        %v313 = vunpack.c.h.b16 %v205
        %v314 = vunpack.c.l.b16 %v206
        %v315 = vunpack.c.h.b16 %v206
        %v316 = vunpack.c.l.b16 %v207
        %v317 = vunpack.c.h.b16 %v207
        %v318 = vunpack.c.l.b16 %v208
        %v319 = vunpack.c.h.b16 %v208
        %v320 = vunpack.c.l.b16 %v209
        %v321 = vunpack.c.h.b16 %v209
        %v322 = vunpack.c.l.b16 %v210
        %v323 = vunpack.c.h.b16 %v210
        %v324 = vunpack.c.l.b16 %v211
        %v325 = vunpack.c.h.b16 %v211
        %v326 = vunpack.c.l.b16 %v212
        %v327 = vunpack.c.h.b16 %v212
        %v328 = vunpack.c.l.b16 %v213
        %v329 = vunpack.c.h.b16 %v213
        %v330 = vunpack.c.l.b16 %v214
        %v331 = vunpack.c.h.b16 %v214
        %v332 = vunpack.c.l.b16 %v215
        %v333 = vunpack.c.h.b16 %v215
        %v334 = vunpack.c.l.b16 %v216
        %v335 = vunpack.c.h.b16 %v216
        %v336 = vunpack.c.l.b16 %v217
        %v337 = vunpack.c.h.b16 %v217
        %v338 = vunpack.c.l.b16 %v218
        %v339 = vunpack.c.h.b16 %v218
        %v340 = vunpack.c.l.b16 %v219
        %v341 = vunpack.c.h.b16 %v219
        %v342 = vunpack.c.l.b16 %v220
        %v343 = vunpack.c.h.b16 %v220
        %v344 = vunpack.c.l.b16 %v221
        %v345 = vunpack.c.h.b16 %v221
        %v346 = vunpack.c.l.b16 %v222
        %v347 = vunpack.c.h.b16 %v222
        %v348 = vunpack.c.l.b16 %v223
        %v349 = vunpack.c.h.b16 %v223
        %v350 = vunpack.c.l.b16 %v224
        %v351 = vunpack.c.h.b16 %v224
        %v352 = vunpack.c.l.b16 %v225
        %v353 = vunpack.c.h.b16 %v225
        %v354 = vunpack.c.l.b16 %v226
        %v355 = vunpack.c.h.b16 %v226
        %v356 = vunpack.c.l.b16 %v227
        %v357 = vunpack.c.h.b16 %v227
        %v358 = vunpack.c.l.b16 %v228
        %v359 = vunpack.c.h.b16 %v228
        %v360 = vunpack.c.l.b16 %v229
        %v361 = vunpack.c.h.b16 %v229
        %v362 = vunpack.c.l.b16 %v230
        %v363 = vunpack.c.h.b16 %v230
        %v364 = vunpack.c.l.b16 %v231
        %v365 = vunpack.c.h.b16 %v231
        %v366 = vunpack.c.l.b16 %v232
        %v367 = vunpack.c.h.b16 %v232
        %v368 = vpack.c.b16 %v306, %v304
        %v369 = vpack.c.b16 %v307, %v305
        %v370 = vpack.c.b16 %v310, %v308
        %v371 = vpack.c.b16 %v311, %v309
        %v372 = vpack.c.b16 %v314, %v312
        %v373 = vpack.c.b16 %v315, %v313
        %v374 = vpack.c.b16 %v318, %v316
        %v375 = vpack.c.b16 %v319, %v317
        %v376 = vpack.c.b16 %v322, %v320
        %v377 = vpack.c.b16 %v323, %v321
        %v378 = vpack.c.b16 %v326, %v324
        %v379 = vpack.c.b16 %v327, %v325
        %v380 = vpack.c.b16 %v330, %v328
        %v381 = vpack.c.b16 %v331, %v329
        %v382 = vpack.c.b16 %v334, %v332
        %v383 = vpack.c.b16 %v335, %v333
        %v384 = vpack.c.b16 %v338, %v336
        %v385 = vpack.c.b16 %v339, %v337
        %v386 = vpack.c.b16 %v342, %v340
        %v387 = vpack.c.b16 %v343, %v341
        %v388 = vpack.c.b16 %v346, %v344
        %v389 = vpack.c.b16 %v347, %v345
        %v390 = vpack.c.b16 %v350, %v348
        %v391 = vpack.c.b16 %v351, %v349
        %v392 = vpack.c.b16 %v354, %v352
        %v393 = vpack.c.b16 %v355, %v353
        %v394 = vpack.c.b16 %v358, %v356
        %v395 = vpack.c.b16 %v359, %v357
        %v396 = vpack.c.b16 %v362, %v360
        %v397 = vpack.c.b16 %v363, %v361
        %v398 = vpack.c.b16 %v366, %v364
        %v399 = vpack.c.b16 %v367, %v365
        %v464 = vunpack.c.l.b16 %v233
        %v465 = vunpack.c.l.b16 %v234
        %v466 = vunpack.c.l.b16 %v235
        %v467 = vunpack.c.l.b16 %v236
        %v468 = vunpack.c.l.b16 %v237
        %v469 = vunpack.c.l.b16 %v238
        %v470 = vunpack.c.l.b16 %v239
        %v471 = vunpack.c.l.b16 %v240
        %v472 = vunpack.c.l.b16 %v241
        %v473 = vunpack.c.l.b16 %v242
        %v474 = vunpack.c.l.b16 %v243
        %v475 = vunpack.c.l.b16 %v244
        %v476 = vunpack.c.l.b16 %v245
        %v477 = vunpack.c.l.b16 %v246
        %v478 = vunpack.c.l.b16 %v247
        %v479 = vunpack.c.l.b16 %v248
        %v480 = vunpack.c.l.b16 %v249
        %v481 = vunpack.c.l.b16 %v250
        %v482 = vunpack.c.l.b16 %v251
        %v483 = vunpack.c.l.b16 %v252
        %v484 = vunpack.c.l.b16 %v253
        %v485 = vunpack.c.l.b16 %v254
        %v486 = vunpack.c.l.b16 %v255
        %v487 = vunpack.c.l.b16 %v256
        %v488 = vunpack.c.l.b16 %v257
        %v489 = vunpack.c.l.b16 %v258
        %v490 = vunpack.c.l.b16 %v259
        %v491 = vunpack.c.l.b16 %v260
        %v492 = vunpack.c.l.b16 %v261
        %v493 = vunpack.c.l.b16 %v262
        %v494 = vunpack.c.l.b16 %v263
        %v495 = vunpack.c.l.b16 %v264
        %v496 = vpack.c.b16 %v465, %v464
        %v497 = vpack.c.b16 %v467, %v466
        %v498 = vpack.c.b16 %v469, %v468
        %v499 = vpack.c.b16 %v471, %v470
        %v500 = vpack.c.b16 %v473, %v472
        %v501 = vpack.c.b16 %v475, %v474
        %v502 = vpack.c.b16 %v477, %v476
        %v503 = vpack.c.b16 %v479, %v478
        %v504 = vpack.c.b16 %v481, %v480
        %v505 = vpack.c.b16 %v483, %v482
        %v506 = vpack.c.b16 %v485, %v484
        %v507 = vpack.c.b16 %v487, %v486
        %v508 = vpack.c.b16 %v489, %v488
        %v509 = vpack.c.b16 %v491, %v490
        %v510 = vpack.c.b16 %v493, %v492
        %v511 = vpack.c.b16 %v495, %v494
        %528 = vmatprep.subr.bf16.mxu0 0
        %529 = vmatpush1.bf16.msra.mxu0 %v503
        %530 = vmatprep.subr.bf16.mxu0 0
        %531 = vmatpush1.bf16.msra.mxu0 %v502
        %532 = vmatprep.subr.bf16.mxu0 0
        %533 = vmatpush1.bf16.msra.mxu0 %v501
        %534 = vmatprep.subr.bf16.mxu0 0
        %535 = vmatpush1.bf16.msra.mxu0 %v500
        %536 = vmatprep.subr.bf16.mxu0 0
        %537 = vmatpush1.bf16.msra.mxu0 %v499
        %538 = vmatprep.subr.bf16.mxu0 0
        %539 = vmatpush1.bf16.msra.mxu0 %v498
        %540 = vmatprep.subr.bf16.mxu0 0
        %541 = vmatpush1.bf16.msra.mxu0 %v497
        %542 = vmatprep.subr.bf16.mxu0 0
        %543 = vmatpush1.bf16.msra.mxu0 %v496
        %544 = vmatprep.subr.bf16.mxu0 0
        %545 = vmatpush2.bf16.msra.mxu0 %v511
        %546 = vmatprep.subr.bf16.mxu0 0
        %547 = vmatpush2.bf16.msra.mxu0 %v510
        %548 = vmatprep.subr.bf16.mxu0 0
        %549 = vmatpush2.bf16.msra.mxu0 %v509
        %550 = vmatprep.subr.bf16.mxu0 0
        %551 = vmatpush2.bf16.msra.mxu0 %v508
        %552 = vmatprep.subr.bf16.mxu0 0
        %553 = vmatpush2.bf16.msra.mxu0 %v507
        %554 = vmatprep.subr.bf16.mxu0 0
        %555 = vmatpush2.bf16.msra.mxu0 %v506
        %556 = vmatprep.subr.bf16.mxu0 0
        %557 = vmatpush2.bf16.msra.mxu0 %v505
        %558 = vmatprep.subr.bf16.mxu0 0
        %559 = vmatpush2.bf16.msra.mxu0 %v504
        %560 = vmatprep.mubr.bf16.mxu0 %v369
        %561 = vmatmul.mubr.bf16.gmra.mxu0 %v368
        %v562 = vpop.f32.mrf.mxu0
        %v563 = vadd.f32 %v270, %v562
        %v564 = vpop.f32.mrf.mxu0
        %v565 = vpop.f32.mrf.mxu0
        %v566 = vadd.f32 %v270, %v565
        %v567 = vpop.f32.mrf.mxu0
        %568 = vmatprep.mubr.bf16.mxu0 %v371
        %569 = vmatmul.mubr.bf16.gmra.mxu0 %v370
        %v570 = vpop.f32.mrf.mxu0
        %v571 = vadd.f32 %v270, %v570
        %v572 = vpop.f32.mrf.mxu0
        %v573 = vpop.f32.mrf.mxu0
        %v574 = vadd.f32 %v270, %v573
        %v575 = vpop.f32.mrf.mxu0
        %576 = vmatprep.mubr.bf16.mxu0 %v373
        %577 = vmatmul.mubr.bf16.gmra.mxu0 %v372
        %v578 = vpop.f32.mrf.mxu0
        %v579 = vadd.f32 %v270, %v578
        %v580 = vpop.f32.mrf.mxu0
        %v581 = vpop.f32.mrf.mxu0
        %v582 = vadd.f32 %v270, %v581
        %v583 = vpop.f32.mrf.mxu0
        %584 = vmatprep.mubr.bf16.mxu0 %v375
        %585 = vmatmul.mubr.bf16.gmra.mxu0 %v374
        %v586 = vpop.f32.mrf.mxu0
        %v587 = vadd.f32 %v270, %v586
        %v588 = vpop.f32.mrf.mxu0
        %v589 = vpop.f32.mrf.mxu0
        %v590 = vadd.f32 %v270, %v589
        %v591 = vpop.f32.mrf.mxu0
        %592 = vmatprep.mubr.bf16.mxu0 %v377
        %593 = vmatmul.mubr.bf16.gmra.mxu0 %v376
        %v594 = vpop.f32.mrf.mxu0
        %v595 = vadd.f32 %v270, %v594
        %v596 = vpop.f32.mrf.mxu0
        %v597 = vpop.f32.mrf.mxu0
        %v598 = vadd.f32 %v270, %v597
        %v599 = vpop.f32.mrf.mxu0
        %600 = vmatprep.mubr.bf16.mxu0 %v379
        %601 = vmatmul.mubr.bf16.gmra.mxu0 %v378
        %v602 = vpop.f32.mrf.mxu0
        %v603 = vadd.f32 %v270, %v602
        %v604 = vpop.f32.mrf.mxu0
        %v605 = vpop.f32.mrf.mxu0
        %v606 = vadd.f32 %v270, %v605
        %v607 = vpop.f32.mrf.mxu0
        %608 = vmatprep.mubr.bf16.mxu0 %v381
        %609 = vmatmul.mubr.bf16.gmra.mxu0 %v380
        %v610 = vpop.f32.mrf.mxu0
        %v611 = vadd.f32 %v270, %v610
        %v612 = vpop.f32.mrf.mxu0
        %v613 = vpop.f32.mrf.mxu0
        %v614 = vadd.f32 %v270, %v613
        %v615 = vpop.f32.mrf.mxu0
        %616 = vmatprep.mubr.bf16.mxu0 %v383
        %617 = vmatmul.mubr.bf16.gmra.mxu0 %v382
        %v618 = vpop.f32.mrf.mxu0
        %v619 = vadd.f32 %v270, %v618
        %v620 = vpop.f32.mrf.mxu0
        %v621 = vpop.f32.mrf.mxu0
        %v622 = vadd.f32 %v270, %v621
        %v623 = vpop.f32.mrf.mxu0
        %624 = vmatprep.mubr.bf16.mxu0 %v385
        %625 = vmatmul.mubr.bf16.gmra.mxu0 %v384
        %v626 = vpop.f32.mrf.mxu0
        %v627 = vadd.f32 %v270, %v626
        %v628 = vpop.f32.mrf.mxu0
        %v629 = vpop.f32.mrf.mxu0
        %v630 = vadd.f32 %v270, %v629
        %v631 = vpop.f32.mrf.mxu0
        %632 = vmatprep.mubr.bf16.mxu0 %v387
        %633 = vmatmul.mubr.bf16.gmra.mxu0 %v386
        %v634 = vpop.f32.mrf.mxu0
        %v635 = vadd.f32 %v270, %v634
        %v636 = vpop.f32.mrf.mxu0
        %v637 = vpop.f32.mrf.mxu0
        %v638 = vadd.f32 %v270, %v637
        %v639 = vpop.f32.mrf.mxu0
        %640 = vmatprep.mubr.bf16.mxu0 %v389
        %641 = vmatmul.mubr.bf16.gmra.mxu0 %v388
        %v642 = vpop.f32.mrf.mxu0
        %v643 = vadd.f32 %v270, %v642
        %v644 = vpop.f32.mrf.mxu0
        %v645 = vpop.f32.mrf.mxu0
        %v646 = vadd.f32 %v270, %v645
        %v647 = vpop.f32.mrf.mxu0
        %648 = vmatprep.mubr.bf16.mxu0 %v391
        %649 = vmatmul.mubr.bf16.gmra.mxu0 %v390
        %v650 = vpop.f32.mrf.mxu0
        %v651 = vadd.f32 %v270, %v650
        %v652 = vpop.f32.mrf.mxu0
        %v653 = vpop.f32.mrf.mxu0
        %v654 = vadd.f32 %v270, %v653
        %v655 = vpop.f32.mrf.mxu0
        %656 = vmatprep.mubr.bf16.mxu0 %v393
        %657 = vmatmul.mubr.bf16.gmra.mxu0 %v392
        %v658 = vpop.f32.mrf.mxu0
        %v659 = vadd.f32 %v270, %v658
        %v660 = vpop.f32.mrf.mxu0
        %v661 = vpop.f32.mrf.mxu0
        %v662 = vadd.f32 %v270, %v661
        %v663 = vpop.f32.mrf.mxu0
        %664 = vmatprep.mubr.bf16.mxu0 %v395
        %665 = vmatmul.mubr.bf16.gmra.mxu0 %v394
        %v666 = vpop.f32.mrf.mxu0
        %v667 = vadd.f32 %v270, %v666
        %v668 = vpop.f32.mrf.mxu0
        %v669 = vpop.f32.mrf.mxu0
        %v670 = vadd.f32 %v270, %v669
        %v671 = vpop.f32.mrf.mxu0
        %672 = vmatprep.mubr.bf16.mxu0 %v397
        %673 = vmatmul.mubr.bf16.gmra.mxu0 %v396
        %v674 = vpop.f32.mrf.mxu0
        %v675 = vadd.f32 %v270, %v674
        %v676 = vpop.f32.mrf.mxu0
        %v677 = vpop.f32.mrf.mxu0
        %v678 = vadd.f32 %v270, %v677
        %v679 = vpop.f32.mrf.mxu0
        %680 = vmatprep.mubr.bf16.mxu0 %v399
        %681 = vmatmul.mubr.bf16.gmra.mxu0 %v398
        %v682 = vpop.f32.mrf.mxu0
        %v683 = vadd.f32 %v270, %v682
        %v684 = vpop.f32.mrf.mxu0
        %v685 = vpop.f32.mrf.mxu0
        %v686 = vadd.f32 %v270, %v685
        %v687 = vpop.f32.mrf.mxu0
        %688 = vdwg.mxu0
        %v689 = vmax.f32 %v563, 0.0
        %v690 = vmax.f32 %v566, 0.0
        %v691 = vmax.f32 %v571, 0.0
        %v692 = vmax.f32 %v574, 0.0
        %v693 = vmax.f32 %v579, 0.0
        %v694 = vmax.f32 %v582, 0.0
        %v695 = vmax.f32 %v587, 0.0
        %v696 = vmax.f32 %v590, 0.0
        %v697 = vmax.f32 %v595, 0.0
        %v698 = vmax.f32 %v598, 0.0
        %v699 = vmax.f32 %v603, 0.0
        %v700 = vmax.f32 %v606, 0.0
        %v701 = vmax.f32 %v611, 0.0
        %v702 = vmax.f32 %v614, 0.0
        %v703 = vmax.f32 %v619, 0.0
        %v704 = vmax.f32 %v622, 0.0
        %v705 = vmax.f32 %v627, 0.0
        %v706 = vmax.f32 %v630, 0.0
        %v707 = vmax.f32 %v635, 0.0
        %v708 = vmax.f32 %v638, 0.0
        %v709 = vmax.f32 %v643, 0.0
        %v710 = vmax.f32 %v646, 0.0
        %v711 = vmax.f32 %v651, 0.0
        %v712 = vmax.f32 %v654, 0.0
        %v713 = vmax.f32 %v659, 0.0
        %v714 = vmax.f32 %v662, 0.0
        %v715 = vmax.f32 %v667, 0.0
        %v716 = vmax.f32 %v670, 0.0
        %v717 = vmax.f32 %v675, 0.0
        %v718 = vmax.f32 %v678, 0.0
        %v719 = vmax.f32 %v683, 0.0
        %v720 = vmax.f32 %v686, 0.0
        %v721 = vpack.c.bf16 %v690, %v689
        %v722 = vpack.c.bf16 %v692, %v691
        %v723 = vpack.c.bf16 %v694, %v693
        %v724 = vpack.c.bf16 %v696, %v695
        %v725 = vpack.c.bf16 %v698, %v697
        %v726 = vpack.c.bf16 %v700, %v699
        %v727 = vpack.c.bf16 %v702, %v701
        %v728 = vpack.c.bf16 %v704, %v703
        %v729 = vpack.c.bf16 %v706, %v705
        %v730 = vpack.c.bf16 %v708, %v707
        %v731 = vpack.c.bf16 %v710, %v709
        %v732 = vpack.c.bf16 %v712, %v711
        %v733 = vpack.c.bf16 %v714, %v713
        %v734 = vpack.c.bf16 %v716, %v715
        %v735 = vpack.c.bf16 %v718, %v717
        %v736 = vpack.c.bf16 %v720, %v719
        %v753 = vunpack.c.l.b16 %v721
        %v754 = vunpack.c.h.b16 %v721
        %v755 = vunpack.c.l.b16 %v722
        %v756 = vunpack.c.h.b16 %v722
        %v757 = vunpack.c.l.b16 %v723
        %v758 = vunpack.c.h.b16 %v723
        %v759 = vunpack.c.l.b16 %v724
        %v760 = vunpack.c.h.b16 %v724
        %v761 = vunpack.c.l.b16 %v725
        %v762 = vunpack.c.h.b16 %v725
        %v763 = vunpack.c.l.b16 %v726
        %v764 = vunpack.c.h.b16 %v726
        %v765 = vunpack.c.l.b16 %v727
        %v766 = vunpack.c.h.b16 %v727
        %v767 = vunpack.c.l.b16 %v728
        %v768 = vunpack.c.h.b16 %v728
        %v769 = vunpack.c.l.b16 %v729
        %v770 = vunpack.c.h.b16 %v729
        %v771 = vunpack.c.l.b16 %v730
        %v772 = vunpack.c.h.b16 %v730
        %v773 = vunpack.c.l.b16 %v731
        %v774 = vunpack.c.h.b16 %v731
        %v775 = vunpack.c.l.b16 %v732
        %v776 = vunpack.c.h.b16 %v732
        %v777 = vunpack.c.l.b16 %v733
        %v778 = vunpack.c.h.b16 %v733
        %v779 = vunpack.c.l.b16 %v734
        %v780 = vunpack.c.h.b16 %v734
        %v781 = vunpack.c.l.b16 %v735
        %v782 = vunpack.c.h.b16 %v735
        %v783 = vunpack.c.l.b16 %v736
        %v784 = vunpack.c.h.b16 %v736
        %v785 = vpack.c.b16 %v753, %v753
        %v786 = vpack.c.b16 %v754, %v754
        %v787 = vpack.c.b16 %v755, %v755
        %v788 = vpack.c.b16 %v756, %v756
        %v789 = vpack.c.b16 %v757, %v757
        %v790 = vpack.c.b16 %v758, %v758
        %v791 = vpack.c.b16 %v759, %v759
        %v792 = vpack.c.b16 %v760, %v760
        %v793 = vpack.c.b16 %v761, %v761
        %v794 = vpack.c.b16 %v762, %v762
        %v795 = vpack.c.b16 %v763, %v763
        %v796 = vpack.c.b16 %v764, %v764
        %v797 = vpack.c.b16 %v765, %v765
        %v798 = vpack.c.b16 %v766, %v766
        %v799 = vpack.c.b16 %v767, %v767
        %v800 = vpack.c.b16 %v768, %v768
        %v801 = vpack.c.b16 %v769, %v769
        %v802 = vpack.c.b16 %v770, %v770
        %v803 = vpack.c.b16 %v771, %v771
        %v804 = vpack.c.b16 %v772, %v772
        %v805 = vpack.c.b16 %v773, %v773
        %v806 = vpack.c.b16 %v774, %v774
        %v807 = vpack.c.b16 %v775, %v775
        %v808 = vpack.c.b16 %v776, %v776
        %v809 = vpack.c.b16 %v777, %v777
        %v810 = vpack.c.b16 %v778, %v778
        %v811 = vpack.c.b16 %v779, %v779
        %v812 = vpack.c.b16 %v780, %v780
        %v813 = vpack.c.b16 %v781, %v781
        %v814 = vpack.c.b16 %v782, %v782
        %v815 = vpack.c.b16 %v783, %v783
        %v816 = vpack.c.b16 %v784, %v784
        %849 = vst [vmem:[%s177] sm:$0xf] %v785
        %850 = vst [vmem:[%s177 + $0x4] sm:$0xf] %v786
        %851 = vst [vmem:[%s177 + $0x8] sm:$0xf] %v787
        %852 = vst [vmem:[%s177 + $0xc] sm:$0xf] %v788
        %853 = vst [vmem:[%s177 + $0x10] sm:$0xf] %v789
        %854 = vst [vmem:[%s177 + $0x14] sm:$0xf] %v790
        %855 = vst [vmem:[%s177 + $0x18] sm:$0xf] %v791
        %856 = vst [vmem:[%s177 + $0x1c] sm:$0xf] %v792
        %857 = vst [vmem:[%s177 + $0x20] sm:$0xf] %v793
        %858 = vst [vmem:[%s177 + $0x24] sm:$0xf] %v794
        %859 = vst [vmem:[%s177 + $0x28] sm:$0xf] %v795
        %860 = vst [vmem:[%s177 + $0x2c] sm:$0xf] %v796
        %861 = vst [vmem:[%s177 + $0x30] sm:$0xf] %v797
        %862 = vst [vmem:[%s177 + $0x34] sm:$0xf] %v798
        %863 = vst [vmem:[%s177 + $0x38] sm:$0xf] %v799
        %864 = vst [vmem:[%s177 + $0x3c] sm:$0xf] %v800
        %865 = vst [vmem:[%s177 + $0x40] sm:$0xf] %v801
        %866 = vst [vmem:[%s177 + $0x44] sm:$0xf] %v802
        %867 = vst [vmem:[%s177 + $0x48] sm:$0xf] %v803
        %868 = vst [vmem:[%s177 + $0x4c] sm:$0xf] %v804
        %869 = vst [vmem:[%s177 + $0x50] sm:$0xf] %v805
        %870 = vst [vmem:[%s177 + $0x54] sm:$0xf] %v806
        %871 = vst [vmem:[%s177 + $0x58] sm:$0xf] %v807
        %872 = vst [vmem:[%s177 + $0x5c] sm:$0xf] %v808
        %873 = vst [vmem:[%s177 + $0x60] sm:$0xf] %v809
        %874 = vst [vmem:[%s177 + $0x64] sm:$0xf] %v810
        %875 = vst [vmem:[%s177 + $0x68] sm:$0xf] %v811
        %876 = vst [vmem:[%s177 + $0x6c] sm:$0xf] %v812
        %877 = vst [vmem:[%s177 + $0x70] sm:$0xf] %v813
        %878 = vst [vmem:[%s177 + $0x74] sm:$0xf] %v814
        %879 = vst [vmem:[%s177 + $0x78] sm:$0xf] %v815
        %880 = vst [vmem:[%s177 + $0x7c] sm:$0xf] %v816
        %s881 = sand.u32 %s90, 1
        %s882 = sand.u32 %s90, 1
        %s883 = smul.addr %s882, 128
        %s884 = scalar_lea.vmem [#allocation2], %s883
        // Predicated region
        $region33: #{dqn_forward.3} parent=31 // pred_check
          %p885 = pneg %p100
        $region34: #{dqn_forward.3} parent=31 // pred_check_branch
          %887 = sbr.rel (%p885) target = $region36
        $region35: #{dqn_forward.3} parent=31 // pred_region
          %s888 = smul.u32 32, %s14
          %s889 = ssub.s32 100, %s888
          %p890 = scmp.lt.s32.totalorder %s889, 32
          %s891 = scalar_select %p890, %s889, 32
          %s892 = smul.u32 64, %s891
          %p893 = scmp.ne.s32.totalorder 0, %s892
          %s894 = smul.addr %s888, 4
          %s895 = scalar_lea.vmem %s3, %s894
          // Predicated region
          $region37: #{dqn_forward.3} parent=35 // pred_check
            %p896 = pneg %p893
          $region38: #{dqn_forward.3} parent=35 // pred_check_branch
            %898 = sbr.rel (%p896) target = $region40
          $region39: #{dqn_forward.3} parent=35 // pred_region
            // Predicated region
            $region41: #{dqn_forward.3} parent=39 // pred_check
              _
            $region42: #{dqn_forward.3} parent=39 // pred_check_branch
              %900 = sbr.rel target = $region44
            $region43: #{dqn_forward.3} parent=39 // pred_region
              // Predicated region
              $region63: #{dqn_forward.3} parent=43 // pred_check
                _
              $region64: #{dqn_forward.3} parent=43 // pred_check_branch
                %1012 = sbr.rel (0) target = $region66
              $region65: #{dqn_forward.3} parent=43 // pred_region
                %s1014 = ssub.s32 16, 1
                %s1015 = sshrl.u32 %s891, 5
                // While loop
                $region67: #{dqn_forward.3} parent=65 // loop_pre_header
                  _
                $region68: #{dqn_forward.3} parent=65 // loop_header
                  %s1017 = sphi 0, %s1019
                  %p1018 = scmp.ge.s32.totalorder %s1017, %s1015
                  %s1022 = sphi 0, %s1091
                  %s1023 = sphi %s884, %s1094
                  %s1024 = sphi %s895, %s1095
                $region69: #{dqn_forward.3} parent=65 // loop_header_branch
                  %1021 = sbr.rel (%p1018) target = $region73
                $region70: #{dqn_forward.3} parent=65 // loop_body
                  %v1025 = vld [vmem:[%s1023] sm:%s1014]
                  %1026 = vst [vmem:[%s1024] sm:%s1014] %v1025
                  %v1027 = vld [vmem:[%s1023 + $0x4] sm:%s1014]
                  %1028 = vst [vmem:[%s1024 + $0x4] sm:%s1014] %v1027
                  %v1029 = vld [vmem:[%s1023 + $0x8] sm:%s1014]
                  %1030 = vst [vmem:[%s1024 + $0x8] sm:%s1014] %v1029
                  %v1031 = vld [vmem:[%s1023 + $0xc] sm:%s1014]
                  %1032 = vst [vmem:[%s1024 + $0xc] sm:%s1014] %v1031
                  %v1033 = vld [vmem:[%s1023 + $0x10] sm:%s1014]
                  %1034 = vst [vmem:[%s1024 + $0x10] sm:%s1014] %v1033
                  %v1035 = vld [vmem:[%s1023 + $0x14] sm:%s1014]
                  %1036 = vst [vmem:[%s1024 + $0x14] sm:%s1014] %v1035
                  %v1037 = vld [vmem:[%s1023 + $0x18] sm:%s1014]
                  %1038 = vst [vmem:[%s1024 + $0x18] sm:%s1014] %v1037
                  %v1039 = vld [vmem:[%s1023 + $0x1c] sm:%s1014]
                  %1040 = vst [vmem:[%s1024 + $0x1c] sm:%s1014] %v1039
                  %v1041 = vld [vmem:[%s1023 + $0x20] sm:%s1014]
                  %1042 = vst [vmem:[%s1024 + $0x20] sm:%s1014] %v1041
                  %v1043 = vld [vmem:[%s1023 + $0x24] sm:%s1014]
                  %1044 = vst [vmem:[%s1024 + $0x24] sm:%s1014] %v1043
                  %v1045 = vld [vmem:[%s1023 + $0x28] sm:%s1014]
                  %1046 = vst [vmem:[%s1024 + $0x28] sm:%s1014] %v1045
                  %v1047 = vld [vmem:[%s1023 + $0x2c] sm:%s1014]
                  %1048 = vst [vmem:[%s1024 + $0x2c] sm:%s1014] %v1047
                  %v1049 = vld [vmem:[%s1023 + $0x30] sm:%s1014]
                  %1050 = vst [vmem:[%s1024 + $0x30] sm:%s1014] %v1049
                  %v1051 = vld [vmem:[%s1023 + $0x34] sm:%s1014]
                  %1052 = vst [vmem:[%s1024 + $0x34] sm:%s1014] %v1051
                  %v1053 = vld [vmem:[%s1023 + $0x38] sm:%s1014]
                  %1054 = vst [vmem:[%s1024 + $0x38] sm:%s1014] %v1053
                  %v1055 = vld [vmem:[%s1023 + $0x3c] sm:%s1014]
                  %1056 = vst [vmem:[%s1024 + $0x3c] sm:%s1014] %v1055
                  %v1057 = vld [vmem:[%s1023 + $0x40] sm:%s1014]
                  %1058 = vst [vmem:[%s1024 + $0x40] sm:%s1014] %v1057
                  %v1059 = vld [vmem:[%s1023 + $0x44] sm:%s1014]
                  %1060 = vst [vmem:[%s1024 + $0x44] sm:%s1014] %v1059
                  %v1061 = vld [vmem:[%s1023 + $0x48] sm:%s1014]
                  %1062 = vst [vmem:[%s1024 + $0x48] sm:%s1014] %v1061
                  %v1063 = vld [vmem:[%s1023 + $0x4c] sm:%s1014]
                  %1064 = vst [vmem:[%s1024 + $0x4c] sm:%s1014] %v1063
                  %v1065 = vld [vmem:[%s1023 + $0x50] sm:%s1014]
                  %1066 = vst [vmem:[%s1024 + $0x50] sm:%s1014] %v1065
                  %v1067 = vld [vmem:[%s1023 + $0x54] sm:%s1014]
                  %1068 = vst [vmem:[%s1024 + $0x54] sm:%s1014] %v1067
                  %v1069 = vld [vmem:[%s1023 + $0x58] sm:%s1014]
                  %1070 = vst [vmem:[%s1024 + $0x58] sm:%s1014] %v1069
                  %v1071 = vld [vmem:[%s1023 + $0x5c] sm:%s1014]
                  %1072 = vst [vmem:[%s1024 + $0x5c] sm:%s1014] %v1071
                  %v1073 = vld [vmem:[%s1023 + $0x60] sm:%s1014]
                  %1074 = vst [vmem:[%s1024 + $0x60] sm:%s1014] %v1073
                  %v1075 = vld [vmem:[%s1023 + $0x64] sm:%s1014]
                  %1076 = vst [vmem:[%s1024 + $0x64] sm:%s1014] %v1075
                  %v1077 = vld [vmem:[%s1023 + $0x68] sm:%s1014]
                  %1078 = vst [vmem:[%s1024 + $0x68] sm:%s1014] %v1077
                  %v1079 = vld [vmem:[%s1023 + $0x6c] sm:%s1014]
                  %1080 = vst [vmem:[%s1024 + $0x6c] sm:%s1014] %v1079
                  %v1081 = vld [vmem:[%s1023 + $0x70] sm:%s1014]
                  %1082 = vst [vmem:[%s1024 + $0x70] sm:%s1014] %v1081
                  %v1083 = vld [vmem:[%s1023 + $0x74] sm:%s1014]
                  %1084 = vst [vmem:[%s1024 + $0x74] sm:%s1014] %v1083
                  %v1085 = vld [vmem:[%s1023 + $0x78] sm:%s1014]
                  %1086 = vst [vmem:[%s1024 + $0x78] sm:%s1014] %v1085
                  %v1087 = vld [vmem:[%s1023 + $0x7c] sm:%s1014]
                  %1088 = vst [vmem:[%s1024 + $0x7c] sm:%s1014] %v1087
                  %s1089 = sadd.s32 1, %s1022
                  %p1090 = scmp.ge.s32.totalorder %s1089, %s1015
                  %s1091 = scalar_select %p1090, 0, %s1089
                  %s1092 = smul.u32 %s1091, 128
                  %s1093 = smul.u32 %s1091, 128
                  %s1094 = scalar_lea.vmem %s884, %s1092 [#allocation2]
                  %s1095 = scalar_lea.vmem %s895, %s1093
                $region71: #{dqn_forward.3} parent=65 // loop_footer
                  %s1019 = sadd.s32 %s1017, 1
                $region72: #{dqn_forward.3} parent=65 // loop_footer_branch
                  %1016 = sbr.rel target = $region68
                $region73: #{dqn_forward.3} parent=65 // loop_exit
                  _
                %s1096 = sshrl.u32 %s891, 5
                %s1097 = sand.u32 %s891, 31
                %s1098 = smul.u32 %s1096, 32
                %s1099 = smul.u32 4, %s1098
                %s1100 = scalar_lea.vmem %s884, %s1099 [#allocation2]
                %s1101 = smul.u32 4, %s1098
                %s1102 = scalar_lea.vmem %s895, %s1101
                // While loop
                $region74: #{dqn_forward.3} parent=65 // loop_pre_header
                  _
                $region75: #{dqn_forward.3} parent=65 // loop_header
                  %s1104 = sphi 0, %s1106
                  %p1105 = scmp.ge.s32.totalorder %s1104, %s1097
                  %s1109 = sphi 0, %s1116
                  %s1110 = sphi %s1100, %s1119
                  %s1111 = sphi %s1102, %s1120
                $region76: #{dqn_forward.3} parent=65 // loop_header_branch
                  %1108 = sbr.rel (%p1105) target = $region80
                $region77: #{dqn_forward.3} parent=65 // loop_body
                  %v1112 = vld [vmem:[%s1110] sm:%s1014]
                  %1113 = vst [vmem:[%s1111] sm:%s1014] %v1112
                  %s1114 = sadd.s32 1, %s1109
                  %p1115 = scmp.ge.s32.totalorder %s1114, %s1097
                  %s1116 = scalar_select %p1115, 0, %s1114
                  %s1117 = smul.u32 %s1116, 4
                  %s1118 = smul.u32 %s1116, 4
                  %s1119 = scalar_lea.vmem %s1100, %s1117 [#allocation2]
                  %s1120 = scalar_lea.vmem %s1102, %s1118
                $region78: #{dqn_forward.3} parent=65 // loop_footer
                  %s1106 = sadd.s32 %s1104, 1
                $region79: #{dqn_forward.3} parent=65 // loop_footer_branch
                  %1103 = sbr.rel target = $region75
                $region80: #{dqn_forward.3} parent=65 // loop_exit
                  _
              $region66: #{dqn_forward.3} parent=43 // pred_fallthru
                _
            $region44: #{dqn_forward.3} parent=39 // pred_fallthru
              _
            // Predicated region
            $region45: #{dqn_forward.3} parent=39 // pred_check
              _
            $region46: #{dqn_forward.3} parent=39 // pred_check_branch
              %902 = sbr.rel (0) target = $region48
            $region47: #{dqn_forward.3} parent=39 // pred_region
              %s904 = ssub.s32 16, 1
              %s905 = sshrl.u32 %s891, 5
              // While loop
              $region49: #{dqn_forward.3} parent=47 // loop_pre_header
                _
              $region50: #{dqn_forward.3} parent=47 // loop_header
                %s907 = sphi 0, %s909
                %p908 = scmp.ge.s32.totalorder %s907, %s905
                %s912 = sphi 0, %s981
                %s913 = sphi %s884, %s984
                %s914 = sphi %s895, %s985
              $region51: #{dqn_forward.3} parent=47 // loop_header_branch
                %911 = sbr.rel (%p908) target = $region55
              $region52: #{dqn_forward.3} parent=47 // loop_body
                %v915 = vld [vmem:[%s913] sm:%s904]
                %916 = vst [vmem:[%s914] sm:%s904] %v915
                %v917 = vld [vmem:[%s913 + $0x4] sm:%s904]
                %918 = vst [vmem:[%s914 + $0x4] sm:%s904] %v917
                %v919 = vld [vmem:[%s913 + $0x8] sm:%s904]
                %920 = vst [vmem:[%s914 + $0x8] sm:%s904] %v919
                %v921 = vld [vmem:[%s913 + $0xc] sm:%s904]
                %922 = vst [vmem:[%s914 + $0xc] sm:%s904] %v921
                %v923 = vld [vmem:[%s913 + $0x10] sm:%s904]
                %924 = vst [vmem:[%s914 + $0x10] sm:%s904] %v923
                %v925 = vld [vmem:[%s913 + $0x14] sm:%s904]
                %926 = vst [vmem:[%s914 + $0x14] sm:%s904] %v925
                %v927 = vld [vmem:[%s913 + $0x18] sm:%s904]
                %928 = vst [vmem:[%s914 + $0x18] sm:%s904] %v927
                %v929 = vld [vmem:[%s913 + $0x1c] sm:%s904]
                %930 = vst [vmem:[%s914 + $0x1c] sm:%s904] %v929
                %v931 = vld [vmem:[%s913 + $0x20] sm:%s904]
                %932 = vst [vmem:[%s914 + $0x20] sm:%s904] %v931
                %v933 = vld [vmem:[%s913 + $0x24] sm:%s904]
                %934 = vst [vmem:[%s914 + $0x24] sm:%s904] %v933
                %v935 = vld [vmem:[%s913 + $0x28] sm:%s904]
                %936 = vst [vmem:[%s914 + $0x28] sm:%s904] %v935
                %v937 = vld [vmem:[%s913 + $0x2c] sm:%s904]
                %938 = vst [vmem:[%s914 + $0x2c] sm:%s904] %v937
                %v939 = vld [vmem:[%s913 + $0x30] sm:%s904]
                %940 = vst [vmem:[%s914 + $0x30] sm:%s904] %v939
                %v941 = vld [vmem:[%s913 + $0x34] sm:%s904]
                %942 = vst [vmem:[%s914 + $0x34] sm:%s904] %v941
                %v943 = vld [vmem:[%s913 + $0x38] sm:%s904]
                %944 = vst [vmem:[%s914 + $0x38] sm:%s904] %v943
                %v945 = vld [vmem:[%s913 + $0x3c] sm:%s904]
                %946 = vst [vmem:[%s914 + $0x3c] sm:%s904] %v945
                %v947 = vld [vmem:[%s913 + $0x40] sm:%s904]
                %948 = vst [vmem:[%s914 + $0x40] sm:%s904] %v947
                %v949 = vld [vmem:[%s913 + $0x44] sm:%s904]
                %950 = vst [vmem:[%s914 + $0x44] sm:%s904] %v949
                %v951 = vld [vmem:[%s913 + $0x48] sm:%s904]
                %952 = vst [vmem:[%s914 + $0x48] sm:%s904] %v951
                %v953 = vld [vmem:[%s913 + $0x4c] sm:%s904]
                %954 = vst [vmem:[%s914 + $0x4c] sm:%s904] %v953
                %v955 = vld [vmem:[%s913 + $0x50] sm:%s904]
                %956 = vst [vmem:[%s914 + $0x50] sm:%s904] %v955
                %v957 = vld [vmem:[%s913 + $0x54] sm:%s904]
                %958 = vst [vmem:[%s914 + $0x54] sm:%s904] %v957
                %v959 = vld [vmem:[%s913 + $0x58] sm:%s904]
                %960 = vst [vmem:[%s914 + $0x58] sm:%s904] %v959
                %v961 = vld [vmem:[%s913 + $0x5c] sm:%s904]
                %962 = vst [vmem:[%s914 + $0x5c] sm:%s904] %v961
                %v963 = vld [vmem:[%s913 + $0x60] sm:%s904]
                %964 = vst [vmem:[%s914 + $0x60] sm:%s904] %v963
                %v965 = vld [vmem:[%s913 + $0x64] sm:%s904]
                %966 = vst [vmem:[%s914 + $0x64] sm:%s904] %v965
                %v967 = vld [vmem:[%s913 + $0x68] sm:%s904]
                %968 = vst [vmem:[%s914 + $0x68] sm:%s904] %v967
                %v969 = vld [vmem:[%s913 + $0x6c] sm:%s904]
                %970 = vst [vmem:[%s914 + $0x6c] sm:%s904] %v969
                %v971 = vld [vmem:[%s913 + $0x70] sm:%s904]
                %972 = vst [vmem:[%s914 + $0x70] sm:%s904] %v971
                %v973 = vld [vmem:[%s913 + $0x74] sm:%s904]
                %974 = vst [vmem:[%s914 + $0x74] sm:%s904] %v973
                %v975 = vld [vmem:[%s913 + $0x78] sm:%s904]
                %976 = vst [vmem:[%s914 + $0x78] sm:%s904] %v975
                %v977 = vld [vmem:[%s913 + $0x7c] sm:%s904]
                %978 = vst [vmem:[%s914 + $0x7c] sm:%s904] %v977
                %s979 = sadd.s32 1, %s912
                %p980 = scmp.ge.s32.totalorder %s979, %s905
                %s981 = scalar_select %p980, 0, %s979
                %s982 = smul.u32 %s981, 128
                %s983 = smul.u32 %s981, 128
                %s984 = scalar_lea.vmem %s884, %s982 [#allocation2]
                %s985 = scalar_lea.vmem %s895, %s983
              $region53: #{dqn_forward.3} parent=47 // loop_footer
                %s909 = sadd.s32 %s907, 1
              $region54: #{dqn_forward.3} parent=47 // loop_footer_branch
                %906 = sbr.rel target = $region50
              $region55: #{dqn_forward.3} parent=47 // loop_exit
                _
              %s986 = sshrl.u32 %s891, 5
              %s987 = sand.u32 %s891, 31
              %s988 = smul.u32 %s986, 32
              %s989 = smul.u32 4, %s988
              %s990 = scalar_lea.vmem %s884, %s989 [#allocation2]
              %s991 = smul.u32 4, %s988
              %s992 = scalar_lea.vmem %s895, %s991
              // While loop
              $region56: #{dqn_forward.3} parent=47 // loop_pre_header
                _
              $region57: #{dqn_forward.3} parent=47 // loop_header
                %s994 = sphi 0, %s996
                %p995 = scmp.ge.s32.totalorder %s994, %s987
                %s999 = sphi 0, %s1006
                %s1000 = sphi %s990, %s1009
                %s1001 = sphi %s992, %s1010
              $region58: #{dqn_forward.3} parent=47 // loop_header_branch
                %998 = sbr.rel (%p995) target = $region62
              $region59: #{dqn_forward.3} parent=47 // loop_body
                %v1002 = vld [vmem:[%s1000] sm:%s904]
                %1003 = vst [vmem:[%s1001] sm:%s904] %v1002
                %s1004 = sadd.s32 1, %s999
                %p1005 = scmp.ge.s32.totalorder %s1004, %s987
                %s1006 = scalar_select %p1005, 0, %s1004
                %s1007 = smul.u32 %s1006, 4
                %s1008 = smul.u32 %s1006, 4
                %s1009 = scalar_lea.vmem %s990, %s1007 [#allocation2]
                %s1010 = scalar_lea.vmem %s992, %s1008
              $region60: #{dqn_forward.3} parent=47 // loop_footer
                %s996 = sadd.s32 %s994, 1
              $region61: #{dqn_forward.3} parent=47 // loop_footer_branch
                %993 = sbr.rel target = $region57
              $region62: #{dqn_forward.3} parent=47 // loop_exit
                _
            $region48: #{dqn_forward.3} parent=39 // pred_fallthru
              _
          $region40: #{dqn_forward.3} parent=35 // pred_fallthru
            _
          %1121 = vnop
        $region36: #{dqn_forward.3} parent=31 // pred_fallthru
          _
      $region32: #{dqn_forward.3} parent=5 // pred_fallthru
        _
      %p1122 = scmp.le.s32.totalorder 2, %s9
      // Predicated region
      $region81: #{dqn_forward.3} parent=5 // pred_check
        %p1123 = pneg %p1122
      $region82: #{dqn_forward.3} parent=5 // pred_check_branch
        %1125 = sbr.rel (%p1123) target = $region84
      $region83: #{dqn_forward.3} parent=5 // pred_region
        %s1126 = ssub.s32 %s9, 2
        // Predicated region
        $region85: #{dqn_forward.3} parent=83 // pred_check
          %p1127 = pneg %p106
        $region86: #{dqn_forward.3} parent=83 // pred_check_branch
          %1129 = sbr.rel (%p1127) target = $region88
        $region87: #{dqn_forward.3} parent=83 // pred_region
          %s1130 = sand.u32 %s91, 1
          %s1131 = sand.u32 %s91, 1
          %s1132 = smul.addr %s1131, 128
          %s1133 = scalar_lea.vmem [#allocation2], %s1132
        $region88: #{dqn_forward.3} parent=83 // pred_fallthru
          _
      $region84: #{dqn_forward.3} parent=5 // pred_fallthru
        _
    $region6: #{dqn_forward.3} parent=1 // loop_footer
      %s13 = sadd.s32 1, %s9
    $region7: #{dqn_forward.3} parent=1 // loop_footer_branch
      %8 = sbr.rel target = $region3
    $region8: #{dqn_forward.3} parent=1 // loop_exit
      _

// kernel: dqn_forward.4
$region0: #{dqn_forward.4}
  #allocation0 [shape = 'u32[]', space=smem, size = 0x4, offset = 0x4, fixed_abs, tag = 'smem constant byte address 0x4 - core index']
  #allocation1 [shape = 'u32[144,128]{1,0:T(1,128)}', space=vmem, size = 0x12000, scoped, tag = 'internal scratch']
  %s0 = inlined_call_operand.vmem [shape: bf16[162,256], index: 0, kind: input, shape index: {}]
  %s1 = inlined_call_operand.vmem [shape: bf16[256,128], index: 1, kind: input, shape index: {}]
  %s2 = inlined_call_operand.vmem [shape: f32[1,128], index: 2, kind: input, shape index: {}]
  %s3 = inlined_call_operand.vmem [shape: bf16[162,128], index: 3, kind: output, shape index: {}]
  %s4 = sld [smem:[#allocation0]]
  $region22: #{dqn_forward.4} parent=0
    _
  %s6 = ssub.s32 1, %s4
  %s7 = scalar_select 0, %s6, %s4
  // Predicated region
  $region2: #{dqn_forward.4} parent=0 // pred_check
    _
  $region3: #{dqn_forward.4} parent=0 // pred_check_branch
    %9 = sbr.rel (0) target = $region5
  $region4: #{dqn_forward.4} parent=0 // pred_region
    _
  $region5: #{dqn_forward.4} parent=0 // pred_fallthru
    _
  // Predicated region
  $region6: #{dqn_forward.4} parent=0 // pred_check
    _
  $region7: #{dqn_forward.4} parent=0 // pred_check_branch
    %11 = sbr.rel (0) target = $region9
  $region8: #{dqn_forward.4} parent=0 // pred_region
    _
  $region9: #{dqn_forward.4} parent=0 // pred_fallthru
    _
  // Predicated region
  $region10: #{dqn_forward.4} parent=0 // pred_check
    _
  $region11: #{dqn_forward.4} parent=0 // pred_check_branch
    %13 = sbr.rel (0) target = $region13
  $region12: #{dqn_forward.4} parent=0 // pred_region
    _
  $region13: #{dqn_forward.4} parent=0 // pred_fallthru
    _
  %v15 = vld [vmem:[%s0] sm:$0xff]
  %v16 = vld [vmem:[%s0 + $0x8] sm:$0xff]
  %v17 = vld [vmem:[%s0 + $0x10] sm:$0xff]
  %v18 = vld [vmem:[%s0 + $0x18] sm:$0xff]
  %v19 = vld [vmem:[%s0 + $0x20] sm:$0xff]
  %v20 = vld [vmem:[%s0 + $0x28] sm:$0xff]
  %v21 = vld [vmem:[%s0 + $0x30] sm:$0xff]
  %v22 = vld [vmem:[%s0 + $0x38] sm:$0xff]
  %v23 = vld [vmem:[%s0 + $0x40] sm:$0xff]
  %v24 = vld [vmem:[%s0 + $0x48] sm:$0xff]
  %v25 = vld [vmem:[%s0 + $0x50] sm:$0xff]
  %v26 = vld [vmem:[%s0 + $0x58] sm:$0xff]
  %v27 = vld [vmem:[%s0 + $0x60] sm:$0xff]
  %v28 = vld [vmem:[%s0 + $0x68] sm:$0xff]
  %v29 = vld [vmem:[%s0 + $0x70] sm:$0xff]
  %v30 = vld [vmem:[%s0 + $0x78] sm:$0xff]
  %v31 = vld [vmem:[%s0 + $0x80] sm:$0xff]
  %v32 = vld [vmem:[%s0 + $0x88] sm:$0xff]
  %v33 = vld [vmem:[%s0 + $0x90] sm:$0xff]
  %v34 = vld [vmem:[%s0 + $0x98] sm:$0xff]
  %v35 = vld [vmem:[%s0 + $0xa0] sm:$0x11]
  %v36 = vld [vmem:[%s1] sm:$0xf]
  %v37 = vld [vmem:[%s1 + $0x4] sm:$0xf]
  %v38 = vld [vmem:[%s1 + $0x8] sm:$0xf]
  %v39 = vld [vmem:[%s1 + $0xc] sm:$0xf]
  %v40 = vld [vmem:[%s1 + $0x10] sm:$0xf]
  %v41 = vld [vmem:[%s1 + $0x14] sm:$0xf]
  %v42 = vld [vmem:[%s1 + $0x18] sm:$0xf]
  %v43 = vld [vmem:[%s1 + $0x1c] sm:$0xf]
  %v44 = vld [vmem:[%s1 + $0x20] sm:$0xf]
  %v45 = vld [vmem:[%s1 + $0x24] sm:$0xf]
  %v46 = vld [vmem:[%s1 + $0x28] sm:$0xf]
  %v47 = vld [vmem:[%s1 + $0x2c] sm:$0xf]
  %v48 = vld [vmem:[%s1 + $0x30] sm:$0xf]
  %v49 = vld [vmem:[%s1 + $0x34] sm:$0xf]
  %v50 = vld [vmem:[%s1 + $0x38] sm:$0xf]
  %v51 = vld [vmem:[%s1 + $0x3c] sm:$0xf]
  %v52 = vld [vmem:[%s1 + $0x40] sm:$0xf]
  %v53 = vld [vmem:[%s1 + $0x44] sm:$0xf]
  %v54 = vld [vmem:[%s1 + $0x48] sm:$0xf]
  %v55 = vld [vmem:[%s1 + $0x4c] sm:$0xf]
  %v56 = vld [vmem:[%s1 + $0x50] sm:$0xf]
  %v57 = vld [vmem:[%s1 + $0x54] sm:$0xf]
  %v58 = vld [vmem:[%s1 + $0x58] sm:$0xf]
  %v59 = vld [vmem:[%s1 + $0x5c] sm:$0xf]
  %v60 = vld [vmem:[%s1 + $0x60] sm:$0xf]
  %v61 = vld [vmem:[%s1 + $0x64] sm:$0xf]
  %v62 = vld [vmem:[%s1 + $0x68] sm:$0xf]
  %v63 = vld [vmem:[%s1 + $0x6c] sm:$0xf]
  %v64 = vld [vmem:[%s1 + $0x70] sm:$0xf]
  %v65 = vld [vmem:[%s1 + $0x74] sm:$0xf]
  %v66 = vld [vmem:[%s1 + $0x78] sm:$0xf]
  %v67 = vld [vmem:[%s1 + $0x7c] sm:$0xf]
  %v68 = vld [vmem:[%s2] sm:$0x1]
  %v70 = vlaneseq
  %v71 = vshrl.u32 %v70, 7
  %v72 = vsub.s32 0, %v71
  %v73 = vrot.slane %v68, %v72
  %v96 = vunpack.c.l.b16 %v15
  %v97 = vunpack.c.h.b16 %v15
  %v98 = vunpack.c.l.b16 %v16
  %v99 = vunpack.c.h.b16 %v16
  %v100 = vunpack.c.l.b16 %v17
  %v101 = vunpack.c.h.b16 %v17
  %v102 = vunpack.c.l.b16 %v18
  %v103 = vunpack.c.h.b16 %v18
  %v104 = vunpack.c.l.b16 %v19
  %v105 = vunpack.c.h.b16 %v19
  %v106 = vunpack.c.l.b16 %v20
  %v107 = vunpack.c.h.b16 %v20
  %v108 = vunpack.c.l.b16 %v21
  %v109 = vunpack.c.h.b16 %v21
  %v110 = vunpack.c.l.b16 %v22
  %v111 = vunpack.c.h.b16 %v22
  %v112 = vunpack.c.l.b16 %v23
  %v113 = vunpack.c.h.b16 %v23
  %v114 = vunpack.c.l.b16 %v24
  %v115 = vunpack.c.h.b16 %v24
  %v116 = vunpack.c.l.b16 %v25
  %v117 = vunpack.c.h.b16 %v25
  %v118 = vunpack.c.l.b16 %v26
  %v119 = vunpack.c.h.b16 %v26
  %v120 = vunpack.c.l.b16 %v27
  %v121 = vunpack.c.h.b16 %v27
  %v122 = vunpack.c.l.b16 %v28
  %v123 = vunpack.c.h.b16 %v28
  %v124 = vunpack.c.l.b16 %v29
  %v125 = vunpack.c.h.b16 %v29
  %v126 = vunpack.c.l.b16 %v30
  %v127 = vunpack.c.h.b16 %v30
  %v128 = vunpack.c.l.b16 %v31
  %v129 = vunpack.c.h.b16 %v31
  %v130 = vunpack.c.l.b16 %v32
  %v131 = vunpack.c.h.b16 %v32
  %v132 = vunpack.c.l.b16 %v33
  %v133 = vunpack.c.h.b16 %v33
  %v134 = vunpack.c.l.b16 %v34
  %v135 = vunpack.c.h.b16 %v34
  %v136 = vunpack.c.l.b16 %v35
  %v137 = vunpack.c.h.b16 %v35
  %v138 = vpack.c.b16 %v98, %v96
  %v139 = vpack.c.b16 %v99, %v97
  %v140 = vpack.c.b16 %v102, %v100
  %v141 = vpack.c.b16 %v103, %v101
  %v142 = vpack.c.b16 %v106, %v104
  %v143 = vpack.c.b16 %v107, %v105
  %v144 = vpack.c.b16 %v110, %v108
  %v145 = vpack.c.b16 %v111, %v109
  %v146 = vpack.c.b16 %v114, %v112
  %v147 = vpack.c.b16 %v115, %v113
  %v148 = vpack.c.b16 %v118, %v116
  %v149 = vpack.c.b16 %v119, %v117
  %v150 = vpack.c.b16 %v122, %v120
  %v151 = vpack.c.b16 %v123, %v121
  %v152 = vpack.c.b16 %v126, %v124
  %v153 = vpack.c.b16 %v127, %v125
  %v154 = vpack.c.b16 %v130, %v128
  %v155 = vpack.c.b16 %v131, %v129
  %v156 = vpack.c.b16 %v134, %v132
  %v157 = vpack.c.b16 %v135, %v133
  %v158 = vpack.c.b16 %v136, %v136
  %v159 = vpack.c.b16 %v137, %v137
  %v214 = vunpack.c.l.b16 %v36
  %v215 = vunpack.c.l.b16 %v37
  %v216 = vunpack.c.l.b16 %v38
  %v217 = vunpack.c.l.b16 %v39
  %v218 = vunpack.c.l.b16 %v40
  %v219 = vunpack.c.l.b16 %v41
  %v220 = vunpack.c.l.b16 %v42
  %v221 = vunpack.c.l.b16 %v43
  %v222 = vunpack.c.l.b16 %v44
  %v223 = vunpack.c.l.b16 %v45
  %v224 = vunpack.c.l.b16 %v46
  %v225 = vunpack.c.l.b16 %v47
  %v226 = vunpack.c.l.b16 %v48
  %v227 = vunpack.c.l.b16 %v49
  %v228 = vunpack.c.l.b16 %v50
  %v229 = vunpack.c.l.b16 %v51
  %v230 = vunpack.c.l.b16 %v52
  %v231 = vunpack.c.l.b16 %v53
  %v232 = vunpack.c.l.b16 %v54
  %v233 = vunpack.c.l.b16 %v55
  %v234 = vunpack.c.l.b16 %v56
  %v235 = vunpack.c.l.b16 %v57
  %v236 = vunpack.c.l.b16 %v58
  %v237 = vunpack.c.l.b16 %v59
  %v238 = vunpack.c.l.b16 %v60
  %v239 = vunpack.c.l.b16 %v61
  %v240 = vunpack.c.l.b16 %v62
  %v241 = vunpack.c.l.b16 %v63
  %v242 = vunpack.c.l.b16 %v64
  %v243 = vunpack.c.l.b16 %v65
  %v244 = vunpack.c.l.b16 %v66
  %v245 = vunpack.c.l.b16 %v67
  %v246 = vpack.c.b16 %v215, %v214
  %v247 = vpack.c.b16 %v217, %v216
  %v248 = vpack.c.b16 %v219, %v218
  %v249 = vpack.c.b16 %v221, %v220
  %v250 = vpack.c.b16 %v223, %v222
  %v251 = vpack.c.b16 %v225, %v224
  %v252 = vpack.c.b16 %v227, %v226
  %v253 = vpack.c.b16 %v229, %v228
  %v254 = vpack.c.b16 %v231, %v230
  %v255 = vpack.c.b16 %v233, %v232
  %v256 = vpack.c.b16 %v235, %v234
  %v257 = vpack.c.b16 %v237, %v236
  %v258 = vpack.c.b16 %v239, %v238
  %v259 = vpack.c.b16 %v241, %v240
  %v260 = vpack.c.b16 %v243, %v242
  %v261 = vpack.c.b16 %v245, %v244
  %278 = vmatprep.subr.bf16.mxu0 0
  %279 = vmatpush1.bf16.msra.mxu0 %v253
  %280 = vmatprep.subr.bf16.mxu0 0
  %281 = vmatpush1.bf16.msra.mxu0 %v252
  %282 = vmatprep.subr.bf16.mxu0 0
  %283 = vmatpush1.bf16.msra.mxu0 %v251
  %284 = vmatprep.subr.bf16.mxu0 0
  %285 = vmatpush1.bf16.msra.mxu0 %v250
  %286 = vmatprep.subr.bf16.mxu0 0
  %287 = vmatpush1.bf16.msra.mxu0 %v249
  %288 = vmatprep.subr.bf16.mxu0 0
  %289 = vmatpush1.bf16.msra.mxu0 %v248
  %290 = vmatprep.subr.bf16.mxu0 0
  %291 = vmatpush1.bf16.msra.mxu0 %v247
  %292 = vmatprep.subr.bf16.mxu0 0
  %293 = vmatpush1.bf16.msra.mxu0 %v246
  %294 = vmatprep.subr.bf16.mxu0 0
  %295 = vmatpush2.bf16.msra.mxu0 %v261
  %296 = vmatprep.subr.bf16.mxu0 0
  %297 = vmatpush2.bf16.msra.mxu0 %v260
  %298 = vmatprep.subr.bf16.mxu0 0
  %299 = vmatpush2.bf16.msra.mxu0 %v259
  %300 = vmatprep.subr.bf16.mxu0 0
  %301 = vmatpush2.bf16.msra.mxu0 %v258
  %302 = vmatprep.subr.bf16.mxu0 0
  %303 = vmatpush2.bf16.msra.mxu0 %v257
  %304 = vmatprep.subr.bf16.mxu0 0
  %305 = vmatpush2.bf16.msra.mxu0 %v256
  %306 = vmatprep.subr.bf16.mxu0 0
  %307 = vmatpush2.bf16.msra.mxu0 %v255
  %308 = vmatprep.subr.bf16.mxu0 0
  %309 = vmatpush2.bf16.msra.mxu0 %v254
  %310 = vmatprep.mubr.bf16.mxu0 %v139
  %311 = vmatmul.mubr.bf16.gmra.mxu0 %v138
  %v312 = vpop.f32.mrf.mxu0
  %v313 = vadd.f32 %v73, %v312
  %v314 = vpop.f32.mrf.mxu0
  %v315 = vpop.f32.mrf.mxu0
  %v316 = vadd.f32 %v73, %v315
  %v317 = vpop.f32.mrf.mxu0
  %318 = vmatprep.mubr.bf16.mxu0 %v141
  %319 = vmatmul.mubr.bf16.gmra.mxu0 %v140
  %v320 = vpop.f32.mrf.mxu0
  %v321 = vadd.f32 %v73, %v320
  %v322 = vpop.f32.mrf.mxu0
  %v323 = vpop.f32.mrf.mxu0
  %v324 = vadd.f32 %v73, %v323
  %v325 = vpop.f32.mrf.mxu0
  %326 = vmatprep.mubr.bf16.mxu0 %v143
  %327 = vmatmul.mubr.bf16.gmra.mxu0 %v142
  %v328 = vpop.f32.mrf.mxu0
  %v329 = vadd.f32 %v73, %v328
  %v330 = vpop.f32.mrf.mxu0
  %v331 = vpop.f32.mrf.mxu0
  %v332 = vadd.f32 %v73, %v331
  %v333 = vpop.f32.mrf.mxu0
  %334 = vmatprep.mubr.bf16.mxu0 %v145
  %335 = vmatmul.mubr.bf16.gmra.mxu0 %v144
  %v336 = vpop.f32.mrf.mxu0
  %v337 = vadd.f32 %v73, %v336
  %v338 = vpop.f32.mrf.mxu0
  %v339 = vpop.f32.mrf.mxu0
  %v340 = vadd.f32 %v73, %v339
  %v341 = vpop.f32.mrf.mxu0
  %342 = vmatprep.mubr.bf16.mxu0 %v147
  %343 = vmatmul.mubr.bf16.gmra.mxu0 %v146
  %v344 = vpop.f32.mrf.mxu0
  %v345 = vadd.f32 %v73, %v344
  %v346 = vpop.f32.mrf.mxu0
  %v347 = vpop.f32.mrf.mxu0
  %v348 = vadd.f32 %v73, %v347
  %v349 = vpop.f32.mrf.mxu0
  %350 = vmatprep.mubr.bf16.mxu0 %v149
  %351 = vmatmul.mubr.bf16.gmra.mxu0 %v148
  %v352 = vpop.f32.mrf.mxu0
  %v353 = vadd.f32 %v73, %v352
  %v354 = vpop.f32.mrf.mxu0
  %v355 = vpop.f32.mrf.mxu0
  %v356 = vadd.f32 %v73, %v355
  %v357 = vpop.f32.mrf.mxu0
  %358 = vmatprep.mubr.bf16.mxu0 %v151
  %359 = vmatmul.mubr.bf16.gmra.mxu0 %v150
  %v360 = vpop.f32.mrf.mxu0
  %v361 = vadd.f32 %v73, %v360
  %v362 = vpop.f32.mrf.mxu0
  %v363 = vpop.f32.mrf.mxu0
  %v364 = vadd.f32 %v73, %v363
  %v365 = vpop.f32.mrf.mxu0
  %366 = vmatprep.mubr.bf16.mxu0 %v153
  %367 = vmatmul.mubr.bf16.gmra.mxu0 %v152
  %v368 = vpop.f32.mrf.mxu0
  %v369 = vadd.f32 %v73, %v368
  %v370 = vpop.f32.mrf.mxu0
  %v371 = vpop.f32.mrf.mxu0
  %v372 = vadd.f32 %v73, %v371
  %v373 = vpop.f32.mrf.mxu0
  %374 = vmatprep.mubr.bf16.mxu0 %v155
  %375 = vmatmul.mubr.bf16.gmra.mxu0 %v154
  %v376 = vpop.f32.mrf.mxu0
  %v377 = vadd.f32 %v73, %v376
  %v378 = vpop.f32.mrf.mxu0
  %v379 = vpop.f32.mrf.mxu0
  %v380 = vadd.f32 %v73, %v379
  %v381 = vpop.f32.mrf.mxu0
  %382 = vmatprep.mubr.bf16.mxu0 %v157
  %383 = vmatmul.mubr.bf16.gmra.mxu0 %v156
  %v384 = vpop.f32.mrf.mxu0
  %v385 = vadd.f32 %v73, %v384
  %v386 = vpop.f32.mrf.mxu0
  %v387 = vpop.f32.mrf.mxu0
  %v388 = vadd.f32 %v73, %v387
  %v389 = vpop.f32.mrf.mxu0
  %390 = vmatprep.mubr.bf16.mxu0 %v159
  %391 = vmatmul.mubr.bf16.gmra.mxu0 %v158
  %v392 = vpop.f32.mrf.mxu0
  %v393 = vadd.f32 %v73, %v392
  %v394 = vpop.f32.mrf.mxu0
  %v395 = vpop.f32.mrf.mxu0
  %v396 = vpop.f32.mrf.mxu0
  %397 = vdwg.mxu0
  %v398 = vmax.f32 %v313, 0.0
  %v399 = vmax.f32 %v316, 0.0
  %v400 = vmax.f32 %v321, 0.0
  %v401 = vmax.f32 %v324, 0.0
  %v402 = vmax.f32 %v329, 0.0
  %v403 = vmax.f32 %v332, 0.0
  %v404 = vmax.f32 %v337, 0.0
  %v405 = vmax.f32 %v340, 0.0
  %v406 = vmax.f32 %v345, 0.0
  %v407 = vmax.f32 %v348, 0.0
  %v408 = vmax.f32 %v353, 0.0
  %v409 = vmax.f32 %v356, 0.0
  %v410 = vmax.f32 %v361, 0.0
  %v411 = vmax.f32 %v364, 0.0
  %v412 = vmax.f32 %v369, 0.0
  %v413 = vmax.f32 %v372, 0.0
  %v414 = vmax.f32 %v377, 0.0
  %v415 = vmax.f32 %v380, 0.0
  %v416 = vmax.f32 %v385, 0.0
  %v417 = vmax.f32 %v388, 0.0
  %v418 = vmax.f32 %v393, 0.0
  %v419 = vpack.c.bf16 %v399, %v398
  %v420 = vpack.c.bf16 %v401, %v400
  %v421 = vpack.c.bf16 %v403, %v402
  %v422 = vpack.c.bf16 %v405, %v404
  %v423 = vpack.c.bf16 %v407, %v406
  %v424 = vpack.c.bf16 %v409, %v408
  %v425 = vpack.c.bf16 %v411, %v410
  %v426 = vpack.c.bf16 %v413, %v412
  %v427 = vpack.c.bf16 %v415, %v414
  %v428 = vpack.c.bf16 %v417, %v416
  %v429 = vpack.c.bf16 %v418, %v418
  %v441 = vunpack.c.l.b16 %v419
  %v442 = vunpack.c.h.b16 %v419
  %v443 = vunpack.c.l.b16 %v420
  %v444 = vunpack.c.h.b16 %v420
  %v445 = vunpack.c.l.b16 %v421
  %v446 = vunpack.c.h.b16 %v421
  %v447 = vunpack.c.l.b16 %v422
  %v448 = vunpack.c.h.b16 %v422
  %v449 = vunpack.c.l.b16 %v423
  %v450 = vunpack.c.h.b16 %v423
  %v451 = vunpack.c.l.b16 %v424
  %v452 = vunpack.c.h.b16 %v424
  %v453 = vunpack.c.l.b16 %v425
  %v454 = vunpack.c.h.b16 %v425
  %v455 = vunpack.c.l.b16 %v426
  %v456 = vunpack.c.h.b16 %v426
  %v457 = vunpack.c.l.b16 %v427
  %v458 = vunpack.c.h.b16 %v427
  %v459 = vunpack.c.l.b16 %v428
  %v460 = vunpack.c.h.b16 %v428
  %v461 = vunpack.c.l.b16 %v429
  %v462 = vpack.c.b16 %v441, %v441
  %v463 = vpack.c.b16 %v442, %v442
  %v464 = vpack.c.b16 %v443, %v443
  %v465 = vpack.c.b16 %v444, %v444
  %v466 = vpack.c.b16 %v445, %v445
  %v467 = vpack.c.b16 %v446, %v446
  %v468 = vpack.c.b16 %v447, %v447
  %v469 = vpack.c.b16 %v448, %v448
  %v470 = vpack.c.b16 %v449, %v449
  %v471 = vpack.c.b16 %v450, %v450
  %v472 = vpack.c.b16 %v451, %v451
  %v473 = vpack.c.b16 %v452, %v452
  %v474 = vpack.c.b16 %v453, %v453
  %v475 = vpack.c.b16 %v454, %v454
  %v476 = vpack.c.b16 %v455, %v455
  %v477 = vpack.c.b16 %v456, %v456
  %v478 = vpack.c.b16 %v457, %v457
  %v479 = vpack.c.b16 %v458, %v458
  %v480 = vpack.c.b16 %v459, %v459
  %v481 = vpack.c.b16 %v460, %v460
  %v482 = vpack.c.b16 %v461, %v461
  %504 = vst [vmem:[%s3] sm:$0xf] %v462
  %505 = vst [vmem:[%s3 + $0x4] sm:$0xf] %v463
  %506 = vst [vmem:[%s3 + $0x8] sm:$0xf] %v464
  %507 = vst [vmem:[%s3 + $0xc] sm:$0xf] %v465
  %508 = vst [vmem:[%s3 + $0x10] sm:$0xf] %v466
  %509 = vst [vmem:[%s3 + $0x14] sm:$0xf] %v467
  %510 = vst [vmem:[%s3 + $0x18] sm:$0xf] %v468
  %511 = vst [vmem:[%s3 + $0x1c] sm:$0xf] %v469
  %512 = vst [vmem:[%s3 + $0x20] sm:$0xf] %v470
  %513 = vst [vmem:[%s3 + $0x24] sm:$0xf] %v471
  %514 = vst [vmem:[%s3 + $0x28] sm:$0xf] %v472
  %515 = vst [vmem:[%s3 + $0x2c] sm:$0xf] %v473
  %516 = vst [vmem:[%s3 + $0x30] sm:$0xf] %v474
  %517 = vst [vmem:[%s3 + $0x34] sm:$0xf] %v475
  %518 = vst [vmem:[%s3 + $0x38] sm:$0xf] %v476
  %519 = vst [vmem:[%s3 + $0x3c] sm:$0xf] %v477
  %520 = vst [vmem:[%s3 + $0x40] sm:$0xf] %v478
  %521 = vst [vmem:[%s3 + $0x44] sm:$0xf] %v479
  %522 = vst [vmem:[%s3 + $0x48] sm:$0xf] %v480
  %523 = vst [vmem:[%s3 + $0x4c] sm:$0xf] %v481
  %524 = vst [vmem:[%s3 + $0x50] sm:$0x1] %v482
  // Predicated region
  $region14: #{dqn_forward.4} parent=0 // pred_check
    _
  $region15: #{dqn_forward.4} parent=0 // pred_check_branch
    %526 = sbr.rel (0) target = $region17
  $region16: #{dqn_forward.4} parent=0 // pred_region
    _
  $region17: #{dqn_forward.4} parent=0 // pred_fallthru
    _
  // Predicated region
  $region18: #{dqn_forward.4} parent=0 // pred_check
    _
  $region19: #{dqn_forward.4} parent=0 // pred_check_branch
    %528 = sbr.rel (0) target = $region21
  $region20: #{dqn_forward.4} parent=0 // pred_region
    _
  $region21: #{dqn_forward.4} parent=0 // pred_fallthru
    _

// kernel: dqn_forward.5
$region0: #{dqn_forward.5}
  #allocation0 [shape = 'u32[]', space=smem, size = 0x4, offset = 0x4, fixed_abs, tag = 'smem constant byte address 0x4 - core index']
  #allocation1 [shape = 'u32[144,128]{1,0:T(1,128)}', space=vmem, size = 0x12000, scoped, tag = 'internal scratch']
  %s0 = inlined_call_operand.vmem [shape: bf16[2,2592], index: 0, kind: input, shape index: {}]
  %s1 = inlined_call_operand.vmem [shape: bf16[2592,256], index: 1, kind: input, shape index: {}]
  %s2 = inlined_call_operand.vmem [shape: f32[1,256], index: 2, kind: input, shape index: {}]
  %s3 = inlined_call_operand.vmem [shape: bf16[256,128], index: 3, kind: input, shape index: {}]
  %s4 = inlined_call_operand.vmem [shape: f32[1,128], index: 4, kind: input, shape index: {}]
  %s5 = inlined_call_operand.hbm [shape: f32[2,128], index: 5, kind: output, shape index: {}]
  %s6 = sld [smem:[#allocation0]]
  $region30: #{dqn_forward.5} parent=0
    _
  %s8 = ssub.s32 1, %s6
  %s9 = scalar_select 0, %s8, %s6
  $region1: #{dqn_forward.5} parent=0
    #allocation2 [shape = 'u8[1024]{0}', space=vmem, size = 0x400, scoped, tag = 'output window, operand 0, single buffered']
    #allocation3 [shape = 's32[1]{0}', space=sflag, size = 0x4, scoped, tag = 'scoped memory for dqn_forward.5']
    %10 = vsyncpa [#allocation3], 0
    // Predicated region
    $region2: #{dqn_forward.5} parent=1 // pred_check
      _
    $region3: #{dqn_forward.5} parent=1 // pred_check_branch
      %12 = sbr.rel (0) target = $region5
    $region4: #{dqn_forward.5} parent=1 // pred_region
      _
    $region5: #{dqn_forward.5} parent=1 // pred_fallthru
      _
    // Predicated region
    $region6: #{dqn_forward.5} parent=1 // pred_check
      _
    $region7: #{dqn_forward.5} parent=1 // pred_check_branch
      %14 = sbr.rel (0) target = $region9
    $region8: #{dqn_forward.5} parent=1 // pred_region
      _
    $region9: #{dqn_forward.5} parent=1 // pred_fallthru
      _
    // Predicated region
    $region10: #{dqn_forward.5} parent=1 // pred_check
      _
    $region11: #{dqn_forward.5} parent=1 // pred_check_branch
      %16 = sbr.rel (0) target = $region13
    $region12: #{dqn_forward.5} parent=1 // pred_region
      _
    $region13: #{dqn_forward.5} parent=1 // pred_fallthru
      _
    // Predicated region
    $region14: #{dqn_forward.5} parent=1 // pred_check
      _
    $region15: #{dqn_forward.5} parent=1 // pred_check_branch
      %18 = sbr.rel (0) target = $region17
    $region16: #{dqn_forward.5} parent=1 // pred_region
      _
    $region17: #{dqn_forward.5} parent=1 // pred_fallthru
      _
    // Predicated region
    $region18: #{dqn_forward.5} parent=1 // pred_check
      _
    $region19: #{dqn_forward.5} parent=1 // pred_check_branch
      %20 = sbr.rel (0) target = $region21
    $region20: #{dqn_forward.5} parent=1 // pred_region
      _
    $region21: #{dqn_forward.5} parent=1 // pred_fallthru
      _
    %v22 = vld [vmem:[%s0] sm:$0xff]
    %v23 = vld [vmem:[%s0 + $0x8] sm:$0xff]
    %v24 = vld [vmem:[%s0 + $0x10] sm:$0x1f]
    %v25 = vld [vmem:[%s1] sm:$0xff]
    %v26 = vld [vmem:[%s1 + $0x8] sm:$0xff]
    %v27 = vld [vmem:[%s1 + $0x10] sm:$0xff]
    %v28 = vld [vmem:[%s1 + $0x18] sm:$0xff]
    %v29 = vld [vmem:[%s1 + $0x20] sm:$0xff]
    %v30 = vld [vmem:[%s1 + $0x28] sm:$0xff]
    %v31 = vld [vmem:[%s1 + $0x30] sm:$0xff]
    %v32 = vld [vmem:[%s1 + $0x38] sm:$0xff]
    %v33 = vld [vmem:[%s1 + $0x40] sm:$0xff]
    %v34 = vld [vmem:[%s1 + $0x48] sm:$0xff]
    %v35 = vld [vmem:[%s1 + $0x50] sm:$0xff]
    %v36 = vld [vmem:[%s1 + $0x58] sm:$0xff]
    %v37 = vld [vmem:[%s1 + $0x60] sm:$0xff]
    %v38 = vld [vmem:[%s1 + $0x68] sm:$0xff]
    %v39 = vld [vmem:[%s1 + $0x70] sm:$0xff]
    %v40 = vld [vmem:[%s1 + $0x78] sm:$0xff]
    %v41 = vld [vmem:[%s1 + $0x80] sm:$0xff]
    %v42 = vld [vmem:[%s1 + $0x88] sm:$0xff]
    %v43 = vld [vmem:[%s1 + $0x90] sm:$0xff]
    %v44 = vld [vmem:[%s1 + $0x98] sm:$0xff]
    %v45 = vld [vmem:[%s1 + $0xa0] sm:$0xff]
    %v46 = vld [vmem:[%s1 + $0xa8] sm:$0xff]
    %v47 = vld [vmem:[%s1 + $0xb0] sm:$0xff]
    %v48 = vld [vmem:[%s1 + $0xb8] sm:$0xff]
    %v49 = vld [vmem:[%s1 + $0xc0] sm:$0xff]
    %v50 = vld [vmem:[%s1 + $0xc8] sm:$0xff]
    %v51 = vld [vmem:[%s1 + $0xd0] sm:$0xff]
    %v52 = vld [vmem:[%s1 + $0xd8] sm:$0xff]
    %v53 = vld [vmem:[%s1 + $0xe0] sm:$0xff]
    %v54 = vld [vmem:[%s1 + $0xe8] sm:$0xff]
    %v55 = vld [vmem:[%s1 + $0xf0] sm:$0xff]
    %v56 = vld [vmem:[%s1 + $0xf8] sm:$0xff]
    %v57 = vld [vmem:[%s1 + $0x100] sm:$0xff]
    %v58 = vld [vmem:[%s1 + $0x108] sm:$0xff]
    %v59 = vld [vmem:[%s1 + $0x110] sm:$0xff]
    %v60 = vld [vmem:[%s1 + $0x118] sm:$0xff]
    %v61 = vld [vmem:[%s1 + $0x120] sm:$0xff]
    %v62 = vld [vmem:[%s1 + $0x128] sm:$0xff]
    %v63 = vld [vmem:[%s1 + $0x130] sm:$0xff]
    %v64 = vld [vmem:[%s1 + $0x138] sm:$0xff]
    %v65 = vld [vmem:[%s1 + $0x140] sm:$0xff]
    %v66 = vld [vmem:[%s1 + $0x148] sm:$0xff]
    %v67 = vld [vmem:[%s1 + $0x150] sm:$0xff]
    %v68 = vld [vmem:[%s1 + $0x158] sm:$0xff]
    %v69 = vld [vmem:[%s1 + $0x160] sm:$0xff]
    %v70 = vld [vmem:[%s1 + $0x168] sm:$0xff]
    %v71 = vld [vmem:[%s1 + $0x170] sm:$0xff]
    %v72 = vld [vmem:[%s1 + $0x178] sm:$0xff]
    %v73 = vld [vmem:[%s1 + $0x180] sm:$0xff]
    %v74 = vld [vmem:[%s1 + $0x188] sm:$0xff]
    %v75 = vld [vmem:[%s1 + $0x190] sm:$0xff]
    %v76 = vld [vmem:[%s1 + $0x198] sm:$0xff]
    %v77 = vld [vmem:[%s1 + $0x1a0] sm:$0xff]
    %v78 = vld [vmem:[%s1 + $0x1a8] sm:$0xff]
    %v79 = vld [vmem:[%s1 + $0x1b0] sm:$0xff]
    %v80 = vld [vmem:[%s1 + $0x1b8] sm:$0xff]
    %v81 = vld [vmem:[%s1 + $0x1c0] sm:$0xff]
    %v82 = vld [vmem:[%s1 + $0x1c8] sm:$0xff]
    %v83 = vld [vmem:[%s1 + $0x1d0] sm:$0xff]
    %v84 = vld [vmem:[%s1 + $0x1d8] sm:$0xff]
    %v85 = vld [vmem:[%s1 + $0x1e0] sm:$0xff]
    %v86 = vld [vmem:[%s1 + $0x1e8] sm:$0xff]
    %v87 = vld [vmem:[%s1 + $0x1f0] sm:$0xff]
    %v88 = vld [vmem:[%s1 + $0x1f8] sm:$0xff]
    %v89 = vld [vmem:[%s1 + $0x200] sm:$0xff]
    %v90 = vld [vmem:[%s1 + $0x208] sm:$0xff]
    %v91 = vld [vmem:[%s1 + $0x210] sm:$0xff]
    %v92 = vld [vmem:[%s1 + $0x218] sm:$0xff]
    %v93 = vld [vmem:[%s1 + $0x220] sm:$0xff]
    %v94 = vld [vmem:[%s1 + $0x228] sm:$0xff]
    %v95 = vld [vmem:[%s1 + $0x230] sm:$0xff]
    %v96 = vld [vmem:[%s1 + $0x238] sm:$0xff]
    %v97 = vld [vmem:[%s1 + $0x240] sm:$0xff]
    %v98 = vld [vmem:[%s1 + $0x248] sm:$0xff]
    %v99 = vld [vmem:[%s1 + $0x250] sm:$0xff]
    %v100 = vld [vmem:[%s1 + $0x258] sm:$0xff]
    %v101 = vld [vmem:[%s1 + $0x260] sm:$0xff]
    %v102 = vld [vmem:[%s1 + $0x268] sm:$0xff]
    %v103 = vld [vmem:[%s1 + $0x270] sm:$0xff]
    %v104 = vld [vmem:[%s1 + $0x278] sm:$0xff]
    %v105 = vld [vmem:[%s1 + $0x280] sm:$0xff]
    %v106 = vld [vmem:[%s1 + $0x288] sm:$0xff]
    %v107 = vld [vmem:[%s1 + $0x290] sm:$0xff]
    %v108 = vld [vmem:[%s1 + $0x298] sm:$0xff]
    %v109 = vld [vmem:[%s1 + $0x2a0] sm:$0xff]
    %v110 = vld [vmem:[%s1 + $0x2a8] sm:$0xff]
    %v111 = vld [vmem:[%s1 + $0x2b0] sm:$0xff]
    %v112 = vld [vmem:[%s1 + $0x2b8] sm:$0xff]
    %v113 = vld [vmem:[%s1 + $0x2c0] sm:$0xff]
    %v114 = vld [vmem:[%s1 + $0x2c8] sm:$0xff]
    %v115 = vld [vmem:[%s1 + $0x2d0] sm:$0xff]
    %v116 = vld [vmem:[%s1 + $0x2d8] sm:$0xff]
    %v117 = vld [vmem:[%s1 + $0x2e0] sm:$0xff]
    %v118 = vld [vmem:[%s1 + $0x2e8] sm:$0xff]
    %v119 = vld [vmem:[%s1 + $0x2f0] sm:$0xff]
    %v120 = vld [vmem:[%s1 + $0x2f8] sm:$0xff]
    %v121 = vld [vmem:[%s1 + $0x300] sm:$0xff]
    %v122 = vld [vmem:[%s1 + $0x308] sm:$0xff]
    %v123 = vld [vmem:[%s1 + $0x310] sm:$0xff]
    %v124 = vld [vmem:[%s1 + $0x318] sm:$0xff]
    %v125 = vld [vmem:[%s1 + $0x320] sm:$0xff]
    %v126 = vld [vmem:[%s1 + $0x328] sm:$0xff]
    %v127 = vld [vmem:[%s1 + $0x330] sm:$0xff]
    %v128 = vld [vmem:[%s1 + $0x338] sm:$0xff]
    %v129 = vld [vmem:[%s1 + $0x340] sm:$0xff]
    %v130 = vld [vmem:[%s1 + $0x348] sm:$0xff]
    %v131 = vld [vmem:[%s1 + $0x350] sm:$0xff]
    %v132 = vld [vmem:[%s1 + $0x358] sm:$0xff]
    %v133 = vld [vmem:[%s1 + $0x360] sm:$0xff]
    %v134 = vld [vmem:[%s1 + $0x368] sm:$0xff]
    %v135 = vld [vmem:[%s1 + $0x370] sm:$0xff]
    %v136 = vld [vmem:[%s1 + $0x378] sm:$0xff]
    %v137 = vld [vmem:[%s1 + $0x380] sm:$0xff]
    %v138 = vld [vmem:[%s1 + $0x388] sm:$0xff]
    %v139 = vld [vmem:[%s1 + $0x390] sm:$0xff]
    %v140 = vld [vmem:[%s1 + $0x398] sm:$0xff]
    %v141 = vld [vmem:[%s1 + $0x3a0] sm:$0xff]
    %v142 = vld [vmem:[%s1 + $0x3a8] sm:$0xff]
    %v143 = vld [vmem:[%s1 + $0x3b0] sm:$0xff]
    %v144 = vld [vmem:[%s1 + $0x3b8] sm:$0xff]
    %v145 = vld [vmem:[%s1 + $0x3c0] sm:$0xff]
    %v146 = vld [vmem:[%s1 + $0x3c8] sm:$0xff]
    %v147 = vld [vmem:[%s1 + $0x3d0] sm:$0xff]
    %v148 = vld [vmem:[%s1 + $0x3d8] sm:$0xff]
    %v149 = vld [vmem:[%s1 + $0x3e0] sm:$0xff]
    %v150 = vld [vmem:[%s1 + $0x3e8] sm:$0xff]
    %v151 = vld [vmem:[%s1 + $0x3f0] sm:$0xff]
    %v152 = vld [vmem:[%s1 + $0x3f8] sm:$0xff]
    %v153 = vld [vmem:[%s1 + $0x400] sm:$0xff]
    %v154 = vld [vmem:[%s1 + $0x408] sm:$0xff]
    %v155 = vld [vmem:[%s1 + $0x410] sm:$0xff]
    %v156 = vld [vmem:[%s1 + $0x418] sm:$0xff]
    %v157 = vld [vmem:[%s1 + $0x420] sm:$0xff]
    %v158 = vld [vmem:[%s1 + $0x428] sm:$0xff]
    %v159 = vld [vmem:[%s1 + $0x430] sm:$0xff]
    %v160 = vld [vmem:[%s1 + $0x438] sm:$0xff]
    %v161 = vld [vmem:[%s1 + $0x440] sm:$0xff]
    %v162 = vld [vmem:[%s1 + $0x448] sm:$0xff]
    %v163 = vld [vmem:[%s1 + $0x450] sm:$0xff]
    %v164 = vld [vmem:[%s1 + $0x458] sm:$0xff]
    %v165 = vld [vmem:[%s1 + $0x460] sm:$0xff]
    %v166 = vld [vmem:[%s1 + $0x468] sm:$0xff]
    %v167 = vld [vmem:[%s1 + $0x470] sm:$0xff]
    %v168 = vld [vmem:[%s1 + $0x478] sm:$0xff]
    %v169 = vld [vmem:[%s1 + $0x480] sm:$0xff]
    %v170 = vld [vmem:[%s1 + $0x488] sm:$0xff]
    %v171 = vld [vmem:[%s1 + $0x490] sm:$0xff]
    %v172 = vld [vmem:[%s1 + $0x498] sm:$0xff]
    %v173 = vld [vmem:[%s1 + $0x4a0] sm:$0xff]
    %v174 = vld [vmem:[%s1 + $0x4a8] sm:$0xff]
    %v175 = vld [vmem:[%s1 + $0x4b0] sm:$0xff]
    %v176 = vld [vmem:[%s1 + $0x4b8] sm:$0xff]
    %v177 = vld [vmem:[%s1 + $0x4c0] sm:$0xff]
    %v178 = vld [vmem:[%s1 + $0x4c8] sm:$0xff]
    %v179 = vld [vmem:[%s1 + $0x4d0] sm:$0xff]
    %v180 = vld [vmem:[%s1 + $0x4d8] sm:$0xff]
    %v181 = vld [vmem:[%s1 + $0x4e0] sm:$0xff]
    %v182 = vld [vmem:[%s1 + $0x4e8] sm:$0xff]
    %v183 = vld [vmem:[%s1 + $0x4f0] sm:$0xff]
    %v184 = vld [vmem:[%s1 + $0x4f8] sm:$0xff]
    %v185 = vld [vmem:[%s1 + $0x500] sm:$0xff]
    %v186 = vld [vmem:[%s1 + $0x508] sm:$0xff]
    %v187 = vld [vmem:[%s1 + $0x510] sm:$0xff]
    %v188 = vld [vmem:[%s1 + $0x518] sm:$0xff]
    %v189 = vld [vmem:[%s1 + $0x520] sm:$0xff]
    %v190 = vld [vmem:[%s1 + $0x528] sm:$0xff]
    %v191 = vld [vmem:[%s1 + $0x530] sm:$0xff]
    %v192 = vld [vmem:[%s1 + $0x538] sm:$0xff]
    %v193 = vld [vmem:[%s1 + $0x540] sm:$0xff]
    %v194 = vld [vmem:[%s1 + $0x548] sm:$0xff]
    %v195 = vld [vmem:[%s1 + $0x550] sm:$0xff]
    %v196 = vld [vmem:[%s1 + $0x558] sm:$0xff]
    %v197 = vld [vmem:[%s1 + $0x560] sm:$0xff]
    %v198 = vld [vmem:[%s1 + $0x568] sm:$0xff]
    %v199 = vld [vmem:[%s1 + $0x570] sm:$0xff]
    %v200 = vld [vmem:[%s1 + $0x578] sm:$0xff]
    %v201 = vld [vmem:[%s1 + $0x580] sm:$0xff]
    %v202 = vld [vmem:[%s1 + $0x588] sm:$0xff]
    %v203 = vld [vmem:[%s1 + $0x590] sm:$0xff]
    %v204 = vld [vmem:[%s1 + $0x598] sm:$0xff]
    %v205 = vld [vmem:[%s1 + $0x5a0] sm:$0xff]
    %v206 = vld [vmem:[%s1 + $0x5a8] sm:$0xff]
    %v207 = vld [vmem:[%s1 + $0x5b0] sm:$0xff]
    %v208 = vld [vmem:[%s1 + $0x5b8] sm:$0xff]
    %v209 = vld [vmem:[%s1 + $0x5c0] sm:$0xff]
    %v210 = vld [vmem:[%s1 + $0x5c8] sm:$0xff]
    %v211 = vld [vmem:[%s1 + $0x5d0] sm:$0xff]
    %v212 = vld [vmem:[%s1 + $0x5d8] sm:$0xff]
    %v213 = vld [vmem:[%s1 + $0x5e0] sm:$0xff]
    %v214 = vld [vmem:[%s1 + $0x5e8] sm:$0xff]
    %v215 = vld [vmem:[%s1 + $0x5f0] sm:$0xff]
    %v216 = vld [vmem:[%s1 + $0x5f8] sm:$0xff]
    %v217 = vld [vmem:[%s1 + $0x600] sm:$0xff]
    %v218 = vld [vmem:[%s1 + $0x608] sm:$0xff]
    %v219 = vld [vmem:[%s1 + $0x610] sm:$0xff]
    %v220 = vld [vmem:[%s1 + $0x618] sm:$0xff]
    %v221 = vld [vmem:[%s1 + $0x620] sm:$0xff]
    %v222 = vld [vmem:[%s1 + $0x628] sm:$0xff]
    %v223 = vld [vmem:[%s1 + $0x630] sm:$0xff]
    %v224 = vld [vmem:[%s1 + $0x638] sm:$0xff]
    %v225 = vld [vmem:[%s1 + $0x640] sm:$0xff]
    %v226 = vld [vmem:[%s1 + $0x648] sm:$0xff]
    %v227 = vld [vmem:[%s1 + $0x650] sm:$0xff]
    %v228 = vld [vmem:[%s1 + $0x658] sm:$0xff]
    %v229 = vld [vmem:[%s1 + $0x660] sm:$0xff]
    %v230 = vld [vmem:[%s1 + $0x668] sm:$0xff]
    %v231 = vld [vmem:[%s1 + $0x670] sm:$0xff]
    %v232 = vld [vmem:[%s1 + $0x678] sm:$0xff]
    %v233 = vld [vmem:[%s1 + $0x680] sm:$0xff]
    %v234 = vld [vmem:[%s1 + $0x688] sm:$0xff]
    %v235 = vld [vmem:[%s1 + $0x690] sm:$0xff]
    %v236 = vld [vmem:[%s1 + $0x698] sm:$0xff]
    %v237 = vld [vmem:[%s1 + $0x6a0] sm:$0xff]
    %v238 = vld [vmem:[%s1 + $0x6a8] sm:$0xff]
    %v239 = vld [vmem:[%s1 + $0x6b0] sm:$0xff]
    %v240 = vld [vmem:[%s1 + $0x6b8] sm:$0xff]
    %v241 = vld [vmem:[%s1 + $0x6c0] sm:$0xff]
    %v242 = vld [vmem:[%s1 + $0x6c8] sm:$0xff]
    %v243 = vld [vmem:[%s1 + $0x6d0] sm:$0xff]
    %v244 = vld [vmem:[%s1 + $0x6d8] sm:$0xff]
    %v245 = vld [vmem:[%s1 + $0x6e0] sm:$0xff]
    %v246 = vld [vmem:[%s1 + $0x6e8] sm:$0xff]
    %v247 = vld [vmem:[%s1 + $0x6f0] sm:$0xff]
    %v248 = vld [vmem:[%s1 + $0x6f8] sm:$0xff]
    %v249 = vld [vmem:[%s1 + $0x700] sm:$0xff]
    %v250 = vld [vmem:[%s1 + $0x708] sm:$0xff]
    %v251 = vld [vmem:[%s1 + $0x710] sm:$0xff]
    %v252 = vld [vmem:[%s1 + $0x718] sm:$0xff]
    %v253 = vld [vmem:[%s1 + $0x720] sm:$0xff]
    %v254 = vld [vmem:[%s1 + $0x728] sm:$0xff]
    %v255 = vld [vmem:[%s1 + $0x730] sm:$0xff]
    %v256 = vld [vmem:[%s1 + $0x738] sm:$0xff]
    %v257 = vld [vmem:[%s1 + $0x740] sm:$0xff]
    %v258 = vld [vmem:[%s1 + $0x748] sm:$0xff]
    %v259 = vld [vmem:[%s1 + $0x750] sm:$0xff]
    %v260 = vld [vmem:[%s1 + $0x758] sm:$0xff]
    %v261 = vld [vmem:[%s1 + $0x760] sm:$0xff]
    %v262 = vld [vmem:[%s1 + $0x768] sm:$0xff]
    %v263 = vld [vmem:[%s1 + $0x770] sm:$0xff]
    %v264 = vld [vmem:[%s1 + $0x778] sm:$0xff]
    %v265 = vld [vmem:[%s1 + $0x780] sm:$0xff]
    %v266 = vld [vmem:[%s1 + $0x788] sm:$0xff]
    %v267 = vld [vmem:[%s1 + $0x790] sm:$0xff]
    %v268 = vld [vmem:[%s1 + $0x798] sm:$0xff]
    %v269 = vld [vmem:[%s1 + $0x7a0] sm:$0xff]
    %v270 = vld [vmem:[%s1 + $0x7a8] sm:$0xff]
    %v271 = vld [vmem:[%s1 + $0x7b0] sm:$0xff]
    %v272 = vld [vmem:[%s1 + $0x7b8] sm:$0xff]
    %v273 = vld [vmem:[%s1 + $0x7c0] sm:$0xff]
    %v274 = vld [vmem:[%s1 + $0x7c8] sm:$0xff]
    %v275 = vld [vmem:[%s1 + $0x7d0] sm:$0xff]
    %v276 = vld [vmem:[%s1 + $0x7d8] sm:$0xff]
    %v277 = vld [vmem:[%s1 + $0x7e0] sm:$0xff]
    %v278 = vld [vmem:[%s1 + $0x7e8] sm:$0xff]
    %v279 = vld [vmem:[%s1 + $0x7f0] sm:$0xff]
    %v280 = vld [vmem:[%s1 + $0x7f8] sm:$0xff]
    %v281 = vld [vmem:[%s1 + $0x800] sm:$0xff]
    %v282 = vld [vmem:[%s1 + $0x808] sm:$0xff]
    %v283 = vld [vmem:[%s1 + $0x810] sm:$0xff]
    %v284 = vld [vmem:[%s1 + $0x818] sm:$0xff]
    %v285 = vld [vmem:[%s1 + $0x820] sm:$0xff]
    %v286 = vld [vmem:[%s1 + $0x828] sm:$0xff]
    %v287 = vld [vmem:[%s1 + $0x830] sm:$0xff]
    %v288 = vld [vmem:[%s1 + $0x838] sm:$0xff]
    %v289 = vld [vmem:[%s1 + $0x840] sm:$0xff]
    %v290 = vld [vmem:[%s1 + $0x848] sm:$0xff]
    %v291 = vld [vmem:[%s1 + $0x850] sm:$0xff]
    %v292 = vld [vmem:[%s1 + $0x858] sm:$0xff]
    %v293 = vld [vmem:[%s1 + $0x860] sm:$0xff]
    %v294 = vld [vmem:[%s1 + $0x868] sm:$0xff]
    %v295 = vld [vmem:[%s1 + $0x870] sm:$0xff]
    %v296 = vld [vmem:[%s1 + $0x878] sm:$0xff]
    %v297 = vld [vmem:[%s1 + $0x880] sm:$0xff]
    %v298 = vld [vmem:[%s1 + $0x888] sm:$0xff]
    %v299 = vld [vmem:[%s1 + $0x890] sm:$0xff]
    %v300 = vld [vmem:[%s1 + $0x898] sm:$0xff]
    %v301 = vld [vmem:[%s1 + $0x8a0] sm:$0xff]
    %v302 = vld [vmem:[%s1 + $0x8a8] sm:$0xff]
    %v303 = vld [vmem:[%s1 + $0x8b0] sm:$0xff]
    %v304 = vld [vmem:[%s1 + $0x8b8] sm:$0xff]
    %v305 = vld [vmem:[%s1 + $0x8c0] sm:$0xff]
    %v306 = vld [vmem:[%s1 + $0x8c8] sm:$0xff]
    %v307 = vld [vmem:[%s1 + $0x8d0] sm:$0xff]
    %v308 = vld [vmem:[%s1 + $0x8d8] sm:$0xff]
    %v309 = vld [vmem:[%s1 + $0x8e0] sm:$0xff]
    %v310 = vld [vmem:[%s1 + $0x8e8] sm:$0xff]
    %v311 = vld [vmem:[%s1 + $0x8f0] sm:$0xff]
    %v312 = vld [vmem:[%s1 + $0x8f8] sm:$0xff]
    %v313 = vld [vmem:[%s1 + $0x900] sm:$0xff]
    %v314 = vld [vmem:[%s1 + $0x908] sm:$0xff]
    %v315 = vld [vmem:[%s1 + $0x910] sm:$0xff]
    %v316 = vld [vmem:[%s1 + $0x918] sm:$0xff]
    %v317 = vld [vmem:[%s1 + $0x920] sm:$0xff]
    %v318 = vld [vmem:[%s1 + $0x928] sm:$0xff]
    %v319 = vld [vmem:[%s1 + $0x930] sm:$0xff]
    %v320 = vld [vmem:[%s1 + $0x938] sm:$0xff]
    %v321 = vld [vmem:[%s1 + $0x940] sm:$0xff]
    %v322 = vld [vmem:[%s1 + $0x948] sm:$0xff]
    %v323 = vld [vmem:[%s1 + $0x950] sm:$0xff]
    %v324 = vld [vmem:[%s1 + $0x958] sm:$0xff]
    %v325 = vld [vmem:[%s1 + $0x960] sm:$0xff]
    %v326 = vld [vmem:[%s1 + $0x968] sm:$0xff]
    %v327 = vld [vmem:[%s1 + $0x970] sm:$0xff]
    %v328 = vld [vmem:[%s1 + $0x978] sm:$0xff]
    %v329 = vld [vmem:[%s1 + $0x980] sm:$0xff]
    %v330 = vld [vmem:[%s1 + $0x988] sm:$0xff]
    %v331 = vld [vmem:[%s1 + $0x990] sm:$0xff]
    %v332 = vld [vmem:[%s1 + $0x998] sm:$0xff]
    %v333 = vld [vmem:[%s1 + $0x9a0] sm:$0xff]
    %v334 = vld [vmem:[%s1 + $0x9a8] sm:$0xff]
    %v335 = vld [vmem:[%s1 + $0x9b0] sm:$0xff]
    %v336 = vld [vmem:[%s1 + $0x9b8] sm:$0xff]
    %v337 = vld [vmem:[%s1 + $0x9c0] sm:$0xff]
    %v338 = vld [vmem:[%s1 + $0x9c8] sm:$0xff]
    %v339 = vld [vmem:[%s1 + $0x9d0] sm:$0xff]
    %v340 = vld [vmem:[%s1 + $0x9d8] sm:$0xff]
    %v341 = vld [vmem:[%s1 + $0x9e0] sm:$0xff]
    %v342 = vld [vmem:[%s1 + $0x9e8] sm:$0xff]
    %v343 = vld [vmem:[%s1 + $0x9f0] sm:$0xff]
    %v344 = vld [vmem:[%s1 + $0x9f8] sm:$0xff]
    %v345 = vld [vmem:[%s1 + $0xa00] sm:$0xff]
    %v346 = vld [vmem:[%s1 + $0xa08] sm:$0xff]
    %v347 = vld [vmem:[%s1 + $0xa10] sm:$0xff]
    %v348 = vld [vmem:[%s1 + $0xa18] sm:$0xff]
    %v349 = vld [vmem:[%s2] sm:$0x3]
    %v351 = vlaneseq
    %v352 = vshrl.u32 %v351, 7
    %v353 = vsub.s32 0, %v352
    %v354 = vrot.slane %v349, %v353
    %v355 = vlaneseq
    %v356 = vshrl.u32 %v355, 7
    %v357 = vsub.s32 1, %v356
    %v358 = vrot.slane %v349, %v357
    %v364 = vcombine.high %v22, %v22
    %v366 = vunpack.c.l.s4 1966171168
    %v367 = vunpack.c.0.s8 %v366
    %v368 = vlaneseq
    %v369 = vshrl.u32 %v368, 7
    %v370 = vsub.s32 %v367, %v369
    %v371 = vrot.slane %v22, %v370
    %v373 = vunpack.c.l.s4 1966171168
    %v374 = vunpack.c.0.s8 %v373
    %v375 = vlaneseq
    %v376 = vshrl.u32 %v375, 7
    %v377 = vsub.s32 %v374, %v376
    %v378 = vrot.slane %v364, %v377
    %v379 = vcombine.high %v371, %v371
    %v380 = vcombine.high %v378, %v378
    %v382 = vunpack.c.l.s4 1966171168
    %v383 = vunpack.c.0.s8 %v382
    %v384 = vlaneseq
    %v385 = vshrl.u32 %v384, 7
    %v386 = vsub.s32 %v383, %v385
    %v387 = vrot.slane %v371, %v386
    %v389 = vunpack.c.l.s4 1966171168
    %v390 = vunpack.c.0.s8 %v389
    %v391 = vlaneseq
    %v392 = vshrl.u32 %v391, 7
    %v393 = vsub.s32 %v390, %v392
    %v394 = vrot.slane %v378, %v393
    %v396 = vunpack.c.l.s4 1966171168
    %v397 = vunpack.c.0.s8 %v396
    %v398 = vlaneseq
    %v399 = vshrl.u32 %v398, 7
    %v400 = vsub.s32 %v397, %v399
    %v401 = vrot.slane %v379, %v400
    %v403 = vunpack.c.l.s4 1966171168
    %v404 = vunpack.c.0.s8 %v403
    %v405 = vlaneseq
    %v406 = vshrl.u32 %v405, 7
    %v407 = vsub.s32 %v404, %v406
    %v408 = vrot.slane %v380, %v407
    %v409 = vcombine.high %v387, %v387
    %v410 = vcombine.high %v394, %v394
    %v411 = vcombine.high %v401, %v401
    %v412 = vcombine.high %v408, %v408
    %v413 = vcombine.high %v23, %v23
    %v415 = vunpack.c.l.s4 1966171168
    %v416 = vunpack.c.0.s8 %v415
    %v417 = vlaneseq
    %v418 = vshrl.u32 %v417, 7
    %v419 = vsub.s32 %v416, %v418
    %v420 = vrot.slane %v23, %v419
    %v422 = vunpack.c.l.s4 1966171168
    %v423 = vunpack.c.0.s8 %v422
    %v424 = vlaneseq
    %v425 = vshrl.u32 %v424, 7
    %v426 = vsub.s32 %v423, %v425
    %v427 = vrot.slane %v413, %v426
    %v428 = vcombine.high %v420, %v420
    %v429 = vcombine.high %v427, %v427
    %v431 = vunpack.c.l.s4 1966171168
    %v432 = vunpack.c.0.s8 %v431
    %v433 = vlaneseq
    %v434 = vshrl.u32 %v433, 7
    %v435 = vsub.s32 %v432, %v434
    %v436 = vrot.slane %v420, %v435
    %v438 = vunpack.c.l.s4 1966171168
    %v439 = vunpack.c.0.s8 %v438
    %v440 = vlaneseq
    %v441 = vshrl.u32 %v440, 7
    %v442 = vsub.s32 %v439, %v441
    %v443 = vrot.slane %v427, %v442
    %v445 = vunpack.c.l.s4 1966171168
    %v446 = vunpack.c.0.s8 %v445
    %v447 = vlaneseq
    %v448 = vshrl.u32 %v447, 7
    %v449 = vsub.s32 %v446, %v448
    %v450 = vrot.slane %v428, %v449
    %v452 = vunpack.c.l.s4 1966171168
    %v453 = vunpack.c.0.s8 %v452
    %v454 = vlaneseq
    %v455 = vshrl.u32 %v454, 7
    %v456 = vsub.s32 %v453, %v455
    %v457 = vrot.slane %v429, %v456
    %v458 = vcombine.high %v436, %v436
    %v459 = vcombine.high %v443, %v443
    %v460 = vcombine.high %v450, %v450
    %v461 = vcombine.high %v457, %v457
    %v462 = vcombine.high %v24, %v24
    %v464 = vunpack.c.l.s4 1966171168
    %v465 = vunpack.c.0.s8 %v464
    %v466 = vlaneseq
    %v467 = vshrl.u32 %v466, 7
    %v468 = vsub.s32 %v465, %v467
    %v469 = vrot.slane %v24, %v468
    %v471 = vunpack.c.l.s4 1966171168
    %v472 = vunpack.c.0.s8 %v471
    %v473 = vlaneseq
    %v474 = vshrl.u32 %v473, 7
    %v475 = vsub.s32 %v472, %v474
    %v476 = vrot.slane %v462, %v475
    %v477 = vcombine.high %v469, %v469
    %v479 = vunpack.c.l.s4 1966171168
    %v480 = vunpack.c.0.s8 %v479
    %v481 = vlaneseq
    %v482 = vshrl.u32 %v481, 7
    %v483 = vsub.s32 %v480, %v482
    %v484 = vrot.slane %v469, %v483
    %v486 = vunpack.c.l.s4 1966171168
    %v487 = vunpack.c.0.s8 %v486
    %v488 = vlaneseq
    %v489 = vshrl.u32 %v488, 7
    %v490 = vsub.s32 %v487, %v489
    %v491 = vrot.slane %v476, %v490
    %v493 = vunpack.c.l.s4 1966171168
    %v494 = vunpack.c.0.s8 %v493
    %v495 = vlaneseq
    %v496 = vshrl.u32 %v495, 7
    %v497 = vsub.s32 %v494, %v496
    %v498 = vrot.slane %v477, %v497
    %v499 = vcombine.high %v484, %v484
    %v500 = vcombine.high %v498, %v498
    %v845 = vunpack.c.l.b16 %v25
    %v846 = vunpack.c.h.b16 %v25
    %v847 = vunpack.c.l.b16 %v26
    %v848 = vunpack.c.h.b16 %v26
    %v849 = vunpack.c.l.b16 %v27
    %v850 = vunpack.c.h.b16 %v27
    %v851 = vunpack.c.l.b16 %v28
    %v852 = vunpack.c.h.b16 %v28
    %v853 = vunpack.c.l.b16 %v29
    %v854 = vunpack.c.h.b16 %v29
    %v855 = vunpack.c.l.b16 %v30
    %v856 = vunpack.c.h.b16 %v30
    %v857 = vunpack.c.l.b16 %v31
    %v858 = vunpack.c.h.b16 %v31
    %v859 = vunpack.c.l.b16 %v32
    %v860 = vunpack.c.h.b16 %v32
    %v861 = vunpack.c.l.b16 %v33
    %v862 = vunpack.c.h.b16 %v33
    %v863 = vunpack.c.l.b16 %v34
    %v864 = vunpack.c.h.b16 %v34
    %v865 = vunpack.c.l.b16 %v35
    %v866 = vunpack.c.h.b16 %v35
    %v867 = vunpack.c.l.b16 %v36
    %v868 = vunpack.c.h.b16 %v36
    %v869 = vunpack.c.l.b16 %v37
    %v870 = vunpack.c.h.b16 %v37
    %v871 = vunpack.c.l.b16 %v38
    %v872 = vunpack.c.h.b16 %v38
    %v873 = vunpack.c.l.b16 %v39
    %v874 = vunpack.c.h.b16 %v39
    %v875 = vunpack.c.l.b16 %v40
    %v876 = vunpack.c.h.b16 %v40
    %v877 = vunpack.c.l.b16 %v41
    %v878 = vunpack.c.h.b16 %v41
    %v879 = vunpack.c.l.b16 %v42
    %v880 = vunpack.c.h.b16 %v42
    %v881 = vunpack.c.l.b16 %v43
    %v882 = vunpack.c.h.b16 %v43
    %v883 = vunpack.c.l.b16 %v44
    %v884 = vunpack.c.h.b16 %v44
    %v885 = vunpack.c.l.b16 %v45
    %v886 = vunpack.c.h.b16 %v45
    %v887 = vunpack.c.l.b16 %v46
    %v888 = vunpack.c.h.b16 %v46
    %v889 = vunpack.c.l.b16 %v47
    %v890 = vunpack.c.h.b16 %v47
    %v891 = vunpack.c.l.b16 %v48
    %v892 = vunpack.c.h.b16 %v48
    %v893 = vunpack.c.l.b16 %v49
    %v894 = vunpack.c.h.b16 %v49
    %v895 = vunpack.c.l.b16 %v50
    %v896 = vunpack.c.h.b16 %v50
    %v897 = vunpack.c.l.b16 %v51
    %v898 = vunpack.c.h.b16 %v51
    %v899 = vunpack.c.l.b16 %v52
    %v900 = vunpack.c.h.b16 %v52
    %v901 = vunpack.c.l.b16 %v53
    %v902 = vunpack.c.h.b16 %v53
    %v903 = vunpack.c.l.b16 %v54
    %v904 = vunpack.c.h.b16 %v54
    %v905 = vunpack.c.l.b16 %v55
    %v906 = vunpack.c.h.b16 %v55
    %v907 = vunpack.c.l.b16 %v56
    %v908 = vunpack.c.h.b16 %v56
    %v909 = vunpack.c.l.b16 %v57
    %v910 = vunpack.c.h.b16 %v57
    %v911 = vunpack.c.l.b16 %v58
    %v912 = vunpack.c.h.b16 %v58
    %v913 = vunpack.c.l.b16 %v59
    %v914 = vunpack.c.h.b16 %v59
    %v915 = vunpack.c.l.b16 %v60
    %v916 = vunpack.c.h.b16 %v60
    %v917 = vunpack.c.l.b16 %v61
    %v918 = vunpack.c.h.b16 %v61
    %v919 = vunpack.c.l.b16 %v62
    %v920 = vunpack.c.h.b16 %v62
    %v921 = vunpack.c.l.b16 %v63
    %v922 = vunpack.c.h.b16 %v63
    %v923 = vunpack.c.l.b16 %v64
    %v924 = vunpack.c.h.b16 %v64
    %v925 = vunpack.c.l.b16 %v65
    %v926 = vunpack.c.h.b16 %v65
    %v927 = vunpack.c.l.b16 %v66
    %v928 = vunpack.c.h.b16 %v66
    %v929 = vunpack.c.l.b16 %v67
    %v930 = vunpack.c.h.b16 %v67
    %v931 = vunpack.c.l.b16 %v68
    %v932 = vunpack.c.h.b16 %v68
    %v933 = vunpack.c.l.b16 %v69
    %v934 = vunpack.c.h.b16 %v69
    %v935 = vunpack.c.l.b16 %v70
    %v936 = vunpack.c.h.b16 %v70
    %v937 = vunpack.c.l.b16 %v71
    %v938 = vunpack.c.h.b16 %v71
    %v939 = vunpack.c.l.b16 %v72
    %v940 = vunpack.c.h.b16 %v72
    %v941 = vunpack.c.l.b16 %v73
    %v942 = vunpack.c.h.b16 %v73
    %v943 = vunpack.c.l.b16 %v74
    %v944 = vunpack.c.h.b16 %v74
    %v945 = vunpack.c.l.b16 %v75
    %v946 = vunpack.c.h.b16 %v75
    %v947 = vunpack.c.l.b16 %v76
    %v948 = vunpack.c.h.b16 %v76
    %v949 = vunpack.c.l.b16 %v77
    %v950 = vunpack.c.h.b16 %v77
    %v951 = vunpack.c.l.b16 %v78
    %v952 = vunpack.c.h.b16 %v78
    %v953 = vunpack.c.l.b16 %v79
    %v954 = vunpack.c.h.b16 %v79
    %v955 = vunpack.c.l.b16 %v80
    %v956 = vunpack.c.h.b16 %v80
    %v957 = vunpack.c.l.b16 %v81
    %v958 = vunpack.c.h.b16 %v81
    %v959 = vunpack.c.l.b16 %v82
    %v960 = vunpack.c.h.b16 %v82
    %v961 = vunpack.c.l.b16 %v83
    %v962 = vunpack.c.h.b16 %v83
    %v963 = vunpack.c.l.b16 %v84
    %v964 = vunpack.c.h.b16 %v84
    %v965 = vunpack.c.l.b16 %v85
    %v966 = vunpack.c.h.b16 %v85
    %v967 = vunpack.c.l.b16 %v86
    %v968 = vunpack.c.h.b16 %v86
    %v969 = vunpack.c.l.b16 %v87
    %v970 = vunpack.c.h.b16 %v87
    %v971 = vunpack.c.l.b16 %v88
    %v972 = vunpack.c.h.b16 %v88
    %v973 = vunpack.c.l.b16 %v89
    %v974 = vunpack.c.h.b16 %v89
    %v975 = vunpack.c.l.b16 %v90
    %v976 = vunpack.c.h.b16 %v90
    %v977 = vunpack.c.l.b16 %v91
    %v978 = vunpack.c.h.b16 %v91
    %v979 = vunpack.c.l.b16 %v92
    %v980 = vunpack.c.h.b16 %v92
    %v981 = vunpack.c.l.b16 %v93
    %v982 = vunpack.c.h.b16 %v93
    %v983 = vunpack.c.l.b16 %v94
    %v984 = vunpack.c.h.b16 %v94
    %v985 = vunpack.c.l.b16 %v95
    %v986 = vunpack.c.h.b16 %v95
    %v987 = vunpack.c.l.b16 %v96
    %v988 = vunpack.c.h.b16 %v96
    %v989 = vunpack.c.l.b16 %v97
    %v990 = vunpack.c.h.b16 %v97
    %v991 = vunpack.c.l.b16 %v98
    %v992 = vunpack.c.h.b16 %v98
    %v993 = vunpack.c.l.b16 %v99
    %v994 = vunpack.c.h.b16 %v99
    %v995 = vunpack.c.l.b16 %v100
    %v996 = vunpack.c.h.b16 %v100
    %v997 = vunpack.c.l.b16 %v101
    %v998 = vunpack.c.h.b16 %v101
    %v999 = vunpack.c.l.b16 %v102
    %v1000 = vunpack.c.h.b16 %v102
    %v1001 = vunpack.c.l.b16 %v103
    %v1002 = vunpack.c.h.b16 %v103
    %v1003 = vunpack.c.l.b16 %v104
    %v1004 = vunpack.c.h.b16 %v104
    %v1005 = vunpack.c.l.b16 %v105
    %v1006 = vunpack.c.h.b16 %v105
    %v1007 = vunpack.c.l.b16 %v106
    %v1008 = vunpack.c.h.b16 %v106
    %v1009 = vunpack.c.l.b16 %v107
    %v1010 = vunpack.c.h.b16 %v107
    %v1011 = vunpack.c.l.b16 %v108
    %v1012 = vunpack.c.h.b16 %v108
    %v1013 = vunpack.c.l.b16 %v109
    %v1014 = vunpack.c.h.b16 %v109
    %v1015 = vunpack.c.l.b16 %v110
    %v1016 = vunpack.c.h.b16 %v110
    %v1017 = vunpack.c.l.b16 %v111
    %v1018 = vunpack.c.h.b16 %v111
    %v1019 = vunpack.c.l.b16 %v112
    %v1020 = vunpack.c.h.b16 %v112
    %v1021 = vunpack.c.l.b16 %v113
    %v1022 = vunpack.c.h.b16 %v113
    %v1023 = vunpack.c.l.b16 %v114
    %v1024 = vunpack.c.h.b16 %v114
    %v1025 = vunpack.c.l.b16 %v115
    %v1026 = vunpack.c.h.b16 %v115
    %v1027 = vunpack.c.l.b16 %v116
    %v1028 = vunpack.c.h.b16 %v116
    %v1029 = vunpack.c.l.b16 %v117
    %v1030 = vunpack.c.h.b16 %v117
    %v1031 = vunpack.c.l.b16 %v118
    %v1032 = vunpack.c.h.b16 %v118
    %v1033 = vunpack.c.l.b16 %v119
    %v1034 = vunpack.c.h.b16 %v119
    %v1035 = vunpack.c.l.b16 %v120
    %v1036 = vunpack.c.h.b16 %v120
    %v1037 = vunpack.c.l.b16 %v121
    %v1038 = vunpack.c.h.b16 %v121
    %v1039 = vunpack.c.l.b16 %v122
    %v1040 = vunpack.c.h.b16 %v122
    %v1041 = vunpack.c.l.b16 %v123
    %v1042 = vunpack.c.h.b16 %v123
    %v1043 = vunpack.c.l.b16 %v124
    %v1044 = vunpack.c.h.b16 %v124
    %v1045 = vunpack.c.l.b16 %v125
    %v1046 = vunpack.c.h.b16 %v125
    %v1047 = vunpack.c.l.b16 %v126
    %v1048 = vunpack.c.h.b16 %v126
    %v1049 = vunpack.c.l.b16 %v127
    %v1050 = vunpack.c.h.b16 %v127
    %v1051 = vunpack.c.l.b16 %v128
    %v1052 = vunpack.c.h.b16 %v128
    %v1053 = vunpack.c.l.b16 %v129
    %v1054 = vunpack.c.h.b16 %v129
    %v1055 = vunpack.c.l.b16 %v130
    %v1056 = vunpack.c.h.b16 %v130
    %v1057 = vunpack.c.l.b16 %v131
    %v1058 = vunpack.c.h.b16 %v131
    %v1059 = vunpack.c.l.b16 %v132
    %v1060 = vunpack.c.h.b16 %v132
    %v1061 = vunpack.c.l.b16 %v133
    %v1062 = vunpack.c.h.b16 %v133
    %v1063 = vunpack.c.l.b16 %v134
    %v1064 = vunpack.c.h.b16 %v134
    %v1065 = vunpack.c.l.b16 %v135
    %v1066 = vunpack.c.h.b16 %v135
    %v1067 = vunpack.c.l.b16 %v136
    %v1068 = vunpack.c.h.b16 %v136
    %v1069 = vunpack.c.l.b16 %v137
    %v1070 = vunpack.c.h.b16 %v137
    %v1071 = vunpack.c.l.b16 %v138
    %v1072 = vunpack.c.h.b16 %v138
    %v1073 = vunpack.c.l.b16 %v139
    %v1074 = vunpack.c.h.b16 %v139
    %v1075 = vunpack.c.l.b16 %v140
    %v1076 = vunpack.c.h.b16 %v140
    %v1077 = vunpack.c.l.b16 %v141
    %v1078 = vunpack.c.h.b16 %v141
    %v1079 = vunpack.c.l.b16 %v142
    %v1080 = vunpack.c.h.b16 %v142
    %v1081 = vunpack.c.l.b16 %v143
    %v1082 = vunpack.c.h.b16 %v143
    %v1083 = vunpack.c.l.b16 %v144
    %v1084 = vunpack.c.h.b16 %v144
    %v1085 = vunpack.c.l.b16 %v145
    %v1086 = vunpack.c.h.b16 %v145
    %v1087 = vunpack.c.l.b16 %v146
    %v1088 = vunpack.c.h.b16 %v146
    %v1089 = vunpack.c.l.b16 %v147
    %v1090 = vunpack.c.h.b16 %v147
    %v1091 = vunpack.c.l.b16 %v148
    %v1092 = vunpack.c.h.b16 %v148
    %v1093 = vunpack.c.l.b16 %v149
    %v1094 = vunpack.c.h.b16 %v149
    %v1095 = vunpack.c.l.b16 %v150
    %v1096 = vunpack.c.h.b16 %v150
    %v1097 = vunpack.c.l.b16 %v151
    %v1098 = vunpack.c.h.b16 %v151
    %v1099 = vunpack.c.l.b16 %v152
    %v1100 = vunpack.c.h.b16 %v152
    %v1101 = vunpack.c.l.b16 %v153
    %v1102 = vunpack.c.h.b16 %v153
    %v1103 = vunpack.c.l.b16 %v154
    %v1104 = vunpack.c.h.b16 %v154
    %v1105 = vunpack.c.l.b16 %v155
    %v1106 = vunpack.c.h.b16 %v155
    %v1107 = vunpack.c.l.b16 %v156
    %v1108 = vunpack.c.h.b16 %v156
    %v1109 = vunpack.c.l.b16 %v157
    %v1110 = vunpack.c.h.b16 %v157
    %v1111 = vunpack.c.l.b16 %v158
    %v1112 = vunpack.c.h.b16 %v158
    %v1113 = vunpack.c.l.b16 %v159
    %v1114 = vunpack.c.h.b16 %v159
    %v1115 = vunpack.c.l.b16 %v160
    %v1116 = vunpack.c.h.b16 %v160
    %v1117 = vunpack.c.l.b16 %v161
    %v1118 = vunpack.c.h.b16 %v161
    %v1119 = vunpack.c.l.b16 %v162
    %v1120 = vunpack.c.h.b16 %v162
    %v1121 = vunpack.c.l.b16 %v163
    %v1122 = vunpack.c.h.b16 %v163
    %v1123 = vunpack.c.l.b16 %v164
    %v1124 = vunpack.c.h.b16 %v164
    %v1125 = vunpack.c.l.b16 %v165
    %v1126 = vunpack.c.h.b16 %v165
    %v1127 = vunpack.c.l.b16 %v166
    %v1128 = vunpack.c.h.b16 %v166
    %v1129 = vunpack.c.l.b16 %v167
    %v1130 = vunpack.c.h.b16 %v167
    %v1131 = vunpack.c.l.b16 %v168
    %v1132 = vunpack.c.h.b16 %v168
    %v1133 = vunpack.c.l.b16 %v169
    %v1134 = vunpack.c.h.b16 %v169
    %v1135 = vunpack.c.l.b16 %v170
    %v1136 = vunpack.c.h.b16 %v170
    %v1137 = vunpack.c.l.b16 %v171
    %v1138 = vunpack.c.h.b16 %v171
    %v1139 = vunpack.c.l.b16 %v172
    %v1140 = vunpack.c.h.b16 %v172
    %v1141 = vunpack.c.l.b16 %v173
    %v1142 = vunpack.c.h.b16 %v173
    %v1143 = vunpack.c.l.b16 %v174
    %v1144 = vunpack.c.h.b16 %v174
    %v1145 = vunpack.c.l.b16 %v175
    %v1146 = vunpack.c.h.b16 %v175
    %v1147 = vunpack.c.l.b16 %v176
    %v1148 = vunpack.c.h.b16 %v176
    %v1149 = vunpack.c.l.b16 %v177
    %v1150 = vunpack.c.h.b16 %v177
    %v1151 = vunpack.c.l.b16 %v178
    %v1152 = vunpack.c.h.b16 %v178
    %v1153 = vunpack.c.l.b16 %v179
    %v1154 = vunpack.c.h.b16 %v179
    %v1155 = vunpack.c.l.b16 %v180
    %v1156 = vunpack.c.h.b16 %v180
    %v1157 = vunpack.c.l.b16 %v181
    %v1158 = vunpack.c.h.b16 %v181
    %v1159 = vunpack.c.l.b16 %v182
    %v1160 = vunpack.c.h.b16 %v182
    %v1161 = vunpack.c.l.b16 %v183
    %v1162 = vunpack.c.h.b16 %v183
    %v1163 = vunpack.c.l.b16 %v184
    %v1164 = vunpack.c.h.b16 %v184
    %v1165 = vunpack.c.l.b16 %v185
    %v1166 = vunpack.c.h.b16 %v185
    %v1167 = vunpack.c.l.b16 %v186
    %v1168 = vunpack.c.h.b16 %v186
    %v1169 = vunpack.c.l.b16 %v187
    %v1170 = vunpack.c.h.b16 %v187
    %v1171 = vunpack.c.l.b16 %v188
    %v1172 = vunpack.c.h.b16 %v188
    %v1173 = vunpack.c.l.b16 %v189
    %v1174 = vunpack.c.h.b16 %v189
    %v1175 = vunpack.c.l.b16 %v190
    %v1176 = vunpack.c.h.b16 %v190
    %v1177 = vunpack.c.l.b16 %v191
    %v1178 = vunpack.c.h.b16 %v191
    %v1179 = vunpack.c.l.b16 %v192
    %v1180 = vunpack.c.h.b16 %v192
    %v1181 = vunpack.c.l.b16 %v193
    %v1182 = vunpack.c.h.b16 %v193
    %v1183 = vunpack.c.l.b16 %v194
    %v1184 = vunpack.c.h.b16 %v194
    %v1185 = vunpack.c.l.b16 %v195
    %v1186 = vunpack.c.h.b16 %v195
    %v1187 = vunpack.c.l.b16 %v196
    %v1188 = vunpack.c.h.b16 %v196
    %v1189 = vunpack.c.l.b16 %v197
    %v1190 = vunpack.c.h.b16 %v197
    %v1191 = vunpack.c.l.b16 %v198
    %v1192 = vunpack.c.h.b16 %v198
    %v1193 = vunpack.c.l.b16 %v199
    %v1194 = vunpack.c.h.b16 %v199
    %v1195 = vunpack.c.l.b16 %v200
    %v1196 = vunpack.c.h.b16 %v200
    %v1197 = vunpack.c.l.b16 %v201
    %v1198 = vunpack.c.h.b16 %v201
    %v1199 = vunpack.c.l.b16 %v202
    %v1200 = vunpack.c.h.b16 %v202
    %v1201 = vunpack.c.l.b16 %v203
    %v1202 = vunpack.c.h.b16 %v203
    %v1203 = vunpack.c.l.b16 %v204
    %v1204 = vunpack.c.h.b16 %v204
    %v1205 = vunpack.c.l.b16 %v205
    %v1206 = vunpack.c.h.b16 %v205
    %v1207 = vunpack.c.l.b16 %v206
    %v1208 = vunpack.c.h.b16 %v206
    %v1209 = vunpack.c.l.b16 %v207
    %v1210 = vunpack.c.h.b16 %v207
    %v1211 = vunpack.c.l.b16 %v208
    %v1212 = vunpack.c.h.b16 %v208
    %v1213 = vunpack.c.l.b16 %v209
    %v1214 = vunpack.c.h.b16 %v209
    %v1215 = vunpack.c.l.b16 %v210
    %v1216 = vunpack.c.h.b16 %v210
    %v1217 = vunpack.c.l.b16 %v211
    %v1218 = vunpack.c.h.b16 %v211
    %v1219 = vunpack.c.l.b16 %v212
    %v1220 = vunpack.c.h.b16 %v212
    %v1221 = vunpack.c.l.b16 %v213
    %v1222 = vunpack.c.h.b16 %v213
    %v1223 = vunpack.c.l.b16 %v214
    %v1224 = vunpack.c.h.b16 %v214
    %v1225 = vunpack.c.l.b16 %v215
    %v1226 = vunpack.c.h.b16 %v215
    %v1227 = vunpack.c.l.b16 %v216
    %v1228 = vunpack.c.h.b16 %v216
    %v1229 = vunpack.c.l.b16 %v217
    %v1230 = vunpack.c.h.b16 %v217
    %v1231 = vunpack.c.l.b16 %v218
    %v1232 = vunpack.c.h.b16 %v218
    %v1233 = vunpack.c.l.b16 %v219
    %v1234 = vunpack.c.h.b16 %v219
    %v1235 = vunpack.c.l.b16 %v220
    %v1236 = vunpack.c.h.b16 %v220
    %v1237 = vunpack.c.l.b16 %v221
    %v1238 = vunpack.c.h.b16 %v221
    %v1239 = vunpack.c.l.b16 %v222
    %v1240 = vunpack.c.h.b16 %v222
    %v1241 = vunpack.c.l.b16 %v223
    %v1242 = vunpack.c.h.b16 %v223
    %v1243 = vunpack.c.l.b16 %v224
    %v1244 = vunpack.c.h.b16 %v224
    %v1245 = vunpack.c.l.b16 %v225
    %v1246 = vunpack.c.h.b16 %v225
    %v1247 = vunpack.c.l.b16 %v226
    %v1248 = vunpack.c.h.b16 %v226
    %v1249 = vunpack.c.l.b16 %v227
    %v1250 = vunpack.c.h.b16 %v227
    %v1251 = vunpack.c.l.b16 %v228
    %v1252 = vunpack.c.h.b16 %v228
    %v1253 = vunpack.c.l.b16 %v229
    %v1254 = vunpack.c.h.b16 %v229
    %v1255 = vunpack.c.l.b16 %v230
    %v1256 = vunpack.c.h.b16 %v230
    %v1257 = vunpack.c.l.b16 %v231
    %v1258 = vunpack.c.h.b16 %v231
    %v1259 = vunpack.c.l.b16 %v232
    %v1260 = vunpack.c.h.b16 %v232
    %v1261 = vunpack.c.l.b16 %v233
    %v1262 = vunpack.c.h.b16 %v233
    %v1263 = vunpack.c.l.b16 %v234
    %v1264 = vunpack.c.h.b16 %v234
    %v1265 = vunpack.c.l.b16 %v235
    %v1266 = vunpack.c.h.b16 %v235
    %v1267 = vunpack.c.l.b16 %v236
    %v1268 = vunpack.c.h.b16 %v236
    %v1269 = vunpack.c.l.b16 %v237
    %v1270 = vunpack.c.h.b16 %v237
    %v1271 = vunpack.c.l.b16 %v238
    %v1272 = vunpack.c.h.b16 %v238
    %v1273 = vunpack.c.l.b16 %v239
    %v1274 = vunpack.c.h.b16 %v239
    %v1275 = vunpack.c.l.b16 %v240
    %v1276 = vunpack.c.h.b16 %v240
    %v1277 = vunpack.c.l.b16 %v241
    %v1278 = vunpack.c.h.b16 %v241
    %v1279 = vunpack.c.l.b16 %v242
    %v1280 = vunpack.c.h.b16 %v242
    %v1281 = vunpack.c.l.b16 %v243
    %v1282 = vunpack.c.h.b16 %v243
    %v1283 = vunpack.c.l.b16 %v244
    %v1284 = vunpack.c.h.b16 %v244
    %v1285 = vunpack.c.l.b16 %v245
    %v1286 = vunpack.c.h.b16 %v245
    %v1287 = vunpack.c.l.b16 %v246
    %v1288 = vunpack.c.h.b16 %v246
    %v1289 = vunpack.c.l.b16 %v247
    %v1290 = vunpack.c.h.b16 %v247
    %v1291 = vunpack.c.l.b16 %v248
    %v1292 = vunpack.c.h.b16 %v248
    %v1293 = vunpack.c.l.b16 %v249
    %v1294 = vunpack.c.h.b16 %v249
    %v1295 = vunpack.c.l.b16 %v250
    %v1296 = vunpack.c.h.b16 %v250
    %v1297 = vunpack.c.l.b16 %v251
    %v1298 = vunpack.c.h.b16 %v251
    %v1299 = vunpack.c.l.b16 %v252
    %v1300 = vunpack.c.h.b16 %v252
    %v1301 = vunpack.c.l.b16 %v253
    %v1302 = vunpack.c.h.b16 %v253
    %v1303 = vunpack.c.l.b16 %v254
    %v1304 = vunpack.c.h.b16 %v254
    %v1305 = vunpack.c.l.b16 %v255
    %v1306 = vunpack.c.h.b16 %v255
    %v1307 = vunpack.c.l.b16 %v256
    %v1308 = vunpack.c.h.b16 %v256
    %v1309 = vunpack.c.l.b16 %v257
    %v1310 = vunpack.c.h.b16 %v257
    %v1311 = vunpack.c.l.b16 %v258
    %v1312 = vunpack.c.h.b16 %v258
    %v1313 = vunpack.c.l.b16 %v259
    %v1314 = vunpack.c.h.b16 %v259
    %v1315 = vunpack.c.l.b16 %v260
    %v1316 = vunpack.c.h.b16 %v260
    %v1317 = vunpack.c.l.b16 %v261
    %v1318 = vunpack.c.h.b16 %v261
    %v1319 = vunpack.c.l.b16 %v262
    %v1320 = vunpack.c.h.b16 %v262
    %v1321 = vunpack.c.l.b16 %v263
    %v1322 = vunpack.c.h.b16 %v263
    %v1323 = vunpack.c.l.b16 %v264
    %v1324 = vunpack.c.h.b16 %v264
    %v1325 = vunpack.c.l.b16 %v265
    %v1326 = vunpack.c.h.b16 %v265
    %v1327 = vunpack.c.l.b16 %v266
    %v1328 = vunpack.c.h.b16 %v266
    %v1329 = vunpack.c.l.b16 %v267
    %v1330 = vunpack.c.h.b16 %v267
    %v1331 = vunpack.c.l.b16 %v268
    %v1332 = vunpack.c.h.b16 %v268
    %v1333 = vunpack.c.l.b16 %v269
    %v1334 = vunpack.c.h.b16 %v269
    %v1335 = vunpack.c.l.b16 %v270
    %v1336 = vunpack.c.h.b16 %v270
    %v1337 = vunpack.c.l.b16 %v271
    %v1338 = vunpack.c.h.b16 %v271
    %v1339 = vunpack.c.l.b16 %v272
    %v1340 = vunpack.c.h.b16 %v272
    %v1341 = vunpack.c.l.b16 %v273
    %v1342 = vunpack.c.h.b16 %v273
    %v1343 = vunpack.c.l.b16 %v274
    %v1344 = vunpack.c.h.b16 %v274
    %v1345 = vunpack.c.l.b16 %v275
    %v1346 = vunpack.c.h.b16 %v275
    %v1347 = vunpack.c.l.b16 %v276
    %v1348 = vunpack.c.h.b16 %v276
    %v1349 = vunpack.c.l.b16 %v277
    %v1350 = vunpack.c.h.b16 %v277
    %v1351 = vunpack.c.l.b16 %v278
    %v1352 = vunpack.c.h.b16 %v278
    %v1353 = vunpack.c.l.b16 %v279
    %v1354 = vunpack.c.h.b16 %v279
    %v1355 = vunpack.c.l.b16 %v280
    %v1356 = vunpack.c.h.b16 %v280
    %v1357 = vunpack.c.l.b16 %v281
    %v1358 = vunpack.c.h.b16 %v281
    %v1359 = vunpack.c.l.b16 %v282
    %v1360 = vunpack.c.h.b16 %v282
    %v1361 = vunpack.c.l.b16 %v283
    %v1362 = vunpack.c.h.b16 %v283
    %v1363 = vunpack.c.l.b16 %v284
    %v1364 = vunpack.c.h.b16 %v284
    %v1365 = vunpack.c.l.b16 %v285
    %v1366 = vunpack.c.h.b16 %v285
    %v1367 = vunpack.c.l.b16 %v286
    %v1368 = vunpack.c.h.b16 %v286
    %v1369 = vunpack.c.l.b16 %v287
    %v1370 = vunpack.c.h.b16 %v287
    %v1371 = vunpack.c.l.b16 %v288
    %v1372 = vunpack.c.h.b16 %v288
    %v1373 = vunpack.c.l.b16 %v289
    %v1374 = vunpack.c.h.b16 %v289
    %v1375 = vunpack.c.l.b16 %v290
    %v1376 = vunpack.c.h.b16 %v290
    %v1377 = vunpack.c.l.b16 %v291
    %v1378 = vunpack.c.h.b16 %v291
    %v1379 = vunpack.c.l.b16 %v292
    %v1380 = vunpack.c.h.b16 %v292
    %v1381 = vunpack.c.l.b16 %v293
    %v1382 = vunpack.c.h.b16 %v293
    %v1383 = vunpack.c.l.b16 %v294
    %v1384 = vunpack.c.h.b16 %v294
    %v1385 = vunpack.c.l.b16 %v295
    %v1386 = vunpack.c.h.b16 %v295
    %v1387 = vunpack.c.l.b16 %v296
    %v1388 = vunpack.c.h.b16 %v296
    %v1389 = vunpack.c.l.b16 %v297
    %v1390 = vunpack.c.h.b16 %v297
    %v1391 = vunpack.c.l.b16 %v298
    %v1392 = vunpack.c.h.b16 %v298
    %v1393 = vunpack.c.l.b16 %v299
    %v1394 = vunpack.c.h.b16 %v299
    %v1395 = vunpack.c.l.b16 %v300
    %v1396 = vunpack.c.h.b16 %v300
    %v1397 = vunpack.c.l.b16 %v301
    %v1398 = vunpack.c.h.b16 %v301
    %v1399 = vunpack.c.l.b16 %v302
    %v1400 = vunpack.c.h.b16 %v302
    %v1401 = vunpack.c.l.b16 %v303
    %v1402 = vunpack.c.h.b16 %v303
    %v1403 = vunpack.c.l.b16 %v304
    %v1404 = vunpack.c.h.b16 %v304
    %v1405 = vunpack.c.l.b16 %v305
    %v1406 = vunpack.c.h.b16 %v305
    %v1407 = vunpack.c.l.b16 %v306
    %v1408 = vunpack.c.h.b16 %v306
    %v1409 = vunpack.c.l.b16 %v307
    %v1410 = vunpack.c.h.b16 %v307
    %v1411 = vunpack.c.l.b16 %v308
    %v1412 = vunpack.c.h.b16 %v308
    %v1413 = vunpack.c.l.b16 %v309
    %v1414 = vunpack.c.h.b16 %v309
    %v1415 = vunpack.c.l.b16 %v310
    %v1416 = vunpack.c.h.b16 %v310
    %v1417 = vunpack.c.l.b16 %v311
    %v1418 = vunpack.c.h.b16 %v311
    %v1419 = vunpack.c.l.b16 %v312
    %v1420 = vunpack.c.h.b16 %v312
    %v1421 = vunpack.c.l.b16 %v313
    %v1422 = vunpack.c.h.b16 %v313
    %v1423 = vunpack.c.l.b16 %v314
    %v1424 = vunpack.c.h.b16 %v314
    %v1425 = vunpack.c.l.b16 %v315
    %v1426 = vunpack.c.h.b16 %v315
    %v1427 = vunpack.c.l.b16 %v316
    %v1428 = vunpack.c.h.b16 %v316
    %v1429 = vunpack.c.l.b16 %v317
    %v1430 = vunpack.c.h.b16 %v317
    %v1431 = vunpack.c.l.b16 %v318
    %v1432 = vunpack.c.h.b16 %v318
    %v1433 = vunpack.c.l.b16 %v319
    %v1434 = vunpack.c.h.b16 %v319
    %v1435 = vunpack.c.l.b16 %v320
    %v1436 = vunpack.c.h.b16 %v320
    %v1437 = vunpack.c.l.b16 %v321
    %v1438 = vunpack.c.h.b16 %v321
    %v1439 = vunpack.c.l.b16 %v322
    %v1440 = vunpack.c.h.b16 %v322
    %v1441 = vunpack.c.l.b16 %v323
    %v1442 = vunpack.c.h.b16 %v323
    %v1443 = vunpack.c.l.b16 %v324
    %v1444 = vunpack.c.h.b16 %v324
    %v1445 = vunpack.c.l.b16 %v325
    %v1446 = vunpack.c.h.b16 %v325
    %v1447 = vunpack.c.l.b16 %v326
    %v1448 = vunpack.c.h.b16 %v326
    %v1449 = vunpack.c.l.b16 %v327
    %v1450 = vunpack.c.h.b16 %v327
    %v1451 = vunpack.c.l.b16 %v328
    %v1452 = vunpack.c.h.b16 %v328
    %v1453 = vunpack.c.l.b16 %v329
    %v1454 = vunpack.c.h.b16 %v329
    %v1455 = vunpack.c.l.b16 %v330
    %v1456 = vunpack.c.h.b16 %v330
    %v1457 = vunpack.c.l.b16 %v331
    %v1458 = vunpack.c.h.b16 %v331
    %v1459 = vunpack.c.l.b16 %v332
    %v1460 = vunpack.c.h.b16 %v332
    %v1461 = vunpack.c.l.b16 %v333
    %v1462 = vunpack.c.h.b16 %v333
    %v1463 = vunpack.c.l.b16 %v334
    %v1464 = vunpack.c.h.b16 %v334
    %v1465 = vunpack.c.l.b16 %v335
    %v1466 = vunpack.c.h.b16 %v335
    %v1467 = vunpack.c.l.b16 %v336
    %v1468 = vunpack.c.h.b16 %v336
    %v1469 = vunpack.c.l.b16 %v337
    %v1470 = vunpack.c.h.b16 %v337
    %v1471 = vunpack.c.l.b16 %v338
    %v1472 = vunpack.c.h.b16 %v338
    %v1473 = vunpack.c.l.b16 %v339
    %v1474 = vunpack.c.h.b16 %v339
    %v1475 = vunpack.c.l.b16 %v340
    %v1476 = vunpack.c.h.b16 %v340
    %v1477 = vunpack.c.l.b16 %v341
    %v1478 = vunpack.c.h.b16 %v341
    %v1479 = vunpack.c.l.b16 %v342
    %v1480 = vunpack.c.h.b16 %v342
    %v1481 = vunpack.c.l.b16 %v343
    %v1482 = vunpack.c.h.b16 %v343
    %v1483 = vunpack.c.l.b16 %v344
    %v1484 = vunpack.c.h.b16 %v344
    %v1485 = vunpack.c.l.b16 %v345
    %v1486 = vunpack.c.h.b16 %v345
    %v1487 = vunpack.c.l.b16 %v346
    %v1488 = vunpack.c.h.b16 %v346
    %v1489 = vunpack.c.l.b16 %v347
    %v1490 = vunpack.c.h.b16 %v347
    %v1491 = vunpack.c.l.b16 %v348
    %v1492 = vunpack.c.h.b16 %v348
    %v1493 = vpack.c.b16 %v847, %v845
    %v1494 = vpack.c.b16 %v848, %v846
    %v1495 = vpack.c.b16 %v851, %v849
    %v1496 = vpack.c.b16 %v852, %v850
    %v1497 = vpack.c.b16 %v855, %v853
    %v1498 = vpack.c.b16 %v856, %v854
    %v1499 = vpack.c.b16 %v859, %v857
    %v1500 = vpack.c.b16 %v860, %v858
    %v1501 = vpack.c.b16 %v863, %v861
    %v1502 = vpack.c.b16 %v864, %v862
    %v1503 = vpack.c.b16 %v867, %v865
    %v1504 = vpack.c.b16 %v868, %v866
    %v1505 = vpack.c.b16 %v871, %v869
    %v1506 = vpack.c.b16 %v872, %v870
    %v1507 = vpack.c.b16 %v875, %v873
    %v1508 = vpack.c.b16 %v876, %v874
    %v1509 = vpack.c.b16 %v879, %v877
    %v1510 = vpack.c.b16 %v880, %v878
    %v1511 = vpack.c.b16 %v883, %v881
    %v1512 = vpack.c.b16 %v884, %v882
    %v1513 = vpack.c.b16 %v887, %v885
    %v1514 = vpack.c.b16 %v888, %v886
    %v1515 = vpack.c.b16 %v891, %v889
    %v1516 = vpack.c.b16 %v892, %v890
    %v1517 = vpack.c.b16 %v895, %v893
    %v1518 = vpack.c.b16 %v896, %v894
    %v1519 = vpack.c.b16 %v899, %v897
    %v1520 = vpack.c.b16 %v900, %v898
    %v1521 = vpack.c.b16 %v903, %v901
    %v1522 = vpack.c.b16 %v904, %v902
    %v1523 = vpack.c.b16 %v907, %v905
    %v1524 = vpack.c.b16 %v908, %v906
    %v1525 = vpack.c.b16 %v911, %v909
    %v1526 = vpack.c.b16 %v912, %v910
    %v1527 = vpack.c.b16 %v915, %v913
    %v1528 = vpack.c.b16 %v916, %v914
    %v1529 = vpack.c.b16 %v919, %v917
    %v1530 = vpack.c.b16 %v920, %v918
    %v1531 = vpack.c.b16 %v923, %v921
    %v1532 = vpack.c.b16 %v924, %v922
    %v1533 = vpack.c.b16 %v927, %v925
    %v1534 = vpack.c.b16 %v928, %v926
    %v1535 = vpack.c.b16 %v931, %v929
    %v1536 = vpack.c.b16 %v932, %v930
    %v1537 = vpack.c.b16 %v935, %v933
    %v1538 = vpack.c.b16 %v936, %v934
    %v1539 = vpack.c.b16 %v939, %v937
    %v1540 = vpack.c.b16 %v940, %v938
    %v1541 = vpack.c.b16 %v943, %v941
    %v1542 = vpack.c.b16 %v944, %v942
    %v1543 = vpack.c.b16 %v947, %v945
    %v1544 = vpack.c.b16 %v948, %v946
    %v1545 = vpack.c.b16 %v951, %v949
    %v1546 = vpack.c.b16 %v952, %v950
    %v1547 = vpack.c.b16 %v955, %v953
    %v1548 = vpack.c.b16 %v956, %v954
    %v1549 = vpack.c.b16 %v959, %v957
    %v1550 = vpack.c.b16 %v960, %v958
    %v1551 = vpack.c.b16 %v963, %v961
    %v1552 = vpack.c.b16 %v964, %v962
    %v1553 = vpack.c.b16 %v967, %v965
    %v1554 = vpack.c.b16 %v968, %v966
    %v1555 = vpack.c.b16 %v971, %v969
    %v1556 = vpack.c.b16 %v972, %v970
    %v1557 = vpack.c.b16 %v975, %v973
    %v1558 = vpack.c.b16 %v976, %v974
    %v1559 = vpack.c.b16 %v979, %v977
    %v1560 = vpack.c.b16 %v980, %v978
    %v1561 = vpack.c.b16 %v983, %v981
    %v1562 = vpack.c.b16 %v984, %v982
    %v1563 = vpack.c.b16 %v987, %v985
    %v1564 = vpack.c.b16 %v988, %v986
    %v1565 = vpack.c.b16 %v991, %v989
    %v1566 = vpack.c.b16 %v992, %v990
    %v1567 = vpack.c.b16 %v995, %v993
    %v1568 = vpack.c.b16 %v996, %v994
    %v1569 = vpack.c.b16 %v999, %v997
    %v1570 = vpack.c.b16 %v1000, %v998
    %v1571 = vpack.c.b16 %v1003, %v1001
    %v1572 = vpack.c.b16 %v1004, %v1002
    %v1573 = vpack.c.b16 %v1007, %v1005
    %v1574 = vpack.c.b16 %v1008, %v1006
    %v1575 = vpack.c.b16 %v1011, %v1009
    %v1576 = vpack.c.b16 %v1012, %v1010
    %v1577 = vpack.c.b16 %v1015, %v1013
    %v1578 = vpack.c.b16 %v1016, %v1014
    %v1579 = vpack.c.b16 %v1019, %v1017
    %v1580 = vpack.c.b16 %v1020, %v1018
    %v1581 = vpack.c.b16 %v1023, %v1021
    %v1582 = vpack.c.b16 %v1024, %v1022
    %v1583 = vpack.c.b16 %v1027, %v1025
    %v1584 = vpack.c.b16 %v1028, %v1026
    %v1585 = vpack.c.b16 %v1031, %v1029
    %v1586 = vpack.c.b16 %v1032, %v1030
    %v1587 = vpack.c.b16 %v1035, %v1033
    %v1588 = vpack.c.b16 %v1036, %v1034
    %v1589 = vpack.c.b16 %v1039, %v1037
    %v1590 = vpack.c.b16 %v1040, %v1038
    %v1591 = vpack.c.b16 %v1043, %v1041
    %v1592 = vpack.c.b16 %v1044, %v1042
    %v1593 = vpack.c.b16 %v1047, %v1045
    %v1594 = vpack.c.b16 %v1048, %v1046
    %v1595 = vpack.c.b16 %v1051, %v1049
    %v1596 = vpack.c.b16 %v1052, %v1050
    %v1597 = vpack.c.b16 %v1055, %v1053
    %v1598 = vpack.c.b16 %v1056, %v1054
    %v1599 = vpack.c.b16 %v1059, %v1057
    %v1600 = vpack.c.b16 %v1060, %v1058
    %v1601 = vpack.c.b16 %v1063, %v1061
    %v1602 = vpack.c.b16 %v1064, %v1062
    %v1603 = vpack.c.b16 %v1067, %v1065
    %v1604 = vpack.c.b16 %v1068, %v1066
    %v1605 = vpack.c.b16 %v1071, %v1069
    %v1606 = vpack.c.b16 %v1072, %v1070
    %v1607 = vpack.c.b16 %v1075, %v1073
    %v1608 = vpack.c.b16 %v1076, %v1074
    %v1609 = vpack.c.b16 %v1079, %v1077
    %v1610 = vpack.c.b16 %v1080, %v1078
    %v1611 = vpack.c.b16 %v1083, %v1081
    %v1612 = vpack.c.b16 %v1084, %v1082
    %v1613 = vpack.c.b16 %v1087, %v1085
    %v1614 = vpack.c.b16 %v1088, %v1086
    %v1615 = vpack.c.b16 %v1091, %v1089
    %v1616 = vpack.c.b16 %v1092, %v1090
    %v1617 = vpack.c.b16 %v1095, %v1093
    %v1618 = vpack.c.b16 %v1096, %v1094
    %v1619 = vpack.c.b16 %v1099, %v1097
    %v1620 = vpack.c.b16 %v1100, %v1098
    %v1621 = vpack.c.b16 %v1103, %v1101
    %v1622 = vpack.c.b16 %v1104, %v1102
    %v1623 = vpack.c.b16 %v1107, %v1105
    %v1624 = vpack.c.b16 %v1108, %v1106
    %v1625 = vpack.c.b16 %v1111, %v1109
    %v1626 = vpack.c.b16 %v1112, %v1110
    %v1627 = vpack.c.b16 %v1115, %v1113
    %v1628 = vpack.c.b16 %v1116, %v1114
    %v1629 = vpack.c.b16 %v1119, %v1117
    %v1630 = vpack.c.b16 %v1120, %v1118
    %v1631 = vpack.c.b16 %v1123, %v1121
    %v1632 = vpack.c.b16 %v1124, %v1122
    %v1633 = vpack.c.b16 %v1127, %v1125
    %v1634 = vpack.c.b16 %v1128, %v1126
    %v1635 = vpack.c.b16 %v1131, %v1129
    %v1636 = vpack.c.b16 %v1132, %v1130
    %v1637 = vpack.c.b16 %v1135, %v1133
    %v1638 = vpack.c.b16 %v1136, %v1134
    %v1639 = vpack.c.b16 %v1139, %v1137
    %v1640 = vpack.c.b16 %v1140, %v1138
    %v1641 = vpack.c.b16 %v1143, %v1141
    %v1642 = vpack.c.b16 %v1144, %v1142
    %v1643 = vpack.c.b16 %v1147, %v1145
    %v1644 = vpack.c.b16 %v1148, %v1146
    %v1645 = vpack.c.b16 %v1151, %v1149
    %v1646 = vpack.c.b16 %v1152, %v1150
    %v1647 = vpack.c.b16 %v1155, %v1153
    %v1648 = vpack.c.b16 %v1156, %v1154
    %v1649 = vpack.c.b16 %v1159, %v1157
    %v1650 = vpack.c.b16 %v1160, %v1158
    %v1651 = vpack.c.b16 %v1163, %v1161
    %v1652 = vpack.c.b16 %v1164, %v1162
    %v1653 = vpack.c.b16 %v1167, %v1165
    %v1654 = vpack.c.b16 %v1168, %v1166
    %v1655 = vpack.c.b16 %v1171, %v1169
    %v1656 = vpack.c.b16 %v1172, %v1170
    %v1657 = vpack.c.b16 %v1175, %v1173
    %v1658 = vpack.c.b16 %v1176, %v1174
    %v1659 = vpack.c.b16 %v1179, %v1177
    %v1660 = vpack.c.b16 %v1180, %v1178
    %v1661 = vpack.c.b16 %v1183, %v1181
    %v1662 = vpack.c.b16 %v1184, %v1182
    %v1663 = vpack.c.b16 %v1187, %v1185
    %v1664 = vpack.c.b16 %v1188, %v1186
    %v1665 = vpack.c.b16 %v1191, %v1189
    %v1666 = vpack.c.b16 %v1192, %v1190
    %v1667 = vpack.c.b16 %v1195, %v1193
    %v1668 = vpack.c.b16 %v1196, %v1194
    %v1669 = vpack.c.b16 %v1199, %v1197
    %v1670 = vpack.c.b16 %v1200, %v1198
    %v1671 = vpack.c.b16 %v1203, %v1201
    %v1672 = vpack.c.b16 %v1204, %v1202
    %v1673 = vpack.c.b16 %v1207, %v1205
    %v1674 = vpack.c.b16 %v1208, %v1206
    %v1675 = vpack.c.b16 %v1211, %v1209
    %v1676 = vpack.c.b16 %v1212, %v1210
    %v1677 = vpack.c.b16 %v1215, %v1213
    %v1678 = vpack.c.b16 %v1216, %v1214
    %v1679 = vpack.c.b16 %v1219, %v1217
    %v1680 = vpack.c.b16 %v1220, %v1218
    %v1681 = vpack.c.b16 %v1223, %v1221
    %v1682 = vpack.c.b16 %v1224, %v1222
    %v1683 = vpack.c.b16 %v1227, %v1225
    %v1684 = vpack.c.b16 %v1228, %v1226
    %v1685 = vpack.c.b16 %v1231, %v1229
    %v1686 = vpack.c.b16 %v1232, %v1230
    %v1687 = vpack.c.b16 %v1235, %v1233
    %v1688 = vpack.c.b16 %v1236, %v1234
    %v1689 = vpack.c.b16 %v1239, %v1237
    %v1690 = vpack.c.b16 %v1240, %v1238
    %v1691 = vpack.c.b16 %v1243, %v1241
    %v1692 = vpack.c.b16 %v1244, %v1242
    %v1693 = vpack.c.b16 %v1247, %v1245
    %v1694 = vpack.c.b16 %v1248, %v1246
    %v1695 = vpack.c.b16 %v1251, %v1249
    %v1696 = vpack.c.b16 %v1252, %v1250
    %v1697 = vpack.c.b16 %v1255, %v1253
    %v1698 = vpack.c.b16 %v1256, %v1254
    %v1699 = vpack.c.b16 %v1259, %v1257
    %v1700 = vpack.c.b16 %v1260, %v1258
    %v1701 = vpack.c.b16 %v1263, %v1261
    %v1702 = vpack.c.b16 %v1264, %v1262
    %v1703 = vpack.c.b16 %v1267, %v1265
    %v1704 = vpack.c.b16 %v1268, %v1266
    %v1705 = vpack.c.b16 %v1271, %v1269
    %v1706 = vpack.c.b16 %v1272, %v1270
    %v1707 = vpack.c.b16 %v1275, %v1273
    %v1708 = vpack.c.b16 %v1276, %v1274
    %v1709 = vpack.c.b16 %v1279, %v1277
    %v1710 = vpack.c.b16 %v1280, %v1278
    %v1711 = vpack.c.b16 %v1283, %v1281
    %v1712 = vpack.c.b16 %v1284, %v1282
    %v1713 = vpack.c.b16 %v1287, %v1285
    %v1714 = vpack.c.b16 %v1288, %v1286
    %v1715 = vpack.c.b16 %v1291, %v1289
    %v1716 = vpack.c.b16 %v1292, %v1290
    %v1717 = vpack.c.b16 %v1295, %v1293
    %v1718 = vpack.c.b16 %v1296, %v1294
    %v1719 = vpack.c.b16 %v1299, %v1297
    %v1720 = vpack.c.b16 %v1300, %v1298
    %v1721 = vpack.c.b16 %v1303, %v1301
    %v1722 = vpack.c.b16 %v1304, %v1302
    %v1723 = vpack.c.b16 %v1307, %v1305
    %v1724 = vpack.c.b16 %v1308, %v1306
    %v1725 = vpack.c.b16 %v1311, %v1309
    %v1726 = vpack.c.b16 %v1312, %v1310
    %v1727 = vpack.c.b16 %v1315, %v1313
    %v1728 = vpack.c.b16 %v1316, %v1314
    %v1729 = vpack.c.b16 %v1319, %v1317
    %v1730 = vpack.c.b16 %v1320, %v1318
    %v1731 = vpack.c.b16 %v1323, %v1321
    %v1732 = vpack.c.b16 %v1324, %v1322
    %v1733 = vpack.c.b16 %v1327, %v1325
    %v1734 = vpack.c.b16 %v1328, %v1326
    %v1735 = vpack.c.b16 %v1331, %v1329
    %v1736 = vpack.c.b16 %v1332, %v1330
    %v1737 = vpack.c.b16 %v1335, %v1333
    %v1738 = vpack.c.b16 %v1336, %v1334
    %v1739 = vpack.c.b16 %v1339, %v1337
    %v1740 = vpack.c.b16 %v1340, %v1338
    %v1741 = vpack.c.b16 %v1343, %v1341
    %v1742 = vpack.c.b16 %v1344, %v1342
    %v1743 = vpack.c.b16 %v1347, %v1345
    %v1744 = vpack.c.b16 %v1348, %v1346
    %v1745 = vpack.c.b16 %v1351, %v1349
    %v1746 = vpack.c.b16 %v1352, %v1350
    %v1747 = vpack.c.b16 %v1355, %v1353
    %v1748 = vpack.c.b16 %v1356, %v1354
    %v1749 = vpack.c.b16 %v1359, %v1357
    %v1750 = vpack.c.b16 %v1360, %v1358
    %v1751 = vpack.c.b16 %v1363, %v1361
    %v1752 = vpack.c.b16 %v1364, %v1362
    %v1753 = vpack.c.b16 %v1367, %v1365
    %v1754 = vpack.c.b16 %v1368, %v1366
    %v1755 = vpack.c.b16 %v1371, %v1369
    %v1756 = vpack.c.b16 %v1372, %v1370
    %v1757 = vpack.c.b16 %v1375, %v1373
    %v1758 = vpack.c.b16 %v1376, %v1374
    %v1759 = vpack.c.b16 %v1379, %v1377
    %v1760 = vpack.c.b16 %v1380, %v1378
    %v1761 = vpack.c.b16 %v1383, %v1381
    %v1762 = vpack.c.b16 %v1384, %v1382
    %v1763 = vpack.c.b16 %v1387, %v1385
    %v1764 = vpack.c.b16 %v1388, %v1386
    %v1765 = vpack.c.b16 %v1391, %v1389
    %v1766 = vpack.c.b16 %v1392, %v1390
    %v1767 = vpack.c.b16 %v1395, %v1393
    %v1768 = vpack.c.b16 %v1396, %v1394
    %v1769 = vpack.c.b16 %v1399, %v1397
    %v1770 = vpack.c.b16 %v1400, %v1398
    %v1771 = vpack.c.b16 %v1403, %v1401
    %v1772 = vpack.c.b16 %v1404, %v1402
    %v1773 = vpack.c.b16 %v1407, %v1405
    %v1774 = vpack.c.b16 %v1408, %v1406
    %v1775 = vpack.c.b16 %v1411, %v1409
    %v1776 = vpack.c.b16 %v1412, %v1410
    %v1777 = vpack.c.b16 %v1415, %v1413
    %v1778 = vpack.c.b16 %v1416, %v1414
    %v1779 = vpack.c.b16 %v1419, %v1417
    %v1780 = vpack.c.b16 %v1420, %v1418
    %v1781 = vpack.c.b16 %v1423, %v1421
    %v1782 = vpack.c.b16 %v1424, %v1422
    %v1783 = vpack.c.b16 %v1427, %v1425
    %v1784 = vpack.c.b16 %v1428, %v1426
    %v1785 = vpack.c.b16 %v1431, %v1429
    %v1786 = vpack.c.b16 %v1432, %v1430
    %v1787 = vpack.c.b16 %v1435, %v1433
    %v1788 = vpack.c.b16 %v1436, %v1434
    %v1789 = vpack.c.b16 %v1439, %v1437
    %v1790 = vpack.c.b16 %v1440, %v1438
    %v1791 = vpack.c.b16 %v1443, %v1441
    %v1792 = vpack.c.b16 %v1444, %v1442
    %v1793 = vpack.c.b16 %v1447, %v1445
    %v1794 = vpack.c.b16 %v1448, %v1446
    %v1795 = vpack.c.b16 %v1451, %v1449
    %v1796 = vpack.c.b16 %v1452, %v1450
    %v1797 = vpack.c.b16 %v1455, %v1453
    %v1798 = vpack.c.b16 %v1456, %v1454
    %v1799 = vpack.c.b16 %v1459, %v1457
    %v1800 = vpack.c.b16 %v1460, %v1458
    %v1801 = vpack.c.b16 %v1463, %v1461
    %v1802 = vpack.c.b16 %v1464, %v1462
    %v1803 = vpack.c.b16 %v1467, %v1465
    %v1804 = vpack.c.b16 %v1468, %v1466
    %v1805 = vpack.c.b16 %v1471, %v1469
    %v1806 = vpack.c.b16 %v1472, %v1470
    %v1807 = vpack.c.b16 %v1475, %v1473
    %v1808 = vpack.c.b16 %v1476, %v1474
    %v1809 = vpack.c.b16 %v1479, %v1477
    %v1810 = vpack.c.b16 %v1480, %v1478
    %v1811 = vpack.c.b16 %v1483, %v1481
    %v1812 = vpack.c.b16 %v1484, %v1482
    %v1813 = vpack.c.b16 %v1487, %v1485
    %v1814 = vpack.c.b16 %v1488, %v1486
    %v1815 = vpack.c.b16 %v1491, %v1489
    %v1816 = vpack.c.b16 %v1492, %v1490
    %vm2141 = vcmask 261120
    %v2143 = vsel %vm2141, %v491, 0
    %2145 = vmatprep.subr.bf16.mxu0 %v1508
    %2146 = vmatpush1.bf16.msra.mxu0 %v1507
    %2147 = vmatprep.subr.bf16.mxu0 %v1506
    %2148 = vmatpush1.bf16.msra.mxu0 %v1505
    %2149 = vmatprep.subr.bf16.mxu0 %v1504
    %2150 = vmatpush1.bf16.msra.mxu0 %v1503
    %2151 = vmatprep.subr.bf16.mxu0 %v1502
    %2152 = vmatpush1.bf16.msra.mxu0 %v1501
    %2153 = vmatprep.subr.bf16.mxu0 %v1500
    %2154 = vmatpush1.bf16.msra.mxu0 %v1499
    %2155 = vmatprep.subr.bf16.mxu0 %v1498
    %2156 = vmatpush1.bf16.msra.mxu0 %v1497
    %2157 = vmatprep.subr.bf16.mxu0 %v1496
    %2158 = vmatpush1.bf16.msra.mxu0 %v1495
    %2159 = vmatprep.subr.bf16.mxu0 %v1494
    %2160 = vmatpush1.bf16.msra.mxu0 %v1493
    %2161 = vmatprep.subr.bf16.mxu0 %v1524
    %2162 = vmatpush2.bf16.msra.mxu0 %v1523
    %2163 = vmatprep.subr.bf16.mxu0 %v1522
    %2164 = vmatpush2.bf16.msra.mxu0 %v1521
    %2165 = vmatprep.subr.bf16.mxu0 %v1520
    %2166 = vmatpush2.bf16.msra.mxu0 %v1519
    %2167 = vmatprep.subr.bf16.mxu0 %v1518
    %2168 = vmatpush2.bf16.msra.mxu0 %v1517
    %2169 = vmatprep.subr.bf16.mxu0 %v1516
    %2170 = vmatpush2.bf16.msra.mxu0 %v1515
    %2171 = vmatprep.subr.bf16.mxu0 %v1514
    %2172 = vmatpush2.bf16.msra.mxu0 %v1513
    %2173 = vmatprep.subr.bf16.mxu0 %v1512
    %2174 = vmatpush2.bf16.msra.mxu0 %v1511
    %2175 = vmatprep.subr.bf16.mxu0 %v1510
    %2176 = vmatpush2.bf16.msra.mxu0 %v1509
    %2177 = vmatprep.mubr.bf16.mxu0 %v401
    %2178 = vmatmul.mubr.bf16.gmra.mxu0 %v387
    %v2179 = vpop.f32.mrf.mxu0
    %v2180 = vadd.f32 %v354, %v2179
    %v2181 = vpop.f32.mrf.mxu0
    %v2182 = vadd.f32 %v358, %v2181
    %v2183 = vpop.f32.mrf.mxu0
    %v2184 = vpop.f32.mrf.mxu0
    %2185 = vdwg.mxu0
    %2186 = vmatprep.subr.bf16.mxu0 %v1540
    %2187 = vmatpush1.bf16.msra.mxu0 %v1539
    %2188 = vmatprep.subr.bf16.mxu0 %v1538
    %2189 = vmatpush1.bf16.msra.mxu0 %v1537
    %2190 = vmatprep.subr.bf16.mxu0 %v1536
    %2191 = vmatpush1.bf16.msra.mxu0 %v1535
    %2192 = vmatprep.subr.bf16.mxu0 %v1534
    %2193 = vmatpush1.bf16.msra.mxu0 %v1533
    %2194 = vmatprep.subr.bf16.mxu0 %v1532
    %2195 = vmatpush1.bf16.msra.mxu0 %v1531
    %2196 = vmatprep.subr.bf16.mxu0 %v1530
    %2197 = vmatpush1.bf16.msra.mxu0 %v1529
    %2198 = vmatprep.subr.bf16.mxu0 %v1528
    %2199 = vmatpush1.bf16.msra.mxu0 %v1527
    %2200 = vmatprep.subr.bf16.mxu0 %v1526
    %2201 = vmatpush1.bf16.msra.mxu0 %v1525
    %2202 = vmatprep.subr.bf16.mxu0 %v1556
    %2203 = vmatpush2.bf16.msra.mxu0 %v1555
    %2204 = vmatprep.subr.bf16.mxu0 %v1554
    %2205 = vmatpush2.bf16.msra.mxu0 %v1553
    %2206 = vmatprep.subr.bf16.mxu0 %v1552
    %2207 = vmatpush2.bf16.msra.mxu0 %v1551
    %2208 = vmatprep.subr.bf16.mxu0 %v1550
    %2209 = vmatpush2.bf16.msra.mxu0 %v1549
    %2210 = vmatprep.subr.bf16.mxu0 %v1548
    %2211 = vmatpush2.bf16.msra.mxu0 %v1547
    %2212 = vmatprep.subr.bf16.mxu0 %v1546
    %2213 = vmatpush2.bf16.msra.mxu0 %v1545
    %2214 = vmatprep.subr.bf16.mxu0 %v1544
    %2215 = vmatpush2.bf16.msra.mxu0 %v1543
    %2216 = vmatprep.subr.bf16.mxu0 %v1542
    %2217 = vmatpush2.bf16.msra.mxu0 %v1541
    %2218 = vmatprep.mubr.bf16.mxu0 %v411
    %2219 = vmatmul.mubr.bf16.gmra.mxu0 %v409
    %v2220 = vpop.f32.mrf.mxu0
    %v2221 = vadd.f32 %v2180, %v2220
    %v2222 = vpop.f32.mrf.mxu0
    %v2223 = vadd.f32 %v2182, %v2222
    %v2224 = vpop.f32.mrf.mxu0
    %v2225 = vpop.f32.mrf.mxu0
    %2226 = vdwg.mxu0
    %2227 = vmatprep.subr.bf16.mxu0 %v1572
    %2228 = vmatpush1.bf16.msra.mxu0 %v1571
    %2229 = vmatprep.subr.bf16.mxu0 %v1570
    %2230 = vmatpush1.bf16.msra.mxu0 %v1569
    %2231 = vmatprep.subr.bf16.mxu0 %v1568
    %2232 = vmatpush1.bf16.msra.mxu0 %v1567
    %2233 = vmatprep.subr.bf16.mxu0 %v1566
    %2234 = vmatpush1.bf16.msra.mxu0 %v1565
    %2235 = vmatprep.subr.bf16.mxu0 %v1564
    %2236 = vmatpush1.bf16.msra.mxu0 %v1563
    %2237 = vmatprep.subr.bf16.mxu0 %v1562
    %2238 = vmatpush1.bf16.msra.mxu0 %v1561
    %2239 = vmatprep.subr.bf16.mxu0 %v1560
    %2240 = vmatpush1.bf16.msra.mxu0 %v1559
    %2241 = vmatprep.subr.bf16.mxu0 %v1558
    %2242 = vmatpush1.bf16.msra.mxu0 %v1557
    %2243 = vmatprep.subr.bf16.mxu0 %v1588
    %2244 = vmatpush2.bf16.msra.mxu0 %v1587
    %2245 = vmatprep.subr.bf16.mxu0 %v1586
    %2246 = vmatpush2.bf16.msra.mxu0 %v1585
    %2247 = vmatprep.subr.bf16.mxu0 %v1584
    %2248 = vmatpush2.bf16.msra.mxu0 %v1583
    %2249 = vmatprep.subr.bf16.mxu0 %v1582
    %2250 = vmatpush2.bf16.msra.mxu0 %v1581
    %2251 = vmatprep.subr.bf16.mxu0 %v1580
    %2252 = vmatpush2.bf16.msra.mxu0 %v1579
    %2253 = vmatprep.subr.bf16.mxu0 %v1578
    %2254 = vmatpush2.bf16.msra.mxu0 %v1577
    %2255 = vmatprep.subr.bf16.mxu0 %v1576
    %2256 = vmatpush2.bf16.msra.mxu0 %v1575
    %2257 = vmatprep.subr.bf16.mxu0 %v1574
    %2258 = vmatpush2.bf16.msra.mxu0 %v1573
    %2259 = vmatprep.mubr.bf16.mxu0 %v408
    %2260 = vmatmul.mubr.bf16.gmra.mxu0 %v394
    %v2261 = vpop.f32.mrf.mxu0
    %v2262 = vadd.f32 %v2221, %v2261
    %v2263 = vpop.f32.mrf.mxu0
    %v2264 = vadd.f32 %v2223, %v2263
    %v2265 = vpop.f32.mrf.mxu0
    %v2266 = vpop.f32.mrf.mxu0
    %2267 = vdwg.mxu0
    %2268 = vmatprep.subr.bf16.mxu0 %v1604
    %2269 = vmatpush1.bf16.msra.mxu0 %v1603
    %2270 = vmatprep.subr.bf16.mxu0 %v1602
    %2271 = vmatpush1.bf16.msra.mxu0 %v1601
    %2272 = vmatprep.subr.bf16.mxu0 %v1600
    %2273 = vmatpush1.bf16.msra.mxu0 %v1599
    %2274 = vmatprep.subr.bf16.mxu0 %v1598
    %2275 = vmatpush1.bf16.msra.mxu0 %v1597
    %2276 = vmatprep.subr.bf16.mxu0 %v1596
    %2277 = vmatpush1.bf16.msra.mxu0 %v1595
    %2278 = vmatprep.subr.bf16.mxu0 %v1594
    %2279 = vmatpush1.bf16.msra.mxu0 %v1593
    %2280 = vmatprep.subr.bf16.mxu0 %v1592
    %2281 = vmatpush1.bf16.msra.mxu0 %v1591
    %2282 = vmatprep.subr.bf16.mxu0 %v1590
    %2283 = vmatpush1.bf16.msra.mxu0 %v1589
    %2284 = vmatprep.subr.bf16.mxu0 %v1620
    %2285 = vmatpush2.bf16.msra.mxu0 %v1619
    %2286 = vmatprep.subr.bf16.mxu0 %v1618
    %2287 = vmatpush2.bf16.msra.mxu0 %v1617
    %2288 = vmatprep.subr.bf16.mxu0 %v1616
    %2289 = vmatpush2.bf16.msra.mxu0 %v1615
    %2290 = vmatprep.subr.bf16.mxu0 %v1614
    %2291 = vmatpush2.bf16.msra.mxu0 %v1613
    %2292 = vmatprep.subr.bf16.mxu0 %v1612
    %2293 = vmatpush2.bf16.msra.mxu0 %v1611
    %2294 = vmatprep.subr.bf16.mxu0 %v1610
    %2295 = vmatpush2.bf16.msra.mxu0 %v1609
    %2296 = vmatprep.subr.bf16.mxu0 %v1608
    %2297 = vmatpush2.bf16.msra.mxu0 %v1607
    %2298 = vmatprep.subr.bf16.mxu0 %v1606
    %2299 = vmatpush2.bf16.msra.mxu0 %v1605
    %2300 = vmatprep.mubr.bf16.mxu0 %v412
    %2301 = vmatmul.mubr.bf16.gmra.mxu0 %v410
    %v2302 = vpop.f32.mrf.mxu0
    %v2303 = vadd.f32 %v2262, %v2302
    %v2304 = vpop.f32.mrf.mxu0
    %v2305 = vadd.f32 %v2264, %v2304
    %v2306 = vpop.f32.mrf.mxu0
    %v2307 = vpop.f32.mrf.mxu0
    %2308 = vdwg.mxu0
    %2309 = vmatprep.subr.bf16.mxu0 %v1636
    %2310 = vmatpush1.bf16.msra.mxu0 %v1635
    %2311 = vmatprep.subr.bf16.mxu0 %v1634
    %2312 = vmatpush1.bf16.msra.mxu0 %v1633
    %2313 = vmatprep.subr.bf16.mxu0 %v1632
    %2314 = vmatpush1.bf16.msra.mxu0 %v1631
    %2315 = vmatprep.subr.bf16.mxu0 %v1630
    %2316 = vmatpush1.bf16.msra.mxu0 %v1629
    %2317 = vmatprep.subr.bf16.mxu0 %v1628
    %2318 = vmatpush1.bf16.msra.mxu0 %v1627
    %2319 = vmatprep.subr.bf16.mxu0 %v1626
    %2320 = vmatpush1.bf16.msra.mxu0 %v1625
    %2321 = vmatprep.subr.bf16.mxu0 %v1624
    %2322 = vmatpush1.bf16.msra.mxu0 %v1623
    %2323 = vmatprep.subr.bf16.mxu0 %v1622
    %2324 = vmatpush1.bf16.msra.mxu0 %v1621
    %2325 = vmatprep.subr.bf16.mxu0 %v1652
    %2326 = vmatpush2.bf16.msra.mxu0 %v1651
    %2327 = vmatprep.subr.bf16.mxu0 %v1650
    %2328 = vmatpush2.bf16.msra.mxu0 %v1649
    %2329 = vmatprep.subr.bf16.mxu0 %v1648
    %2330 = vmatpush2.bf16.msra.mxu0 %v1647
    %2331 = vmatprep.subr.bf16.mxu0 %v1646
    %2332 = vmatpush2.bf16.msra.mxu0 %v1645
    %2333 = vmatprep.subr.bf16.mxu0 %v1644
    %2334 = vmatpush2.bf16.msra.mxu0 %v1643
    %2335 = vmatprep.subr.bf16.mxu0 %v1642
    %2336 = vmatpush2.bf16.msra.mxu0 %v1641
    %2337 = vmatprep.subr.bf16.mxu0 %v1640
    %2338 = vmatpush2.bf16.msra.mxu0 %v1639
    %2339 = vmatprep.subr.bf16.mxu0 %v1638
    %2340 = vmatpush2.bf16.msra.mxu0 %v1637
    %2341 = vmatprep.mubr.bf16.mxu0 %v450
    %2342 = vmatmul.mubr.bf16.gmra.mxu0 %v436
    %v2343 = vpop.f32.mrf.mxu0
    %v2344 = vadd.f32 %v2303, %v2343
    %v2345 = vpop.f32.mrf.mxu0
    %v2346 = vadd.f32 %v2305, %v2345
    %v2347 = vpop.f32.mrf.mxu0
    %v2348 = vpop.f32.mrf.mxu0
    %2349 = vdwg.mxu0
    %2350 = vmatprep.subr.bf16.mxu0 %v1668
    %2351 = vmatpush1.bf16.msra.mxu0 %v1667
    %2352 = vmatprep.subr.bf16.mxu0 %v1666
    %2353 = vmatpush1.bf16.msra.mxu0 %v1665
    %2354 = vmatprep.subr.bf16.mxu0 %v1664
    %2355 = vmatpush1.bf16.msra.mxu0 %v1663
    %2356 = vmatprep.subr.bf16.mxu0 %v1662
    %2357 = vmatpush1.bf16.msra.mxu0 %v1661
    %2358 = vmatprep.subr.bf16.mxu0 %v1660
    %2359 = vmatpush1.bf16.msra.mxu0 %v1659
    %2360 = vmatprep.subr.bf16.mxu0 %v1658
    %2361 = vmatpush1.bf16.msra.mxu0 %v1657
    %2362 = vmatprep.subr.bf16.mxu0 %v1656
    %2363 = vmatpush1.bf16.msra.mxu0 %v1655
    %2364 = vmatprep.subr.bf16.mxu0 %v1654
    %2365 = vmatpush1.bf16.msra.mxu0 %v1653
    %2366 = vmatprep.subr.bf16.mxu0 %v1684
    %2367 = vmatpush2.bf16.msra.mxu0 %v1683
    %2368 = vmatprep.subr.bf16.mxu0 %v1682
    %2369 = vmatpush2.bf16.msra.mxu0 %v1681
    %2370 = vmatprep.subr.bf16.mxu0 %v1680
    %2371 = vmatpush2.bf16.msra.mxu0 %v1679
    %2372 = vmatprep.subr.bf16.mxu0 %v1678
    %2373 = vmatpush2.bf16.msra.mxu0 %v1677
    %2374 = vmatprep.subr.bf16.mxu0 %v1676
    %2375 = vmatpush2.bf16.msra.mxu0 %v1675
    %2376 = vmatprep.subr.bf16.mxu0 %v1674
    %2377 = vmatpush2.bf16.msra.mxu0 %v1673
    %2378 = vmatprep.subr.bf16.mxu0 %v1672
    %2379 = vmatpush2.bf16.msra.mxu0 %v1671
    %2380 = vmatprep.subr.bf16.mxu0 %v1670
    %2381 = vmatpush2.bf16.msra.mxu0 %v1669
    %2382 = vmatprep.mubr.bf16.mxu0 %v460
    %2383 = vmatmul.mubr.bf16.gmra.mxu0 %v458
    %v2384 = vpop.f32.mrf.mxu0
    %v2385 = vadd.f32 %v2344, %v2384
    %v2386 = vpop.f32.mrf.mxu0
    %v2387 = vadd.f32 %v2346, %v2386
    %v2388 = vpop.f32.mrf.mxu0
    %v2389 = vpop.f32.mrf.mxu0
    %2390 = vdwg.mxu0
    %2391 = vmatprep.subr.bf16.mxu0 %v1700
    %2392 = vmatpush1.bf16.msra.mxu0 %v1699
    %2393 = vmatprep.subr.bf16.mxu0 %v1698
    %2394 = vmatpush1.bf16.msra.mxu0 %v1697
    %2395 = vmatprep.subr.bf16.mxu0 %v1696
    %2396 = vmatpush1.bf16.msra.mxu0 %v1695
    %2397 = vmatprep.subr.bf16.mxu0 %v1694
    %2398 = vmatpush1.bf16.msra.mxu0 %v1693
    %2399 = vmatprep.subr.bf16.mxu0 %v1692
    %2400 = vmatpush1.bf16.msra.mxu0 %v1691
    %2401 = vmatprep.subr.bf16.mxu0 %v1690
    %2402 = vmatpush1.bf16.msra.mxu0 %v1689
    %2403 = vmatprep.subr.bf16.mxu0 %v1688
    %2404 = vmatpush1.bf16.msra.mxu0 %v1687
    %2405 = vmatprep.subr.bf16.mxu0 %v1686
    %2406 = vmatpush1.bf16.msra.mxu0 %v1685
    %2407 = vmatprep.subr.bf16.mxu0 %v1716
    %2408 = vmatpush2.bf16.msra.mxu0 %v1715
    %2409 = vmatprep.subr.bf16.mxu0 %v1714
    %2410 = vmatpush2.bf16.msra.mxu0 %v1713
    %2411 = vmatprep.subr.bf16.mxu0 %v1712
    %2412 = vmatpush2.bf16.msra.mxu0 %v1711
    %2413 = vmatprep.subr.bf16.mxu0 %v1710
    %2414 = vmatpush2.bf16.msra.mxu0 %v1709
    %2415 = vmatprep.subr.bf16.mxu0 %v1708
    %2416 = vmatpush2.bf16.msra.mxu0 %v1707
    %2417 = vmatprep.subr.bf16.mxu0 %v1706
    %2418 = vmatpush2.bf16.msra.mxu0 %v1705
    %2419 = vmatprep.subr.bf16.mxu0 %v1704
    %2420 = vmatpush2.bf16.msra.mxu0 %v1703
    %2421 = vmatprep.subr.bf16.mxu0 %v1702
    %2422 = vmatpush2.bf16.msra.mxu0 %v1701
    %2423 = vmatprep.mubr.bf16.mxu0 %v457
    %2424 = vmatmul.mubr.bf16.gmra.mxu0 %v443
    %v2425 = vpop.f32.mrf.mxu0
    %v2426 = vadd.f32 %v2385, %v2425
    %v2427 = vpop.f32.mrf.mxu0
    %v2428 = vadd.f32 %v2387, %v2427
    %v2429 = vpop.f32.mrf.mxu0
    %v2430 = vpop.f32.mrf.mxu0
    %2431 = vdwg.mxu0
    %2432 = vmatprep.subr.bf16.mxu0 %v1732
    %2433 = vmatpush1.bf16.msra.mxu0 %v1731
    %2434 = vmatprep.subr.bf16.mxu0 %v1730
    %2435 = vmatpush1.bf16.msra.mxu0 %v1729
    %2436 = vmatprep.subr.bf16.mxu0 %v1728
    %2437 = vmatpush1.bf16.msra.mxu0 %v1727
    %2438 = vmatprep.subr.bf16.mxu0 %v1726
    %2439 = vmatpush1.bf16.msra.mxu0 %v1725
    %2440 = vmatprep.subr.bf16.mxu0 %v1724
    %2441 = vmatpush1.bf16.msra.mxu0 %v1723
    %2442 = vmatprep.subr.bf16.mxu0 %v1722
    %2443 = vmatpush1.bf16.msra.mxu0 %v1721
    %2444 = vmatprep.subr.bf16.mxu0 %v1720
    %2445 = vmatpush1.bf16.msra.mxu0 %v1719
    %2446 = vmatprep.subr.bf16.mxu0 %v1718
    %2447 = vmatpush1.bf16.msra.mxu0 %v1717
    %2448 = vmatprep.subr.bf16.mxu0 %v1748
    %2449 = vmatpush2.bf16.msra.mxu0 %v1747
    %2450 = vmatprep.subr.bf16.mxu0 %v1746
    %2451 = vmatpush2.bf16.msra.mxu0 %v1745
    %2452 = vmatprep.subr.bf16.mxu0 %v1744
    %2453 = vmatpush2.bf16.msra.mxu0 %v1743
    %2454 = vmatprep.subr.bf16.mxu0 %v1742
    %2455 = vmatpush2.bf16.msra.mxu0 %v1741
    %2456 = vmatprep.subr.bf16.mxu0 %v1740
    %2457 = vmatpush2.bf16.msra.mxu0 %v1739
    %2458 = vmatprep.subr.bf16.mxu0 %v1738
    %2459 = vmatpush2.bf16.msra.mxu0 %v1737
    %2460 = vmatprep.subr.bf16.mxu0 %v1736
    %2461 = vmatpush2.bf16.msra.mxu0 %v1735
    %2462 = vmatprep.subr.bf16.mxu0 %v1734
    %2463 = vmatpush2.bf16.msra.mxu0 %v1733
    %2464 = vmatprep.mubr.bf16.mxu0 %v461
    %2465 = vmatmul.mubr.bf16.gmra.mxu0 %v459
    %v2466 = vpop.f32.mrf.mxu0
    %v2467 = vadd.f32 %v2426, %v2466
    %v2468 = vpop.f32.mrf.mxu0
    %v2469 = vadd.f32 %v2428, %v2468
    %v2470 = vpop.f32.mrf.mxu0
    %v2471 = vpop.f32.mrf.mxu0
    %2472 = vdwg.mxu0
    %2473 = vmatprep.subr.bf16.mxu0 %v1764
    %2474 = vmatpush1.bf16.msra.mxu0 %v1763
    %2475 = vmatprep.subr.bf16.mxu0 %v1762
    %2476 = vmatpush1.bf16.msra.mxu0 %v1761
    %2477 = vmatprep.subr.bf16.mxu0 %v1760
    %2478 = vmatpush1.bf16.msra.mxu0 %v1759
    %2479 = vmatprep.subr.bf16.mxu0 %v1758
    %2480 = vmatpush1.bf16.msra.mxu0 %v1757
    %2481 = vmatprep.subr.bf16.mxu0 %v1756
    %2482 = vmatpush1.bf16.msra.mxu0 %v1755
    %2483 = vmatprep.subr.bf16.mxu0 %v1754
    %2484 = vmatpush1.bf16.msra.mxu0 %v1753
    %2485 = vmatprep.subr.bf16.mxu0 %v1752
    %2486 = vmatpush1.bf16.msra.mxu0 %v1751
    %2487 = vmatprep.subr.bf16.mxu0 %v1750
    %2488 = vmatpush1.bf16.msra.mxu0 %v1749
    %2489 = vmatprep.subr.bf16.mxu0 %v1780
    %2490 = vmatpush2.bf16.msra.mxu0 %v1779
    %2491 = vmatprep.subr.bf16.mxu0 %v1778
    %2492 = vmatpush2.bf16.msra.mxu0 %v1777
    %2493 = vmatprep.subr.bf16.mxu0 %v1776
    %2494 = vmatpush2.bf16.msra.mxu0 %v1775
    %2495 = vmatprep.subr.bf16.mxu0 %v1774
    %2496 = vmatpush2.bf16.msra.mxu0 %v1773
    %2497 = vmatprep.subr.bf16.mxu0 %v1772
    %2498 = vmatpush2.bf16.msra.mxu0 %v1771
    %2499 = vmatprep.subr.bf16.mxu0 %v1770
    %2500 = vmatpush2.bf16.msra.mxu0 %v1769
    %2501 = vmatprep.subr.bf16.mxu0 %v1768
    %2502 = vmatpush2.bf16.msra.mxu0 %v1767
    %2503 = vmatprep.subr.bf16.mxu0 %v1766
    %2504 = vmatpush2.bf16.msra.mxu0 %v1765
    %2505 = vmatprep.mubr.bf16.mxu0 %v498
    %2506 = vmatmul.mubr.bf16.gmra.mxu0 %v484
    %v2507 = vpop.f32.mrf.mxu0
    %v2508 = vadd.f32 %v2467, %v2507
    %v2509 = vpop.f32.mrf.mxu0
    %v2510 = vadd.f32 %v2469, %v2509
    %v2511 = vpop.f32.mrf.mxu0
    %v2512 = vpop.f32.mrf.mxu0
    %2513 = vdwg.mxu0
    %2514 = vmatprep.subr.bf16.mxu0 %v1796
    %2515 = vmatpush1.bf16.msra.mxu0 %v1795
    %2516 = vmatprep.subr.bf16.mxu0 %v1794
    %2517 = vmatpush1.bf16.msra.mxu0 %v1793
    %2518 = vmatprep.subr.bf16.mxu0 %v1792
    %2519 = vmatpush1.bf16.msra.mxu0 %v1791
    %2520 = vmatprep.subr.bf16.mxu0 %v1790
    %2521 = vmatpush1.bf16.msra.mxu0 %v1789
    %2522 = vmatprep.subr.bf16.mxu0 %v1788
    %2523 = vmatpush1.bf16.msra.mxu0 %v1787
    %2524 = vmatprep.subr.bf16.mxu0 %v1786
    %2525 = vmatpush1.bf16.msra.mxu0 %v1785
    %2526 = vmatprep.subr.bf16.mxu0 %v1784
    %2527 = vmatpush1.bf16.msra.mxu0 %v1783
    %2528 = vmatprep.subr.bf16.mxu0 %v1782
    %2529 = vmatpush1.bf16.msra.mxu0 %v1781
    %2530 = vmatprep.subr.bf16.mxu0 %v1812
    %2531 = vmatpush2.bf16.msra.mxu0 %v1811
    %2532 = vmatprep.subr.bf16.mxu0 %v1810
    %2533 = vmatpush2.bf16.msra.mxu0 %v1809
    %2534 = vmatprep.subr.bf16.mxu0 %v1808
    %2535 = vmatpush2.bf16.msra.mxu0 %v1807
    %2536 = vmatprep.subr.bf16.mxu0 %v1806
    %2537 = vmatpush2.bf16.msra.mxu0 %v1805
    %2538 = vmatprep.subr.bf16.mxu0 %v1804
    %2539 = vmatpush2.bf16.msra.mxu0 %v1803
    %2540 = vmatprep.subr.bf16.mxu0 %v1802
    %2541 = vmatpush2.bf16.msra.mxu0 %v1801
    %2542 = vmatprep.subr.bf16.mxu0 %v1800
    %2543 = vmatpush2.bf16.msra.mxu0 %v1799
    %2544 = vmatprep.subr.bf16.mxu0 %v1798
    %2545 = vmatpush2.bf16.msra.mxu0 %v1797
    %2546 = vmatprep.mubr.bf16.mxu0 %v500
    %2547 = vmatmul.mubr.bf16.gmra.mxu0 %v499
    %v2548 = vpop.f32.mrf.mxu0
    %v2549 = vadd.f32 %v2508, %v2548
    %v2550 = vpop.f32.mrf.mxu0
    %v2551 = vadd.f32 %v2510, %v2550
    %v2552 = vpop.f32.mrf.mxu0
    %v2553 = vpop.f32.mrf.mxu0
    %2554 = vdwg.mxu0
    %2555 = vmatprep.subr.bf16.mxu0 0
    %2556 = vmatpush1.bf16.msra.mxu0 0
    %2557 = vmatprep.subr.bf16.mxu0 0
    %2558 = vmatpush1.bf16.msra.mxu0 0
    %2559 = vmatprep.subr.bf16.mxu0 0
    %2560 = vmatpush1.bf16.msra.mxu0 0
    %2561 = vmatprep.subr.bf16.mxu0 0
    %2562 = vmatpush1.bf16.msra.mxu0 0
    %2563 = vmatprep.subr.bf16.mxu0 0
    %2564 = vmatpush1.bf16.msra.mxu0 0
    %2565 = vmatprep.subr.bf16.mxu0 0
    %2566 = vmatpush1.bf16.msra.mxu0 0
    %2567 = vmatprep.subr.bf16.mxu0 %v1816
    %2568 = vmatpush1.bf16.msra.mxu0 %v1815
    %2569 = vmatprep.subr.bf16.mxu0 %v1814
    %2570 = vmatpush1.bf16.msra.mxu0 %v1813
    %2571 = vmatprep.subr.bf16.mxu0 0
    %2572 = vmatpush2.bf16.msra.mxu0 0
    %2573 = vmatprep.subr.bf16.mxu0 0
    %2574 = vmatpush2.bf16.msra.mxu0 0
    %2575 = vmatprep.subr.bf16.mxu0 0
    %2576 = vmatpush2.bf16.msra.mxu0 0
    %2577 = vmatprep.subr.bf16.mxu0 0
    %2578 = vmatpush2.bf16.msra.mxu0 0
    %2579 = vmatprep.subr.bf16.mxu0 0
    %2580 = vmatpush2.bf16.msra.mxu0 0
    %2581 = vmatprep.subr.bf16.mxu0 0
    %2582 = vmatpush2.bf16.msra.mxu0 0
    %2583 = vmatprep.subr.bf16.mxu0 0
    %2584 = vmatpush2.bf16.msra.mxu0 0
    %2585 = vmatprep.subr.bf16.mxu0 0
    %2586 = vmatpush2.bf16.msra.mxu0 0
    %2587 = vmatprep.mubr.bf16.mxu0 0
    %2588 = vmatmul.mubr.bf16.gmra.mxu0 %v2143
    %v2589 = vpop.f32.mrf.mxu0
    %v2590 = vadd.f32 %v2549, %v2589
    %v2591 = vpop.f32.mrf.mxu0
    %v2592 = vadd.f32 %v2551, %v2591
    %v2593 = vpop.f32.mrf.mxu0
    %v2594 = vpop.f32.mrf.mxu0
    %2595 = vdwg.mxu0
    %v2596 = vmax.f32 %v2590, 0.0
    %v2597 = vmax.f32 %v2592, 0.0
    %v2598 = vpack.c.bf16 %v2596, %v2596
    %v2599 = vpack.c.bf16 %v2597, %v2597
    %v2600 = vld [vmem:[%s3] sm:$0xf]
    %v2601 = vld [vmem:[%s3 + $0x4] sm:$0xf]
    %v2602 = vld [vmem:[%s3 + $0x8] sm:$0xf]
    %v2603 = vld [vmem:[%s3 + $0xc] sm:$0xf]
    %v2604 = vld [vmem:[%s3 + $0x10] sm:$0xf]
    %v2605 = vld [vmem:[%s3 + $0x14] sm:$0xf]
    %v2606 = vld [vmem:[%s3 + $0x18] sm:$0xf]
    %v2607 = vld [vmem:[%s3 + $0x1c] sm:$0xf]
    %v2608 = vld [vmem:[%s3 + $0x20] sm:$0xf]
    %v2609 = vld [vmem:[%s3 + $0x24] sm:$0xf]
    %v2610 = vld [vmem:[%s3 + $0x28] sm:$0xf]
    %v2611 = vld [vmem:[%s3 + $0x2c] sm:$0xf]
    %v2612 = vld [vmem:[%s3 + $0x30] sm:$0xf]
    %v2613 = vld [vmem:[%s3 + $0x34] sm:$0xf]
    %v2614 = vld [vmem:[%s3 + $0x38] sm:$0xf]
    %v2615 = vld [vmem:[%s3 + $0x3c] sm:$0xf]
    %v2616 = vld [vmem:[%s3 + $0x40] sm:$0xf]
    %v2617 = vld [vmem:[%s3 + $0x44] sm:$0xf]
    %v2618 = vld [vmem:[%s3 + $0x48] sm:$0xf]
    %v2619 = vld [vmem:[%s3 + $0x4c] sm:$0xf]
    %v2620 = vld [vmem:[%s3 + $0x50] sm:$0xf]
    %v2621 = vld [vmem:[%s3 + $0x54] sm:$0xf]
    %v2622 = vld [vmem:[%s3 + $0x58] sm:$0xf]
    %v2623 = vld [vmem:[%s3 + $0x5c] sm:$0xf]
    %v2624 = vld [vmem:[%s3 + $0x60] sm:$0xf]
    %v2625 = vld [vmem:[%s3 + $0x64] sm:$0xf]
    %v2626 = vld [vmem:[%s3 + $0x68] sm:$0xf]
    %v2627 = vld [vmem:[%s3 + $0x6c] sm:$0xf]
    %v2628 = vld [vmem:[%s3 + $0x70] sm:$0xf]
    %v2629 = vld [vmem:[%s3 + $0x74] sm:$0xf]
    %v2630 = vld [vmem:[%s3 + $0x78] sm:$0xf]
    %v2631 = vld [vmem:[%s3 + $0x7c] sm:$0xf]
    %v2632 = vld [vmem:[%s4] sm:$0x1]
    %v2634 = vlaneseq
    %v2635 = vshrl.u32 %v2634, 7
    %v2636 = vsub.s32 0, %v2635
    %v2637 = vrot.slane %v2632, %v2636
    %v2671 = vunpack.c.l.b16 %v2600
    %v2672 = vunpack.c.l.b16 %v2601
    %v2673 = vunpack.c.l.b16 %v2602
    %v2674 = vunpack.c.l.b16 %v2603
    %v2675 = vunpack.c.l.b16 %v2604
    %v2676 = vunpack.c.l.b16 %v2605
    %v2677 = vunpack.c.l.b16 %v2606
    %v2678 = vunpack.c.l.b16 %v2607
    %v2679 = vunpack.c.l.b16 %v2608
    %v2680 = vunpack.c.l.b16 %v2609
    %v2681 = vunpack.c.l.b16 %v2610
    %v2682 = vunpack.c.l.b16 %v2611
    %v2683 = vunpack.c.l.b16 %v2612
    %v2684 = vunpack.c.l.b16 %v2613
    %v2685 = vunpack.c.l.b16 %v2614
    %v2686 = vunpack.c.l.b16 %v2615
    %v2687 = vunpack.c.l.b16 %v2616
    %v2688 = vunpack.c.l.b16 %v2617
    %v2689 = vunpack.c.l.b16 %v2618
    %v2690 = vunpack.c.l.b16 %v2619
    %v2691 = vunpack.c.l.b16 %v2620
    %v2692 = vunpack.c.l.b16 %v2621
    %v2693 = vunpack.c.l.b16 %v2622
    %v2694 = vunpack.c.l.b16 %v2623
    %v2695 = vunpack.c.l.b16 %v2624
    %v2696 = vunpack.c.l.b16 %v2625
    %v2697 = vunpack.c.l.b16 %v2626
    %v2698 = vunpack.c.l.b16 %v2627
    %v2699 = vunpack.c.l.b16 %v2628
    %v2700 = vunpack.c.l.b16 %v2629
    %v2701 = vunpack.c.l.b16 %v2630
    %v2702 = vunpack.c.l.b16 %v2631
    %v2703 = vpack.c.b16 %v2672, %v2671
    %v2704 = vpack.c.b16 %v2674, %v2673
    %v2705 = vpack.c.b16 %v2676, %v2675
    %v2706 = vpack.c.b16 %v2678, %v2677
    %v2707 = vpack.c.b16 %v2680, %v2679
    %v2708 = vpack.c.b16 %v2682, %v2681
    %v2709 = vpack.c.b16 %v2684, %v2683
    %v2710 = vpack.c.b16 %v2686, %v2685
    %v2711 = vpack.c.b16 %v2688, %v2687
    %v2712 = vpack.c.b16 %v2690, %v2689
    %v2713 = vpack.c.b16 %v2692, %v2691
    %v2714 = vpack.c.b16 %v2694, %v2693
    %v2715 = vpack.c.b16 %v2696, %v2695
    %v2716 = vpack.c.b16 %v2698, %v2697
    %v2717 = vpack.c.b16 %v2700, %v2699
    %v2718 = vpack.c.b16 %v2702, %v2701
    %2735 = vmatprep.subr.bf16.mxu0 0
    %2736 = vmatpush1.bf16.msra.mxu0 %v2710
    %2737 = vmatprep.subr.bf16.mxu0 0
    %2738 = vmatpush1.bf16.msra.mxu0 %v2709
    %2739 = vmatprep.subr.bf16.mxu0 0
    %2740 = vmatpush1.bf16.msra.mxu0 %v2708
    %2741 = vmatprep.subr.bf16.mxu0 0
    %2742 = vmatpush1.bf16.msra.mxu0 %v2707
    %2743 = vmatprep.subr.bf16.mxu0 0
    %2744 = vmatpush1.bf16.msra.mxu0 %v2706
    %2745 = vmatprep.subr.bf16.mxu0 0
    %2746 = vmatpush1.bf16.msra.mxu0 %v2705
    %2747 = vmatprep.subr.bf16.mxu0 0
    %2748 = vmatpush1.bf16.msra.mxu0 %v2704
    %2749 = vmatprep.subr.bf16.mxu0 0
    %2750 = vmatpush1.bf16.msra.mxu0 %v2703
    %2751 = vmatprep.subr.bf16.mxu0 0
    %2752 = vmatpush2.bf16.msra.mxu0 %v2718
    %2753 = vmatprep.subr.bf16.mxu0 0
    %2754 = vmatpush2.bf16.msra.mxu0 %v2717
    %2755 = vmatprep.subr.bf16.mxu0 0
    %2756 = vmatpush2.bf16.msra.mxu0 %v2716
    %2757 = vmatprep.subr.bf16.mxu0 0
    %2758 = vmatpush2.bf16.msra.mxu0 %v2715
    %2759 = vmatprep.subr.bf16.mxu0 0
    %2760 = vmatpush2.bf16.msra.mxu0 %v2714
    %2761 = vmatprep.subr.bf16.mxu0 0
    %2762 = vmatpush2.bf16.msra.mxu0 %v2713
    %2763 = vmatprep.subr.bf16.mxu0 0
    %2764 = vmatpush2.bf16.msra.mxu0 %v2712
    %2765 = vmatprep.subr.bf16.mxu0 0
    %2766 = vmatpush2.bf16.msra.mxu0 %v2711
    %2767 = vmatprep.mubr.bf16.mxu0 %v2599
    %2768 = vmatmul.mubr.bf16.gmra.mxu0 %v2598
    %v2769 = vpop.f32.mrf.mxu0
    %v2770 = vadd.f32 %v2637, %v2769
    %v2771 = vpop.f32.mrf.mxu0
    %v2772 = vpop.f32.mrf.mxu0
    %v2773 = vpop.f32.mrf.mxu0
    %2774 = vdwg.mxu0
    %2775 = vst [vmem:[#allocation2] sm:$0x3] %v2770
    // Predicated region
    $region22: #{dqn_forward.5} parent=1 // pred_check
      _
    $region23: #{dqn_forward.5} parent=1 // pred_check_branch
      %2777 = sbr.rel (0) target = $region25
    $region24: #{dqn_forward.5} parent=1 // pred_region
      %s2779 = ssub.s32 32, 32
      %2780 = vsyncadd [#allocation3], %s2779
      %s2782 = sshll.u32 [#allocation2], 4
      %s2783 = int_to_ptr.vmem [resolvable:$true] %s2782
      %2785 = dma.vmem_to_hbm [thread:$0]  %s2783, 32, %s5, [#allocation3]
    $region25: #{dqn_forward.5} parent=1 // pred_fallthru
      _
    // Predicated region
    $region26: #{dqn_forward.5} parent=1 // pred_check
      _
    $region27: #{dqn_forward.5} parent=1 // pred_check_branch
      %2787 = sbr.rel (0) target = $region29
    $region28: #{dqn_forward.5} parent=1 // pred_region
      %2788 = dma.done [#allocation3], 32
    $region29: #{dqn_forward.5} parent=1 // pred_fallthru
      _
    %2789 = vsyncpa [#allocation3], 1

</llo_original>
